<compile_context>
chip_gen: v7x
topology: tpu7x:2x2x1
jax: 0.10.0
libtpu: 0.0.40
codegen_flags: <defaults>
</compile_context>

<pallas_src>
import functools

import jax
import jax.numpy as jnp
import numpy as np
from jax import lax
from jax.experimental import pallas as pl
from jax.experimental.pallas import tpu as pltpu


def _nn_mlp_kernel(packed_ref, w_ref, b_ref, out_ref, *, n):
    """One grid step = G lane-groups of 128 scenes (batch packed on lanes).

    packed_ref : (G, 4, T, 128) VMEM   planes: x(t), y(t), vx, vy
    w_ref      : (4, E)  SMEM          Linear weight, pre-transposed (y = x @ W + b)
    b_ref      : (E,)    SMEM          Linear bias
    out_ref    : (G, n*E, T, 128) VMEM interaction embedding, channel-major
    """
    G, _, T, Bb = packed_ref.shape
    E = b_ref.shape[0]
    BIG = jnp.float32(1e30)        # dominates any real squared distance / sentinel
    NAN_D2 = jnp.float32(1.0e6)    # 1000.0**2 : NaN sentinel in squared-dist space

    # Linear(4 -> E) parameters: read the SMEM scalars once per invocation.
    w = [[w_ref[k, e] for e in range(E)] for k in range(4)]
    b = [b_ref[e] for e in range(E)]

    k_valid = min(n, T - 1)
    if k_valid < n:
        # Fewer than n neighbours available: padded slots have zero features,
        # i.e. ReLU(bias).  Hoisted out of all loops (computed once).
        pad_cols = [jnp.broadcast_to(jnp.maximum(b[e], jnp.float32(0.0)), (T, Bb))
                    for e in range(E)]

    # Pedestrian index i along the sublane axis (shared across groups/slots).
    row_i = lax.broadcasted_iota(jnp.int32, (T, Bb), 0)

    for g in range(G):
        x2 = packed_ref[g, 0]      # (T, Bb)
        y2 = packed_ref[g, 1]
        vx = packed_ref[g, 2]
        vy = packed_ref[g, 3]

        # Squared-distance matrix as a list of per-neighbour-j (T, Bb) rows
        # (1 vreg each).  sqrt dropped: ordering preserved, NaN sentinel is
        # 1000**2.  (dx*dx could only overflow for |dx| >~ 1e19 -- irrelevant
        # for trajectory coordinates.)
        work = []
        for j in range(T):
            dxj = x2[j:j + 1] - x2             # x2[j, b] - x2[i, b]  (T, Bb)
            dyj = y2[j:j + 1] - y2
            d2 = dxj * dxj + dyj * dyj
            d2 = jnp.where(jnp.isnan(d2), NAN_D2, d2)   # torch.nan_to_num(1000)
            d2 = jnp.where(row_i == j, BIG, d2)         # delete_diagonal
            work.append(d2)

        for s in range(n):
            if s >= k_valid:
                for e in range(E):
                    out_ref[g, s * E + e] = pad_cols[e].astype(out_ref.dtype)
                continue

            # Row-wise (per pedestrian i, per lane-scene b) min over j:
            # pure VPU elementwise tree over the leading axis.
            m = work[0]
            for j in range(1, T):
                m = jnp.minimum(m, work[j])

            # First argmin (smallest j on ties, matching torch.topk/lax.top_k):
            # descending fold so the smallest matching j wins.
            idx = jnp.full((T, Bb), T - 1, dtype=jnp.int32)
            for j in range(T - 2, -1, -1):
                idx = jnp.where(work[j] == m, jnp.int32(j), idx)

            # Gather the chosen neighbour's RAW x2/y2/vx/vy via per-j one-hot
            # selects of lane-row broadcasts (no (T,T,Bb) tensors held live),
            # and exclude it from later slots.  The exclusion update on the
            # last valid slot is dead and skipped.
            last = s == k_valid - 1
            gx2 = jnp.zeros((T, Bb), jnp.float32)
            gy2 = jnp.zeros((T, Bb), jnp.float32)
            gvx = jnp.zeros((T, Bb), jnp.float32)
            gvy = jnp.zeros((T, Bb), jnp.float32)
            for j in range(T):
                sel_j = idx == j
                gx2 = jnp.where(sel_j, x2[j:j + 1], gx2)
                gy2 = jnp.where(sel_j, y2[j:j + 1], gy2)
                gvx = jnp.where(sel_j, vx[j:j + 1], gvx)
                gvy = jnp.where(sel_j, vy[j:j + 1], gvy)
                if not last:
                    work[j] = jnp.where(sel_j, BIG, work[j])

            # Relative features of the selected neighbour; deferred nan -> 0
            # (identical to torch.nan_to_num on the gathered grid).
            fx = gx2 - x2
            fy = gy2 - y2
            fvx = gvx - vx
            fvy = gvy - vy
            fx = jnp.where(jnp.isnan(fx), 0.0, fx)
            fy = jnp.where(jnp.isnan(fy), 0.0, fy)
            fvx = jnp.where(jnp.isnan(fvx), 0.0, fvx)
            fvy = jnp.where(jnp.isnan(fvy), 0.0, fvy)

            # Linear(4 -> E) as scalar*vreg FMAs + ReLU; one full, lane-dense
            # (8,128) tile store per output channel.  (A 4-deep MXU
            # contraction would be <2% utilized -- stays on the VPU.)
            for e in range(E):
                pre = (fx * w[0][e] + fy * w[1][e]
                       + fvx * w[2][e] + fvy * w[3][e] + b[e])
                out_ref[g, s * E + e] = jnp.maximum(pre, 0.0).astype(out_ref.dtype)


def nearest_neighbor_mlp(obs1, obs2, weight, bias, *, n=4, lanes=128,
                         max_groups_per_block=8):
    """obs1, obs2: [B, T, 2]; weight: [4, E]; bias: [1, E] or [E] -> [B*T, n*E]."""
    B, T, _ = obs2.shape
    E = weight.shape[-1]
    out_dim = n * E

    ng = -(-B // lanes)                       # total lane-groups of 128 scenes
    # Groups per grid step: amortize the ~0.35us per-step overhead while keeping
    # >= 4 grid steps when possible (>= 2 steps per TensorCore on v7x).
    G = max(1, min(max_groups_per_block, ng // 4))
    nb = -(-ng // G)                          # grid length
    ng_pad = nb * G
    B_pad = ng_pad * lanes

    obs1f = obs1.astype(jnp.float32)
    obs2f = obs2.astype(jnp.float32)
    vel = obs2f - obs1f
    # Single fused operand -> single per-step input DMA; planes x(t), y(t), vx, vy.
    feats = jnp.stack([obs2f[..., 0], obs2f[..., 1], vel[..., 0], vel[..., 1]],
                      axis=1)                                    # (B, 4, T)
    if B_pad != B:
        feats = jnp.pad(feats, ((0, B_pad - B), (0, 0), (0, 0)))
    packed = jnp.transpose(feats.reshape(ng_pad, lanes, 4, T),
                           (0, 2, 3, 1))                         # (ng_pad, 4, T, 128)

    weight_f = weight.astype(jnp.float32)
    bias_vec = bias.reshape(E).astype(jnp.float32)

    kernel = functools.partial(_nn_mlp_kernel, n=n)
    out = pl.pallas_call(
        kernel,
        out_shape=jax.ShapeDtypeStruct((ng_pad, out_dim, T, lanes), jnp.float32),
        grid_spec=pltpu.PrefetchScalarGridSpec(
            num_scalar_prefetch=0,
            grid=(nb,),
            in_specs=[
                pl.BlockSpec((G, 4, T, lanes), lambda i: (i, 0, 0, 0)),
                pl.BlockSpec(memory_space=pltpu.MemorySpace.SMEM),   # weight (4, E)
                pl.BlockSpec(memory_space=pltpu.MemorySpace.SMEM),   # bias (E,)
            ],
            out_specs=pl.BlockSpec((G, out_dim, T, lanes), lambda i: (i, 0, 0, 0)),
        ),
        compiler_params=pltpu.CompilerParams(
            dimension_semantics=("parallel",),
        ),
    )(packed, weight_f, bias_vec)

    # Channel-major (ng, n*E, T, 128) -> (B*T, n*E).  A consumer that accepts
    # the channel-major layout can skip this transpose (it is the main extra
    # HBM-bandwidth cost on v5e/v6e).
    out = jnp.transpose(out, (0, 3, 2, 1)).reshape(B_pad * T, out_dim)
    return out[:B * T]


def reference(obs1, obs2, weight, bias, *, n=4):
    """Pure-JAX re-implementation of NearestNeighborMLP.forward for checking."""
    B, T, _ = obs2.shape
    vel = obs2 - obs1
    rel_pos = obs2[:, None, :, :] - obs2[:, :, None, :]     # (B, T, T, 2)
    rel_vel = vel[:, None, :, :] - vel[:, :, None, :]
    grid = jnp.concatenate([rel_pos, rel_vel], axis=-1)     # (B, T, T, 4)
    grid = jnp.where(jnp.isnan(grid), 0.0, grid)
    dist = jnp.sqrt(jnp.sum(rel_pos * rel_pos, axis=-1))
    dist = jnp.where(jnp.isnan(dist), 1000.0, dist)
    eye = jnp.eye(T, dtype=bool)
    dist = jnp.where(eye[None], jnp.inf, dist)              # delete_diagonal
    k = min(n, T - 1)
    _, idx = lax.top_k(-dist, k)                            # nearest first
    gathered = jnp.take_along_axis(grid, idx[..., None], axis=2)   # (B, T, k, 4)
    if k < n:
        pad = jnp.zeros((B, T, n - k, 4), grid.dtype)
        gathered = jnp.concatenate([gathered, pad], axis=2)
    emb = jnp.maximum(gathered @ weight + bias.reshape(1, 1, 1, -1), 0.0)
    return emb.reshape(B * T, n * weight.shape[-1])


if __name__ == "__main__":
    # Module hyper-params: n=4 neighbours, out_dim=32, no_vel=False -> input_dim=4
    N_NEIGH, OUT_DIM = 4, 32
    E = OUT_DIM // N_NEIGH

    key = jax.random.PRNGKey(0)
    k1, k2, k3, k4 = jax.random.split(key, 4)

    # 256 scenes of 8 tracks -> 2 lane-packed groups (grid of 2).
    B, T = 256, 8
    obs1 = jax.random.normal(k1, (B, T, 2), dtype=jnp.float32)
    obs2 = obs1 + 0.1 * jax.random.normal(k2, (B, T, 2), dtype=jnp.float32)
    weight = 0.5 * jax.random.normal(k3, (4, E), dtype=jnp.float32)  # Linear(4, E).weight.T
    bias = 0.1 * jax.random.normal(k4, (1, E), dtype=jnp.float32)

    out = nearest_neighbor_mlp(obs1, obs2, weight, bias, n=N_NEIGH)
    jax.block_until_ready(out)
    ref = reference(obs1, obs2, weight, bias, n=N_NEIGH)
    np.testing.assert_allclose(np.asarray(out), np.asarray(ref), rtol=1e-5, atol=1e-5)
    assert out.shape == (B * T, OUT_DIM)

    # Ragged batch (lane padding path) + NaN handling for absent tracks.
    B2 = 3
    obs1b = jax.random.normal(jax.random.PRNGKey(1), (B2, T, 2), dtype=jnp.float32)
    obs2b = obs1b + 0.1 * jax.random.normal(jax.random.PRNGKey(2), (B2, T, 2),
                                            dtype=jnp.float32)
    obs1b = obs1b.at[0, 5].set(jnp.nan)   # track absent at t-1 (NaN velocity)
    obs2b = obs2b.at[1, 3].set(jnp.nan)   # track absent at t   (NaN position)
    out2 = nearest_neighbor_mlp(obs1b, obs2b, weight, bias, n=N_NEIGH)
    jax.block_until_ready(out2)
    ref2 = reference(obs1b, obs2b, weight, bias, n=N_NEIGH)
    np.testing.assert_allclose(np.asarray(out2), np.asarray(ref2),
                               rtol=1e-5, atol=1e-5)

    # Larger batch exercising G > 1 groups per grid step plus lane padding
    # (B=1000 -> 8 lane-groups, G=2, grid of 4).
    B3 = 1000
    obs1c = jax.random.normal(jax.random.PRNGKey(3), (B3, T, 2), dtype=jnp.float32)
    obs2c = obs1c + 0.1 * jax.random.normal(jax.random.PRNGKey(4), (B3, T, 2),
                                            dtype=jnp.float32)
    out3 = nearest_neighbor_mlp(obs1c, obs2c, weight, bias, n=N_NEIGH)
    jax.block_until_ready(out3)
    ref3 = reference(obs1c, obs2c, weight, bias, n=N_NEIGH)
    np.testing.assert_allclose(np.asarray(out3), np.asarray(ref3),
                               rtol=1e-5, atol=1e-5)

    print("KERNEL_OK")
</pallas_src>

<mosaic_0001>
module attributes {stable_mosaic.version = 11 : i64} {
  func.func @_nn_mlp_kernel(%arg0: i32, %arg1: memref<1x4x8x128xf32, #tpu.memory_space<vmem>>, %arg2: memref<4x8xf32, #tpu.memory_space<smem>>, %arg3: memref<8xf32, #tpu.memory_space<smem>>, %arg4: memref<1x32x8x128xf32, #tpu.memory_space<vmem>>) attributes {dimension_semantics = [#tpu.dimension_semantics<parallel>], iteration_bounds = array<i64: 2>, scalar_prefetch = 0 : i64, scratch_operands = 0 : i64, tpu.core_type = #tpu.core_type<tc>, window_params = [{transform_indices = @transform_0, window_bounds = array<i64: 1, 4, 8, 128>}, {transform_indices = @transform_1, window_bounds = array<i64: 4, 8>}, {transform_indices = @transform_2, window_bounds = array<i64: 8>}, {transform_indices = @transform_3, window_bounds = array<i64: 1, 32, 8, 128>}]} {
    %c0 = arith.constant 0 : index
    %c0_0 = arith.constant 0 : index
    %0 = memref.load %arg2[%c0, %c0_0] : memref<4x8xf32, #tpu.memory_space<smem>>
    %c0_1 = arith.constant 0 : index
    %c1 = arith.constant 1 : index
    %1 = memref.load %arg2[%c0_1, %c1] : memref<4x8xf32, #tpu.memory_space<smem>>
    %c0_2 = arith.constant 0 : index
    %c2 = arith.constant 2 : index
    %2 = memref.load %arg2[%c0_2, %c2] : memref<4x8xf32, #tpu.memory_space<smem>>
    %c0_3 = arith.constant 0 : index
    %c3 = arith.constant 3 : index
    %3 = memref.load %arg2[%c0_3, %c3] : memref<4x8xf32, #tpu.memory_space<smem>>
    %c0_4 = arith.constant 0 : index
    %c4 = arith.constant 4 : index
    %4 = memref.load %arg2[%c0_4, %c4] : memref<4x8xf32, #tpu.memory_space<smem>>
    %c0_5 = arith.constant 0 : index
    %c5 = arith.constant 5 : index
    %5 = memref.load %arg2[%c0_5, %c5] : memref<4x8xf32, #tpu.memory_space<smem>>
    %c0_6 = arith.constant 0 : index
    %c6 = arith.constant 6 : index
    %6 = memref.load %arg2[%c0_6, %c6] : memref<4x8xf32, #tpu.memory_space<smem>>
    %c0_7 = arith.constant 0 : index
    %c7 = arith.constant 7 : index
    %7 = memref.load %arg2[%c0_7, %c7] : memref<4x8xf32, #tpu.memory_space<smem>>
    %c1_8 = arith.constant 1 : index
    %c0_9 = arith.constant 0 : index
    %8 = memref.load %arg2[%c1_8, %c0_9] : memref<4x8xf32, #tpu.memory_space<smem>>
    %c1_10 = arith.constant 1 : index
    %c1_11 = arith.constant 1 : index
    %9 = memref.load %arg2[%c1_10, %c1_11] : memref<4x8xf32, #tpu.memory_space<smem>>
    %c1_12 = arith.constant 1 : index
    %c2_13 = arith.constant 2 : index
    %10 = memref.load %arg2[%c1_12, %c2_13] : memref<4x8xf32, #tpu.memory_space<smem>>
    %c1_14 = arith.constant 1 : index
    %c3_15 = arith.constant 3 : index
    %11 = memref.load %arg2[%c1_14, %c3_15] : memref<4x8xf32, #tpu.memory_space<smem>>
    %c1_16 = arith.constant 1 : index
    %c4_17 = arith.constant 4 : index
    %12 = memref.load %arg2[%c1_16, %c4_17] : memref<4x8xf32, #tpu.memory_space<smem>>
    %c1_18 = arith.constant 1 : index
    %c5_19 = arith.constant 5 : index
    %13 = memref.load %arg2[%c1_18, %c5_19] : memref<4x8xf32, #tpu.memory_space<smem>>
    %c1_20 = arith.constant 1 : index
    %c6_21 = arith.constant 6 : index
    %14 = memref.load %arg2[%c1_20, %c6_21] : memref<4x8xf32, #tpu.memory_space<smem>>
    %c1_22 = arith.constant 1 : index
    %c7_23 = arith.constant 7 : index
    %15 = memref.load %arg2[%c1_22, %c7_23] : memref<4x8xf32, #tpu.memory_space<smem>>
    %c2_24 = arith.constant 2 : index
    %c0_25 = arith.constant 0 : index
    %16 = memref.load %arg2[%c2_24, %c0_25] : memref<4x8xf32, #tpu.memory_space<smem>>
    %c2_26 = arith.constant 2 : index
    %c1_27 = arith.constant 1 : index
    %17 = memref.load %arg2[%c2_26, %c1_27] : memref<4x8xf32, #tpu.memory_space<smem>>
    %c2_28 = arith.constant 2 : index
    %c2_29 = arith.constant 2 : index
    %18 = memref.load %arg2[%c2_28, %c2_29] : memref<4x8xf32, #tpu.memory_space<smem>>
    %c2_30 = arith.constant 2 : index
    %c3_31 = arith.constant 3 : index
    %19 = memref.load %arg2[%c2_30, %c3_31] : memref<4x8xf32, #tpu.memory_space<smem>>
    %c2_32 = arith.constant 2 : index
    %c4_33 = arith.constant 4 : index
    %20 = memref.load %arg2[%c2_32, %c4_33] : memref<4x8xf32, #tpu.memory_space<smem>>
    %c2_34 = arith.constant 2 : index
    %c5_35 = arith.constant 5 : index
    %21 = memref.load %arg2[%c2_34, %c5_35] : memref<4x8xf32, #tpu.memory_space<smem>>
    %c2_36 = arith.constant 2 : index
    %c6_37 = arith.constant 6 : index
    %22 = memref.load %arg2[%c2_36, %c6_37] : memref<4x8xf32, #tpu.memory_space<smem>>
    %c2_38 = arith.constant 2 : index
    %c7_39 = arith.constant 7 : index
    %23 = memref.load %arg2[%c2_38, %c7_39] : memref<4x8xf32, #tpu.memory_space<smem>>
    %c3_40 = arith.constant 3 : index
    %c0_41 = arith.constant 0 : index
    %24 = memref.load %arg2[%c3_40, %c0_41] : memref<4x8xf32, #tpu.memory_space<smem>>
    %c3_42 = arith.constant 3 : index
    %c1_43 = arith.constant 1 : index
    %25 = memref.load %arg2[%c3_42, %c1_43] : memref<4x8xf32, #tpu.memory_space<smem>>
    %c3_44 = arith.constant 3 : index
    %c2_45 = arith.constant 2 : index
    %26 = memref.load %arg2[%c3_44, %c2_45] : memref<4x8xf32, #tpu.memory_space<smem>>
    %c3_46 = arith.constant 3 : index
    %c3_47 = arith.constant 3 : index
    %27 = memref.load %arg2[%c3_46, %c3_47] : memref<4x8xf32, #tpu.memory_space<smem>>
    %c3_48 = arith.constant 3 : index
    %c4_49 = arith.constant 4 : index
    %28 = memref.load %arg2[%c3_48, %c4_49] : memref<4x8xf32, #tpu.memory_space<smem>>
    %c3_50 = arith.constant 3 : index
    %c5_51 = arith.constant 5 : index
    %29 = memref.load %arg2[%c3_50, %c5_51] : memref<4x8xf32, #tpu.memory_space<smem>>
    %c3_52 = arith.constant 3 : index
    %c6_53 = arith.constant 6 : index
    %30 = memref.load %arg2[%c3_52, %c6_53] : memref<4x8xf32, #tpu.memory_space<smem>>
    %c3_54 = arith.constant 3 : index
    %c7_55 = arith.constant 7 : index
    %31 = memref.load %arg2[%c3_54, %c7_55] : memref<4x8xf32, #tpu.memory_space<smem>>
    %c0_56 = arith.constant 0 : index
    %32 = memref.load %arg3[%c0_56] : memref<8xf32, #tpu.memory_space<smem>>
    %c1_57 = arith.constant 1 : index
    %33 = memref.load %arg3[%c1_57] : memref<8xf32, #tpu.memory_space<smem>>
    %c2_58 = arith.constant 2 : index
    %34 = memref.load %arg3[%c2_58] : memref<8xf32, #tpu.memory_space<smem>>
    %c3_59 = arith.constant 3 : index
    %35 = memref.load %arg3[%c3_59] : memref<8xf32, #tpu.memory_space<smem>>
    %c4_60 = arith.constant 4 : index
    %36 = memref.load %arg3[%c4_60] : memref<8xf32, #tpu.memory_space<smem>>
    %c5_61 = arith.constant 5 : index
    %37 = memref.load %arg3[%c5_61] : memref<8xf32, #tpu.memory_space<smem>>
    %c6_62 = arith.constant 6 : index
    %38 = memref.load %arg3[%c6_62] : memref<8xf32, #tpu.memory_space<smem>>
    %c7_63 = arith.constant 7 : index
    %39 = memref.load %arg3[%c7_63] : memref<8xf32, #tpu.memory_space<smem>>
    %40 = tpu.iota {dimensions = array<i32: 0>} : vector<8x128xi32>
    %c0_64 = arith.constant 0 : index
    %c0_65 = arith.constant 0 : index
    %c0_66 = arith.constant 0 : index
    %c0_67 = arith.constant 0 : index
    %41 = vector.load %arg1[%c0_64, %c0_65, %c0_66, %c0_67] : memref<1x4x8x128xf32, #tpu.memory_space<vmem>>, vector<1x1x8x128xf32>
    %42 = vector.shape_cast %41 : vector<1x1x8x128xf32> to vector<8x128xf32>
    %c0_68 = arith.constant 0 : index
    %c1_69 = arith.constant 1 : index
    %c0_70 = arith.constant 0 : index
    %c0_71 = arith.constant 0 : index
    %43 = vector.load %arg1[%c0_68, %c1_69, %c0_70, %c0_71] : memref<1x4x8x128xf32, #tpu.memory_space<vmem>>, vector<1x1x8x128xf32>
    %44 = vector.shape_cast %43 : vector<1x1x8x128xf32> to vector<8x128xf32>
    %c0_72 = arith.constant 0 : index
    %c2_73 = arith.constant 2 : index
    %c0_74 = arith.constant 0 : index
    %c0_75 = arith.constant 0 : index
    %45 = vector.load %arg1[%c0_72, %c2_73, %c0_74, %c0_75] : memref<1x4x8x128xf32, #tpu.memory_space<vmem>>, vector<1x1x8x128xf32>
    %46 = vector.shape_cast %45 : vector<1x1x8x128xf32> to vector<8x128xf32>
    %c0_76 = arith.constant 0 : index
    %c3_77 = arith.constant 3 : index
    %c0_78 = arith.constant 0 : index
    %c0_79 = arith.constant 0 : index
    %47 = vector.load %arg1[%c0_76, %c3_77, %c0_78, %c0_79] : memref<1x4x8x128xf32, #tpu.memory_space<vmem>>, vector<1x1x8x128xf32>
    %48 = vector.shape_cast %47 : vector<1x1x8x128xf32> to vector<8x128xf32>
    %49 = vector.extract_strided_slice %42 {offsets = [0, 0], sizes = [1, 128], strides = [1, 1]} : vector<8x128xf32> to vector<1x128xf32>
    %50 = vector.broadcast %49 : vector<1x128xf32> to vector<8x128xf32>
    %51 = arith.subf %50, %42 : vector<8x128xf32>
    %52 = vector.extract_strided_slice %44 {offsets = [0, 0], sizes = [1, 128], strides = [1, 1]} : vector<8x128xf32> to vector<1x128xf32>
    %53 = vector.broadcast %52 : vector<1x128xf32> to vector<8x128xf32>
    %54 = arith.subf %53, %44 : vector<8x128xf32>
    %55 = arith.mulf %51, %51 : vector<8x128xf32>
    %56 = arith.mulf %54, %54 : vector<8x128xf32>
    %57 = arith.addf %55, %56 : vector<8x128xf32>
    %58 = arith.cmpf one, %57, %57 : vector<8x128xf32>
    %cst = arith.constant 1.000000e+06 : f32
    %59 = vector.broadcast %cst : f32 to vector<8x128xf32>
    %60 = arith.select %58, %59, %57 : vector<8x128xi1>, vector<8x128xf32>
    %c0_i32 = arith.constant 0 : i32
    %61 = vector.broadcast %c0_i32 : i32 to vector<8x128xi32>
    %62 = arith.cmpi eq, %40, %61 : vector<8x128xi32>
    %cst_80 = arith.constant 1.000000e+30 : f32
    %63 = vector.broadcast %cst_80 : f32 to vector<8x128xf32>
    %64 = arith.select %62, %63, %60 : vector<8x128xi1>, vector<8x128xf32>
    %65 = vector.extract_strided_slice %42 {offsets = [1, 0], sizes = [1, 128], strides = [1, 1]} : vector<8x128xf32> to vector<1x128xf32>
    %66 = vector.broadcast %65 : vector<1x128xf32> to vector<8x128xf32>
    %67 = arith.subf %66, %42 : vector<8x128xf32>
    %68 = vector.extract_strided_slice %44 {offsets = [1, 0], sizes = [1, 128], strides = [1, 1]} : vector<8x128xf32> to vector<1x128xf32>
    %69 = vector.broadcast %68 : vector<1x128xf32> to vector<8x128xf32>
    %70 = arith.subf %69, %44 : vector<8x128xf32>
    %71 = arith.mulf %67, %67 : vector<8x128xf32>
    %72 = arith.mulf %70, %70 : vector<8x128xf32>
    %73 = arith.addf %71, %72 : vector<8x128xf32>
    %74 = arith.cmpf one, %73, %73 : vector<8x128xf32>
    %cst_81 = arith.constant 1.000000e+06 : f32
    %75 = vector.broadcast %cst_81 : f32 to vector<8x128xf32>
    %76 = arith.select %74, %75, %73 : vector<8x128xi1>, vector<8x128xf32>
    %c1_i32 = arith.constant 1 : i32
    %77 = vector.broadcast %c1_i32 : i32 to vector<8x128xi32>
    %78 = arith.cmpi eq, %40, %77 : vector<8x128xi32>
    %cst_82 = arith.constant 1.000000e+30 : f32
    %79 = vector.broadcast %cst_82 : f32 to vector<8x128xf32>
    %80 = arith.select %78, %79, %76 : vector<8x128xi1>, vector<8x128xf32>
    %81 = vector.extract_strided_slice %42 {offsets = [2, 0], sizes = [1, 128], strides = [1, 1]} : vector<8x128xf32> to vector<1x128xf32>
    %82 = vector.broadcast %81 : vector<1x128xf32> to vector<8x128xf32>
    %83 = arith.subf %82, %42 : vector<8x128xf32>
    %84 = vector.extract_strided_slice %44 {offsets = [2, 0], sizes = [1, 128], strides = [1, 1]} : vector<8x128xf32> to vector<1x128xf32>
    %85 = vector.broadcast %84 : vector<1x128xf32> to vector<8x128xf32>
    %86 = arith.subf %85, %44 : vector<8x128xf32>
    %87 = arith.mulf %83, %83 : vector<8x128xf32>
    %88 = arith.mulf %86, %86 : vector<8x128xf32>
    %89 = arith.addf %87, %88 : vector<8x128xf32>
    %90 = arith.cmpf one, %89, %89 : vector<8x128xf32>
    %cst_83 = arith.constant 1.000000e+06 : f32
    %91 = vector.broadcast %cst_83 : f32 to vector<8x128xf32>
    %92 = arith.select %90, %91, %89 : vector<8x128xi1>, vector<8x128xf32>
    %c2_i32 = arith.constant 2 : i32
    %93 = vector.broadcast %c2_i32 : i32 to vector<8x128xi32>
    %94 = arith.cmpi eq, %40, %93 : vector<8x128xi32>
    %cst_84 = arith.constant 1.000000e+30 : f32
    %95 = vector.broadcast %cst_84 : f32 to vector<8x128xf32>
    %96 = arith.select %94, %95, %92 : vector<8x128xi1>, vector<8x128xf32>
    %97 = vector.extract_strided_slice %42 {offsets = [3, 0], sizes = [1, 128], strides = [1, 1]} : vector<8x128xf32> to vector<1x128xf32>
    %98 = vector.broadcast %97 : vector<1x128xf32> to vector<8x128xf32>
    %99 = arith.subf %98, %42 : vector<8x128xf32>
    %100 = vector.extract_strided_slice %44 {offsets = [3, 0], sizes = [1, 128], strides = [1, 1]} : vector<8x128xf32> to vector<1x128xf32>
    %101 = vector.broadcast %100 : vector<1x128xf32> to vector<8x128xf32>
    %102 = arith.subf %101, %44 : vector<8x128xf32>
    %103 = arith.mulf %99, %99 : vector<8x128xf32>
    %104 = arith.mulf %102, %102 : vector<8x128xf32>
    %105 = arith.addf %103, %104 : vector<8x128xf32>
    %106 = arith.cmpf one, %105, %105 : vector<8x128xf32>
    %cst_85 = arith.constant 1.000000e+06 : f32
    %107 = vector.broadcast %cst_85 : f32 to vector<8x128xf32>
    %108 = arith.select %106, %107, %105 : vector<8x128xi1>, vector<8x128xf32>
    %c3_i32 = arith.constant 3 : i32
    %109 = vector.broadcast %c3_i32 : i32 to vector<8x128xi32>
    %110 = arith.cmpi eq, %40, %109 : vector<8x128xi32>
    %cst_86 = arith.constant 1.000000e+30 : f32
    %111 = vector.broadcast %cst_86 : f32 to vector<8x128xf32>
    %112 = arith.select %110, %111, %108 : vector<8x128xi1>, vector<8x128xf32>
    %113 = vector.extract_strided_slice %42 {offsets = [4, 0], sizes = [1, 128], strides = [1, 1]} : vector<8x128xf32> to vector<1x128xf32>
    %114 = vector.broadcast %113 : vector<1x128xf32> to vector<8x128xf32>
    %115 = arith.subf %114, %42 : vector<8x128xf32>
    %116 = vector.extract_strided_slice %44 {offsets = [4, 0], sizes = [1, 128], strides = [1, 1]} : vector<8x128xf32> to vector<1x128xf32>
    %117 = vector.broadcast %116 : vector<1x128xf32> to vector<8x128xf32>
    %118 = arith.subf %117, %44 : vector<8x128xf32>
    %119 = arith.mulf %115, %115 : vector<8x128xf32>
    %120 = arith.mulf %118, %118 : vector<8x128xf32>
    %121 = arith.addf %119, %120 : vector<8x128xf32>
    %122 = arith.cmpf one, %121, %121 : vector<8x128xf32>
    %cst_87 = arith.constant 1.000000e+06 : f32
    %123 = vector.broadcast %cst_87 : f32 to vector<8x128xf32>
    %124 = arith.select %122, %123, %121 : vector<8x128xi1>, vector<8x128xf32>
    %c4_i32 = arith.constant 4 : i32
    %125 = vector.broadcast %c4_i32 : i32 to vector<8x128xi32>
    %126 = arith.cmpi eq, %40, %125 : vector<8x128xi32>
    %cst_88 = arith.constant 1.000000e+30 : f32
    %127 = vector.broadcast %cst_88 : f32 to vector<8x128xf32>
    %128 = arith.select %126, %127, %124 : vector<8x128xi1>, vector<8x128xf32>
    %129 = vector.extract_strided_slice %42 {offsets = [5, 0], sizes = [1, 128], strides = [1, 1]} : vector<8x128xf32> to vector<1x128xf32>
    %130 = vector.broadcast %129 : vector<1x128xf32> to vector<8x128xf32>
    %131 = arith.subf %130, %42 : vector<8x128xf32>
    %132 = vector.extract_strided_slice %44 {offsets = [5, 0], sizes = [1, 128], strides = [1, 1]} : vector<8x128xf32> to vector<1x128xf32>
    %133 = vector.broadcast %132 : vector<1x128xf32> to vector<8x128xf32>
    %134 = arith.subf %133, %44 : vector<8x128xf32>
    %135 = arith.mulf %131, %131 : vector<8x128xf32>
    %136 = arith.mulf %134, %134 : vector<8x128xf32>
    %137 = arith.addf %135, %136 : vector<8x128xf32>
    %138 = arith.cmpf one, %137, %137 : vector<8x128xf32>
    %cst_89 = arith.constant 1.000000e+06 : f32
    %139 = vector.broadcast %cst_89 : f32 to vector<8x128xf32>
    %140 = arith.select %138, %139, %137 : vector<8x128xi1>, vector<8x128xf32>
    %c5_i32 = arith.constant 5 : i32
    %141 = vector.broadcast %c5_i32 : i32 to vector<8x128xi32>
    %142 = arith.cmpi eq, %40, %141 : vector<8x128xi32>
    %cst_90 = arith.constant 1.000000e+30 : f32
    %143 = vector.broadcast %cst_90 : f32 to vector<8x128xf32>
    %144 = arith.select %142, %143, %140 : vector<8x128xi1>, vector<8x128xf32>
    %145 = vector.extract_strided_slice %42 {offsets = [6, 0], sizes = [1, 128], strides = [1, 1]} : vector<8x128xf32> to vector<1x128xf32>
    %146 = vector.broadcast %145 : vector<1x128xf32> to vector<8x128xf32>
    %147 = arith.subf %146, %42 : vector<8x128xf32>
    %148 = vector.extract_strided_slice %44 {offsets = [6, 0], sizes = [1, 128], strides = [1, 1]} : vector<8x128xf32> to vector<1x128xf32>
    %149 = vector.broadcast %148 : vector<1x128xf32> to vector<8x128xf32>
    %150 = arith.subf %149, %44 : vector<8x128xf32>
    %151 = arith.mulf %147, %147 : vector<8x128xf32>
    %152 = arith.mulf %150, %150 : vector<8x128xf32>
    %153 = arith.addf %151, %152 : vector<8x128xf32>
    %154 = arith.cmpf one, %153, %153 : vector<8x128xf32>
    %cst_91 = arith.constant 1.000000e+06 : f32
    %155 = vector.broadcast %cst_91 : f32 to vector<8x128xf32>
    %156 = arith.select %154, %155, %153 : vector<8x128xi1>, vector<8x128xf32>
    %c6_i32 = arith.constant 6 : i32
    %157 = vector.broadcast %c6_i32 : i32 to vector<8x128xi32>
    %158 = arith.cmpi eq, %40, %157 : vector<8x128xi32>
    %cst_92 = arith.constant 1.000000e+30 : f32
    %159 = vector.broadcast %cst_92 : f32 to vector<8x128xf32>
    %160 = arith.select %158, %159, %156 : vector<8x128xi1>, vector<8x128xf32>
    %161 = vector.extract_strided_slice %42 {offsets = [7, 0], sizes = [1, 128], strides = [1, 1]} : vector<8x128xf32> to vector<1x128xf32>
    %162 = vector.broadcast %161 : vector<1x128xf32> to vector<8x128xf32>
    %163 = arith.subf %162, %42 : vector<8x128xf32>
    %164 = vector.extract_strided_slice %44 {offsets = [7, 0], sizes = [1, 128], strides = [1, 1]} : vector<8x128xf32> to vector<1x128xf32>
    %165 = vector.broadcast %164 : vector<1x128xf32> to vector<8x128xf32>
    %166 = arith.subf %165, %44 : vector<8x128xf32>
    %167 = arith.mulf %163, %163 : vector<8x128xf32>
    %168 = arith.mulf %166, %166 : vector<8x128xf32>
    %169 = arith.addf %167, %168 : vector<8x128xf32>
    %170 = arith.cmpf one, %169, %169 : vector<8x128xf32>
    %cst_93 = arith.constant 1.000000e+06 : f32
    %171 = vector.broadcast %cst_93 : f32 to vector<8x128xf32>
    %172 = arith.select %170, %171, %169 : vector<8x128xi1>, vector<8x128xf32>
    %c7_i32 = arith.constant 7 : i32
    %173 = vector.broadcast %c7_i32 : i32 to vector<8x128xi32>
    %174 = arith.cmpi eq, %40, %173 : vector<8x128xi32>
    %cst_94 = arith.constant 1.000000e+30 : f32
    %175 = vector.broadcast %cst_94 : f32 to vector<8x128xf32>
    %176 = arith.select %174, %175, %172 : vector<8x128xi1>, vector<8x128xf32>
    %177 = arith.minimumf %64, %80 : vector<8x128xf32>
    %178 = arith.minimumf %177, %96 : vector<8x128xf32>
    %179 = arith.minimumf %178, %112 : vector<8x128xf32>
    %180 = arith.minimumf %179, %128 : vector<8x128xf32>
    %181 = arith.minimumf %180, %144 : vector<8x128xf32>
    %182 = arith.minimumf %181, %160 : vector<8x128xf32>
    %183 = arith.minimumf %182, %176 : vector<8x128xf32>
    %c7_i32_95 = arith.constant 7 : i32
    %184 = vector.broadcast %c7_i32_95 : i32 to vector<8x128xi32>
    %185 = arith.cmpf oeq, %160, %183 : vector<8x128xf32>
    %c6_i32_96 = arith.constant 6 : i32
    %186 = vector.broadcast %c6_i32_96 : i32 to vector<8x128xi32>
    %187 = arith.select %185, %186, %184 : vector<8x128xi1>, vector<8x128xi32>
    %188 = arith.cmpf oeq, %144, %183 : vector<8x128xf32>
    %c5_i32_97 = arith.constant 5 : i32
    %189 = vector.broadcast %c5_i32_97 : i32 to vector<8x128xi32>
    %190 = arith.select %188, %189, %187 : vector<8x128xi1>, vector<8x128xi32>
    %191 = arith.cmpf oeq, %128, %183 : vector<8x128xf32>
    %c4_i32_98 = arith.constant 4 : i32
    %192 = vector.broadcast %c4_i32_98 : i32 to vector<8x128xi32>
    %193 = arith.select %191, %192, %190 : vector<8x128xi1>, vector<8x128xi32>
    %194 = arith.cmpf oeq, %112, %183 : vector<8x128xf32>
    %c3_i32_99 = arith.constant 3 : i32
    %195 = vector.broadcast %c3_i32_99 : i32 to vector<8x128xi32>
    %196 = arith.select %194, %195, %193 : vector<8x128xi1>, vector<8x128xi32>
    %197 = arith.cmpf oeq, %96, %183 : vector<8x128xf32>
    %c2_i32_100 = arith.constant 2 : i32
    %198 = vector.broadcast %c2_i32_100 : i32 to vector<8x128xi32>
    %199 = arith.select %197, %198, %196 : vector<8x128xi1>, vector<8x128xi32>
    %200 = arith.cmpf oeq, %80, %183 : vector<8x128xf32>
    %c1_i32_101 = arith.constant 1 : i32
    %201 = vector.broadcast %c1_i32_101 : i32 to vector<8x128xi32>
    %202 = arith.select %200, %201, %199 : vector<8x128xi1>, vector<8x128xi32>
    %203 = arith.cmpf oeq, %64, %183 : vector<8x128xf32>
    %c0_i32_102 = arith.constant 0 : i32
    %204 = vector.broadcast %c0_i32_102 : i32 to vector<8x128xi32>
    %205 = arith.select %203, %204, %202 : vector<8x128xi1>, vector<8x128xi32>
    %cst_103 = arith.constant 0.000000e+00 : f32
    %206 = vector.broadcast %cst_103 : f32 to vector<8x128xf32>
    %cst_104 = arith.constant 0.000000e+00 : f32
    %207 = vector.broadcast %cst_104 : f32 to vector<8x128xf32>
    %cst_105 = arith.constant 0.000000e+00 : f32
    %208 = vector.broadcast %cst_105 : f32 to vector<8x128xf32>
    %cst_106 = arith.constant 0.000000e+00 : f32
    %209 = vector.broadcast %cst_106 : f32 to vector<8x128xf32>
    %c0_i32_107 = arith.constant 0 : i32
    %210 = vector.broadcast %c0_i32_107 : i32 to vector<8x128xi32>
    %211 = arith.cmpi eq, %205, %210 : vector<8x128xi32>
    %212 = vector.extract_strided_slice %42 {offsets = [0, 0], sizes = [1, 128], strides = [1, 1]} : vector<8x128xf32> to vector<1x128xf32>
    %213 = vector.shape_cast %212 : vector<1x128xf32> to vector<1x128xf32>
    %214 = vector.broadcast %213 : vector<1x128xf32> to vector<8x128xf32>
    %215 = arith.select %211, %214, %206 : vector<8x128xi1>, vector<8x128xf32>
    %216 = vector.extract_strided_slice %44 {offsets = [0, 0], sizes = [1, 128], strides = [1, 1]} : vector<8x128xf32> to vector<1x128xf32>
    %217 = vector.shape_cast %216 : vector<1x128xf32> to vector<1x128xf32>
    %218 = vector.broadcast %217 : vector<1x128xf32> to vector<8x128xf32>
    %219 = arith.select %211, %218, %207 : vector<8x128xi1>, vector<8x128xf32>
    %220 = vector.extract_strided_slice %46 {offsets = [0, 0], sizes = [1, 128], strides = [1, 1]} : vector<8x128xf32> to vector<1x128xf32>
    %221 = vector.shape_cast %220 : vector<1x128xf32> to vector<1x128xf32>
    %222 = vector.broadcast %221 : vector<1x128xf32> to vector<8x128xf32>
    %223 = arith.select %211, %222, %208 : vector<8x128xi1>, vector<8x128xf32>
    %224 = vector.extract_strided_slice %48 {offsets = [0, 0], sizes = [1, 128], strides = [1, 1]} : vector<8x128xf32> to vector<1x128xf32>
    %225 = vector.shape_cast %224 : vector<1x128xf32> to vector<1x128xf32>
    %226 = vector.broadcast %225 : vector<1x128xf32> to vector<8x128xf32>
    %227 = arith.select %211, %226, %209 : vector<8x128xi1>, vector<8x128xf32>
    %cst_108 = arith.constant 1.000000e+30 : f32
    %228 = vector.broadcast %cst_108 : f32 to vector<8x128xf32>
    %229 = arith.select %211, %228, %64 : vector<8x128xi1>, vector<8x128xf32>
    %c1_i32_109 = arith.constant 1 : i32
    %230 = vector.broadcast %c1_i32_109 : i32 to vector<8x128xi32>
    %231 = arith.cmpi eq, %205, %230 : vector<8x128xi32>
    %232 = vector.extract_strided_slice %42 {offsets = [1, 0], sizes = [1, 128], strides = [1, 1]} : vector<8x128xf32> to vector<1x128xf32>
    %233 = vector.shape_cast %232 : vector<1x128xf32> to vector<1x128xf32>
    %234 = vector.broadcast %233 : vector<1x128xf32> to vector<8x128xf32>
    %235 = arith.select %231, %234, %215 : vector<8x128xi1>, vector<8x128xf32>
    %236 = vector.extract_strided_slice %44 {offsets = [1, 0], sizes = [1, 128], strides = [1, 1]} : vector<8x128xf32> to vector<1x128xf32>
    %237 = vector.shape_cast %236 : vector<1x128xf32> to vector<1x128xf32>
    %238 = vector.broadcast %237 : vector<1x128xf32> to vector<8x128xf32>
    %239 = arith.select %231, %238, %219 : vector<8x128xi1>, vector<8x128xf32>
    %240 = vector.extract_strided_slice %46 {offsets = [1, 0], sizes = [1, 128], strides = [1, 1]} : vector<8x128xf32> to vector<1x128xf32>
    %241 = vector.shape_cast %240 : vector<1x128xf32> to vector<1x128xf32>
    %242 = vector.broadcast %241 : vector<1x128xf32> to vector<8x128xf32>
    %243 = arith.select %231, %242, %223 : vector<8x128xi1>, vector<8x128xf32>
    %244 = vector.extract_strided_slice %48 {offsets = [1, 0], sizes = [1, 128], strides = [1, 1]} : vector<8x128xf32> to vector<1x128xf32>
    %245 = vector.shape_cast %244 : vector<1x128xf32> to vector<1x128xf32>
    %246 = vector.broadcast %245 : vector<1x128xf32> to vector<8x128xf32>
    %247 = arith.select %231, %246, %227 : vector<8x128xi1>, vector<8x128xf32>
    %cst_110 = arith.constant 1.000000e+30 : f32
    %248 = vector.broadcast %cst_110 : f32 to vector<8x128xf32>
    %249 = arith.select %231, %248, %80 : vector<8x128xi1>, vector<8x128xf32>
    %c2_i32_111 = arith.constant 2 : i32
    %250 = vector.broadcast %c2_i32_111 : i32 to vector<8x128xi32>
    %251 = arith.cmpi eq, %205, %250 : vector<8x128xi32>
    %252 = vector.extract_strided_slice %42 {offsets = [2, 0], sizes = [1, 128], strides = [1, 1]} : vector<8x128xf32> to vector<1x128xf32>
    %253 = vector.shape_cast %252 : vector<1x128xf32> to vector<1x128xf32>
    %254 = vector.broadcast %253 : vector<1x128xf32> to vector<8x128xf32>
    %255 = arith.select %251, %254, %235 : vector<8x128xi1>, vector<8x128xf32>
    %256 = vector.extract_strided_slice %44 {offsets = [2, 0], sizes = [1, 128], strides = [1, 1]} : vector<8x128xf32> to vector<1x128xf32>
    %257 = vector.shape_cast %256 : vector<1x128xf32> to vector<1x128xf32>
    %258 = vector.broadcast %257 : vector<1x128xf32> to vector<8x128xf32>
    %259 = arith.select %251, %258, %239 : vector<8x128xi1>, vector<8x128xf32>
    %260 = vector.extract_strided_slice %46 {offsets = [2, 0], sizes = [1, 128], strides = [1, 1]} : vector<8x128xf32> to vector<1x128xf32>
    %261 = vector.shape_cast %260 : vector<1x128xf32> to vector<1x128xf32>
    %262 = vector.broadcast %261 : vector<1x128xf32> to vector<8x128xf32>
    %263 = arith.select %251, %262, %243 : vector<8x128xi1>, vector<8x128xf32>
    %264 = vector.extract_strided_slice %48 {offsets = [2, 0], sizes = [1, 128], strides = [1, 1]} : vector<8x128xf32> to vector<1x128xf32>
    %265 = vector.shape_cast %264 : vector<1x128xf32> to vector<1x128xf32>
    %266 = vector.broadcast %265 : vector<1x128xf32> to vector<8x128xf32>
    %267 = arith.select %251, %266, %247 : vector<8x128xi1>, vector<8x128xf32>
    %cst_112 = arith.constant 1.000000e+30 : f32
    %268 = vector.broadcast %cst_112 : f32 to vector<8x128xf32>
    %269 = arith.select %251, %268, %96 : vector<8x128xi1>, vector<8x128xf32>
    %c3_i32_113 = arith.constant 3 : i32
    %270 = vector.broadcast %c3_i32_113 : i32 to vector<8x128xi32>
    %271 = arith.cmpi eq, %205, %270 : vector<8x128xi32>
    %272 = vector.extract_strided_slice %42 {offsets = [3, 0], sizes = [1, 128], strides = [1, 1]} : vector<8x128xf32> to vector<1x128xf32>
    %273 = vector.shape_cast %272 : vector<1x128xf32> to vector<1x128xf32>
    %274 = vector.broadcast %273 : vector<1x128xf32> to vector<8x128xf32>
    %275 = arith.select %271, %274, %255 : vector<8x128xi1>, vector<8x128xf32>
    %276 = vector.extract_strided_slice %44 {offsets = [3, 0], sizes = [1, 128], strides = [1, 1]} : vector<8x128xf32> to vector<1x128xf32>
    %277 = vector.shape_cast %276 : vector<1x128xf32> to vector<1x128xf32>
    %278 = vector.broadcast %277 : vector<1x128xf32> to vector<8x128xf32>
    %279 = arith.select %271, %278, %259 : vector<8x128xi1>, vector<8x128xf32>
    %280 = vector.extract_strided_slice %46 {offsets = [3, 0], sizes = [1, 128], strides = [1, 1]} : vector<8x128xf32> to vector<1x128xf32>
    %281 = vector.shape_cast %280 : vector<1x128xf32> to vector<1x128xf32>
    %282 = vector.broadcast %281 : vector<1x128xf32> to vector<8x128xf32>
    %283 = arith.select %271, %282, %263 : vector<8x128xi1>, vector<8x128xf32>
    %284 = vector.extract_strided_slice %48 {offsets = [3, 0], sizes = [1, 128], strides = [1, 1]} : vector<8x128xf32> to vector<1x128xf32>
    %285 = vector.shape_cast %284 : vector<1x128xf32> to vector<1x128xf32>
    %286 = vector.broadcast %285 : vector<1x128xf32> to vector<8x128xf32>
    %287 = arith.select %271, %286, %267 : vector<8x128xi1>, vector<8x128xf32>
    %cst_114 = arith.constant 1.000000e+30 : f32
    %288 = vector.broadcast %cst_114 : f32 to vector<8x128xf32>
    %289 = arith.select %271, %288, %112 : vector<8x128xi1>, vector<8x128xf32>
    %c4_i32_115 = arith.constant 4 : i32
    %290 = vector.broadcast %c4_i32_115 : i32 to vector<8x128xi32>
    %291 = arith.cmpi eq, %205, %290 : vector<8x128xi32>
    %292 = vector.extract_strided_slice %42 {offsets = [4, 0], sizes = [1, 128], strides = [1, 1]} : vector<8x128xf32> to vector<1x128xf32>
    %293 = vector.shape_cast %292 : vector<1x128xf32> to vector<1x128xf32>
    %294 = vector.broadcast %293 : vector<1x128xf32> to vector<8x128xf32>
    %295 = arith.select %291, %294, %275 : vector<8x128xi1>, vector<8x128xf32>
    %296 = vector.extract_strided_slice %44 {offsets = [4, 0], sizes = [1, 128], strides = [1, 1]} : vector<8x128xf32> to vector<1x128xf32>
    %297 = vector.shape_cast %296 : vector<1x128xf32> to vector<1x128xf32>
    %298 = vector.broadcast %297 : vector<1x128xf32> to vector<8x128xf32>
    %299 = arith.select %291, %298, %279 : vector<8x128xi1>, vector<8x128xf32>
    %300 = vector.extract_strided_slice %46 {offsets = [4, 0], sizes = [1, 128], strides = [1, 1]} : vector<8x128xf32> to vector<1x128xf32>
    %301 = vector.shape_cast %300 : vector<1x128xf32> to vector<1x128xf32>
    %302 = vector.broadcast %301 : vector<1x128xf32> to vector<8x128xf32>
    %303 = arith.select %291, %302, %283 : vector<8x128xi1>, vector<8x128xf32>
    %304 = vector.extract_strided_slice %48 {offsets = [4, 0], sizes = [1, 128], strides = [1, 1]} : vector<8x128xf32> to vector<1x128xf32>
    %305 = vector.shape_cast %304 : vector<1x128xf32> to vector<1x128xf32>
    %306 = vector.broadcast %305 : vector<1x128xf32> to vector<8x128xf32>
    %307 = arith.select %291, %306, %287 : vector<8x128xi1>, vector<8x128xf32>
    %cst_116 = arith.constant 1.000000e+30 : f32
    %308 = vector.broadcast %cst_116 : f32 to vector<8x128xf32>
    %309 = arith.select %291, %308, %128 : vector<8x128xi1>, vector<8x128xf32>
    %c5_i32_117 = arith.constant 5 : i32
    %310 = vector.broadcast %c5_i32_117 : i32 to vector<8x128xi32>
    %311 = arith.cmpi eq, %205, %310 : vector<8x128xi32>
    %312 = vector.extract_strided_slice %42 {offsets = [5, 0], sizes = [1, 128], strides = [1, 1]} : vector<8x128xf32> to vector<1x128xf32>
    %313 = vector.shape_cast %312 : vector<1x128xf32> to vector<1x128xf32>
    %314 = vector.broadcast %313 : vector<1x128xf32> to vector<8x128xf32>
    %315 = arith.select %311, %314, %295 : vector<8x128xi1>, vector<8x128xf32>
    %316 = vector.extract_strided_slice %44 {offsets = [5, 0], sizes = [1, 128], strides = [1, 1]} : vector<8x128xf32> to vector<1x128xf32>
    %317 = vector.shape_cast %316 : vector<1x128xf32> to vector<1x128xf32>
    %318 = vector.broadcast %317 : vector<1x128xf32> to vector<8x128xf32>
    %319 = arith.select %311, %318, %299 : vector<8x128xi1>, vector<8x128xf32>
    %320 = vector.extract_strided_slice %46 {offsets = [5, 0], sizes = [1, 128], strides = [1, 1]} : vector<8x128xf32> to vector<1x128xf32>
    %321 = vector.shape_cast %320 : vector<1x128xf32> to vector<1x128xf32>
    %322 = vector.broadcast %321 : vector<1x128xf32> to vector<8x128xf32>
    %323 = arith.select %311, %322, %303 : vector<8x128xi1>, vector<8x128xf32>
    %324 = vector.extract_strided_slice %48 {offsets = [5, 0], sizes = [1, 128], strides = [1, 1]} : vector<8x128xf32> to vector<1x128xf32>
    %325 = vector.shape_cast %324 : vector<1x128xf32> to vector<1x128xf32>
    %326 = vector.broadcast %325 : vector<1x128xf32> to vector<8x128xf32>
    %327 = arith.select %311, %326, %307 : vector<8x128xi1>, vector<8x128xf32>
    %cst_118 = arith.constant 1.000000e+30 : f32
    %328 = vector.broadcast %cst_118 : f32 to vector<8x128xf32>
    %329 = arith.select %311, %328, %144 : vector<8x128xi1>, vector<8x128xf32>
    %c6_i32_119 = arith.constant 6 : i32
    %330 = vector.broadcast %c6_i32_119 : i32 to vector<8x128xi32>
    %331 = arith.cmpi eq, %205, %330 : vector<8x128xi32>
    %332 = vector.extract_strided_slice %42 {offsets = [6, 0], sizes = [1, 128], strides = [1, 1]} : vector<8x128xf32> to vector<1x128xf32>
    %333 = vector.shape_cast %332 : vector<1x128xf32> to vector<1x128xf32>
    %334 = vector.broadcast %333 : vector<1x128xf32> to vector<8x128xf32>
    %335 = arith.select %331, %334, %315 : vector<8x128xi1>, vector<8x128xf32>
    %336 = vector.extract_strided_slice %44 {offsets = [6, 0], sizes = [1, 128], strides = [1, 1]} : vector<8x128xf32> to vector<1x128xf32>
    %337 = vector.shape_cast %336 : vector<1x128xf32> to vector<1x128xf32>
    %338 = vector.broadcast %337 : vector<1x128xf32> to vector<8x128xf32>
    %339 = arith.select %331, %338, %319 : vector<8x128xi1>, vector<8x128xf32>
    %340 = vector.extract_strided_slice %46 {offsets = [6, 0], sizes = [1, 128], strides = [1, 1]} : vector<8x128xf32> to vector<1x128xf32>
    %341 = vector.shape_cast %340 : vector<1x128xf32> to vector<1x128xf32>
    %342 = vector.broadcast %341 : vector<1x128xf32> to vector<8x128xf32>
    %343 = arith.select %331, %342, %323 : vector<8x128xi1>, vector<8x128xf32>
    %344 = vector.extract_strided_slice %48 {offsets = [6, 0], sizes = [1, 128], strides = [1, 1]} : vector<8x128xf32> to vector<1x128xf32>
    %345 = vector.shape_cast %344 : vector<1x128xf32> to vector<1x128xf32>
    %346 = vector.broadcast %345 : vector<1x128xf32> to vector<8x128xf32>
    %347 = arith.select %331, %346, %327 : vector<8x128xi1>, vector<8x128xf32>
    %cst_120 = arith.constant 1.000000e+30 : f32
    %348 = vector.broadcast %cst_120 : f32 to vector<8x128xf32>
    %349 = arith.select %331, %348, %160 : vector<8x128xi1>, vector<8x128xf32>
    %c7_i32_121 = arith.constant 7 : i32
    %350 = vector.broadcast %c7_i32_121 : i32 to vector<8x128xi32>
    %351 = arith.cmpi eq, %205, %350 : vector<8x128xi32>
    %352 = vector.extract_strided_slice %42 {offsets = [7, 0], sizes = [1, 128], strides = [1, 1]} : vector<8x128xf32> to vector<1x128xf32>
    %353 = vector.shape_cast %352 : vector<1x128xf32> to vector<1x128xf32>
    %354 = vector.broadcast %353 : vector<1x128xf32> to vector<8x128xf32>
    %355 = arith.select %351, %354, %335 : vector<8x128xi1>, vector<8x128xf32>
    %356 = vector.extract_strided_slice %44 {offsets = [7, 0], sizes = [1, 128], strides = [1, 1]} : vector<8x128xf32> to vector<1x128xf32>
    %357 = vector.shape_cast %356 : vector<1x128xf32> to vector<1x128xf32>
    %358 = vector.broadcast %357 : vector<1x128xf32> to vector<8x128xf32>
    %359 = arith.select %351, %358, %339 : vector<8x128xi1>, vector<8x128xf32>
    %360 = vector.extract_strided_slice %46 {offsets = [7, 0], sizes = [1, 128], strides = [1, 1]} : vector<8x128xf32> to vector<1x128xf32>
    %361 = vector.shape_cast %360 : vector<1x128xf32> to vector<1x128xf32>
    %362 = vector.broadcast %361 : vector<1x128xf32> to vector<8x128xf32>
    %363 = arith.select %351, %362, %343 : vector<8x128xi1>, vector<8x128xf32>
    %364 = vector.extract_strided_slice %48 {offsets = [7, 0], sizes = [1, 128], strides = [1, 1]} : vector<8x128xf32> to vector<1x128xf32>
    %365 = vector.shape_cast %364 : vector<1x128xf32> to vector<1x128xf32>
    %366 = vector.broadcast %365 : vector<1x128xf32> to vector<8x128xf32>
    %367 = arith.select %351, %366, %347 : vector<8x128xi1>, vector<8x128xf32>
    %cst_122 = arith.constant 1.000000e+30 : f32
    %368 = vector.broadcast %cst_122 : f32 to vector<8x128xf32>
    %369 = arith.select %351, %368, %176 : vector<8x128xi1>, vector<8x128xf32>
    %370 = arith.subf %355, %42 : vector<8x128xf32>
    %371 = arith.subf %359, %44 : vector<8x128xf32>
    %372 = arith.subf %363, %46 : vector<8x128xf32>
    %373 = arith.subf %367, %48 : vector<8x128xf32>
    %374 = arith.cmpf one, %370, %370 : vector<8x128xf32>
    %cst_123 = arith.constant 0.000000e+00 : f32
    %375 = vector.broadcast %cst_123 : f32 to vector<8x128xf32>
    %376 = arith.select %374, %375, %370 : vector<8x128xi1>, vector<8x128xf32>
    %377 = arith.cmpf one, %371, %371 : vector<8x128xf32>
    %cst_124 = arith.constant 0.000000e+00 : f32
    %378 = vector.broadcast %cst_124 : f32 to vector<8x128xf32>
    %379 = arith.select %377, %378, %371 : vector<8x128xi1>, vector<8x128xf32>
    %380 = arith.cmpf one, %372, %372 : vector<8x128xf32>
    %cst_125 = arith.constant 0.000000e+00 : f32
    %381 = vector.broadcast %cst_125 : f32 to vector<8x128xf32>
    %382 = arith.select %380, %381, %372 : vector<8x128xi1>, vector<8x128xf32>
    %383 = arith.cmpf one, %373, %373 : vector<8x128xf32>
    %cst_126 = arith.constant 0.000000e+00 : f32
    %384 = vector.broadcast %cst_126 : f32 to vector<8x128xf32>
    %385 = arith.select %383, %384, %373 : vector<8x128xi1>, vector<8x128xf32>
    %386 = vector.broadcast %0 : f32 to vector<8x128xf32>
    %387 = arith.mulf %376, %386 : vector<8x128xf32>
    %388 = vector.broadcast %8 : f32 to vector<8x128xf32>
    %389 = arith.mulf %379, %388 : vector<8x128xf32>
    %390 = arith.addf %387, %389 : vector<8x128xf32>
    %391 = vector.broadcast %16 : f32 to vector<8x128xf32>
    %392 = arith.mulf %382, %391 : vector<8x128xf32>
    %393 = arith.addf %390, %392 : vector<8x128xf32>
    %394 = vector.broadcast %24 : f32 to vector<8x128xf32>
    %395 = arith.mulf %385, %394 : vector<8x128xf32>
    %396 = arith.addf %393, %395 : vector<8x128xf32>
    %397 = vector.broadcast %32 : f32 to vector<8x128xf32>
    %398 = arith.addf %396, %397 : vector<8x128xf32>
    %cst_127 = arith.constant 0.000000e+00 : f32
    %399 = vector.broadcast %cst_127 : f32 to vector<8x128xf32>
    %400 = arith.maximumf %398, %399 : vector<8x128xf32>
    %c0_128 = arith.constant 0 : index
    %c0_129 = arith.constant 0 : index
    %c0_130 = arith.constant 0 : index
    %c0_131 = arith.constant 0 : index
    %401 = vector.load %arg4[%c0_128, %c0_129, %c0_130, %c0_131] : memref<1x32x8x128xf32, #tpu.memory_space<vmem>>, vector<1x1x8x128xf32>
    %402 = vector.shape_cast %401 : vector<1x1x8x128xf32> to vector<8x128xf32>
    %403 = vector.shape_cast %400 : vector<8x128xf32> to vector<1x1x8x128xf32>
    tpu.vector_store %arg4[%c0_128, %c0_129, %c0_130, %c0_131], %403 {strides = array<i32>} : memref<1x32x8x128xf32, #tpu.memory_space<vmem>>, vector<1x1x8x128xf32>,
    %404 = vector.broadcast %1 : f32 to vector<8x128xf32>
    %405 = arith.mulf %376, %404 : vector<8x128xf32>
    %406 = vector.broadcast %9 : f32 to vector<8x128xf32>
    %407 = arith.mulf %379, %406 : vector<8x128xf32>
    %408 = arith.addf %405, %407 : vector<8x128xf32>
    %409 = vector.broadcast %17 : f32 to vector<8x128xf32>
    %410 = arith.mulf %382, %409 : vector<8x128xf32>
    %411 = arith.addf %408, %410 : vector<8x128xf32>
    %412 = vector.broadcast %25 : f32 to vector<8x128xf32>
    %413 = arith.mulf %385, %412 : vector<8x128xf32>
    %414 = arith.addf %411, %413 : vector<8x128xf32>
    %415 = vector.broadcast %33 : f32 to vector<8x128xf32>
    %416 = arith.addf %414, %415 : vector<8x128xf32>
    %cst_132 = arith.constant 0.000000e+00 : f32
    %417 = vector.broadcast %cst_132 : f32 to vector<8x128xf32>
    %418 = arith.maximumf %416, %417 : vector<8x128xf32>
    %c0_133 = arith.constant 0 : index
    %c1_134 = arith.constant 1 : index
    %c0_135 = arith.constant 0 : index
    %c0_136 = arith.constant 0 : index
    %419 = vector.load %arg4[%c0_133, %c1_134, %c0_135, %c0_136] : memref<1x32x8x128xf32, #tpu.memory_space<vmem>>, vector<1x1x8x128xf32>
    %420 = vector.shape_cast %419 : vector<1x1x8x128xf32> to vector<8x128xf32>
    %421 = vector.shape_cast %418 : vector<8x128xf32> to vector<1x1x8x128xf32>
    tpu.vector_store %arg4[%c0_133, %c1_134, %c0_135, %c0_136], %421 {strides = array<i32>} : memref<1x32x8x128xf32, #tpu.memory_space<vmem>>, vector<1x1x8x128xf32>,
    %422 = vector.broadcast %2 : f32 to vector<8x128xf32>
    %423 = arith.mulf %376, %422 : vector<8x128xf32>
    %424 = vector.broadcast %10 : f32 to vector<8x128xf32>
    %425 = arith.mulf %379, %424 : vector<8x128xf32>
    %426 = arith.addf %423, %425 : vector<8x128xf32>
    %427 = vector.broadcast %18 : f32 to vector<8x128xf32>
    %428 = arith.mulf %382, %427 : vector<8x128xf32>
    %429 = arith.addf %426, %428 : vector<8x128xf32>
    %430 = vector.broadcast %26 : f32 to vector<8x128xf32>
    %431 = arith.mulf %385, %430 : vector<8x128xf32>
    %432 = arith.addf %429, %431 : vector<8x128xf32>
    %433 = vector.broadcast %34 : f32 to vector<8x128xf32>
    %434 = arith.addf %432, %433 : vector<8x128xf32>
    %cst_137 = arith.constant 0.000000e+00 : f32
    %435 = vector.broadcast %cst_137 : f32 to vector<8x128xf32>
    %436 = arith.maximumf %434, %435 : vector<8x128xf32>
    %c0_138 = arith.constant 0 : index
    %c2_139 = arith.constant 2 : index
    %c0_140 = arith.constant 0 : index
    %c0_141 = arith.constant 0 : index
    %437 = vector.load %arg4[%c0_138, %c2_139, %c0_140, %c0_141] : memref<1x32x8x128xf32, #tpu.memory_space<vmem>>, vector<1x1x8x128xf32>
    %438 = vector.shape_cast %437 : vector<1x1x8x128xf32> to vector<8x128xf32>
    %439 = vector.shape_cast %436 : vector<8x128xf32> to vector<1x1x8x128xf32>
    tpu.vector_store %arg4[%c0_138, %c2_139, %c0_140, %c0_141], %439 {strides = array<i32>} : memref<1x32x8x128xf32, #tpu.memory_space<vmem>>, vector<1x1x8x128xf32>,
    %440 = vector.broadcast %3 : f32 to vector<8x128xf32>
    %441 = arith.mulf %376, %440 : vector<8x128xf32>
    %442 = vector.broadcast %11 : f32 to vector<8x128xf32>
    %443 = arith.mulf %379, %442 : vector<8x128xf32>
    %444 = arith.addf %441, %443 : vector<8x128xf32>
    %445 = vector.broadcast %19 : f32 to vector<8x128xf32>
    %446 = arith.mulf %382, %445 : vector<8x128xf32>
    %447 = arith.addf %444, %446 : vector<8x128xf32>
    %448 = vector.broadcast %27 : f32 to vector<8x128xf32>
    %449 = arith.mulf %385, %448 : vector<8x128xf32>
    %450 = arith.addf %447, %449 : vector<8x128xf32>
    %451 = vector.broadcast %35 : f32 to vector<8x128xf32>
    %452 = arith.addf %450, %451 : vector<8x128xf32>
    %cst_142 = arith.constant 0.000000e+00 : f32
    %453 = vector.broadcast %cst_142 : f32 to vector<8x128xf32>
    %454 = arith.maximumf %452, %453 : vector<8x128xf32>
    %c0_143 = arith.constant 0 : index
    %c3_144 = arith.constant 3 : index
    %c0_145 = arith.constant 0 : index
    %c0_146 = arith.constant 0 : index
    %455 = vector.load %arg4[%c0_143, %c3_144, %c0_145, %c0_146] : memref<1x32x8x128xf32, #tpu.memory_space<vmem>>, vector<1x1x8x128xf32>
    %456 = vector.shape_cast %455 : vector<1x1x8x128xf32> to vector<8x128xf32>
    %457 = vector.shape_cast %454 : vector<8x128xf32> to vector<1x1x8x128xf32>
    tpu.vector_store %arg4[%c0_143, %c3_144, %c0_145, %c0_146], %457 {strides = array<i32>} : memref<1x32x8x128xf32, #tpu.memory_space<vmem>>, vector<1x1x8x128xf32>,
    %458 = vector.broadcast %4 : f32 to vector<8x128xf32>
    %459 = arith.mulf %376, %458 : vector<8x128xf32>
    %460 = vector.broadcast %12 : f32 to vector<8x128xf32>
    %461 = arith.mulf %379, %460 : vector<8x128xf32>
    %462 = arith.addf %459, %461 : vector<8x128xf32>
    %463 = vector.broadcast %20 : f32 to vector<8x128xf32>
    %464 = arith.mulf %382, %463 : vector<8x128xf32>
    %465 = arith.addf %462, %464 : vector<8x128xf32>
    %466 = vector.broadcast %28 : f32 to vector<8x128xf32>
    %467 = arith.mulf %385, %466 : vector<8x128xf32>
    %468 = arith.addf %465, %467 : vector<8x128xf32>
    %469 = vector.broadcast %36 : f32 to vector<8x128xf32>
    %470 = arith.addf %468, %469 : vector<8x128xf32>
    %cst_147 = arith.constant 0.000000e+00 : f32
    %471 = vector.broadcast %cst_147 : f32 to vector<8x128xf32>
    %472 = arith.maximumf %470, %471 : vector<8x128xf32>
    %c0_148 = arith.constant 0 : index
    %c4_149 = arith.constant 4 : index
    %c0_150 = arith.constant 0 : index
    %c0_151 = arith.constant 0 : index
    %473 = vector.load %arg4[%c0_148, %c4_149, %c0_150, %c0_151] : memref<1x32x8x128xf32, #tpu.memory_space<vmem>>, vector<1x1x8x128xf32>
    %474 = vector.shape_cast %473 : vector<1x1x8x128xf32> to vector<8x128xf32>
    %475 = vector.shape_cast %472 : vector<8x128xf32> to vector<1x1x8x128xf32>
    tpu.vector_store %arg4[%c0_148, %c4_149, %c0_150, %c0_151], %475 {strides = array<i32>} : memref<1x32x8x128xf32, #tpu.memory_space<vmem>>, vector<1x1x8x128xf32>,
    %476 = vector.broadcast %5 : f32 to vector<8x128xf32>
    %477 = arith.mulf %376, %476 : vector<8x128xf32>
    %478 = vector.broadcast %13 : f32 to vector<8x128xf32>
    %479 = arith.mulf %379, %478 : vector<8x128xf32>
    %480 = arith.addf %477, %479 : vector<8x128xf32>
    %481 = vector.broadcast %21 : f32 to vector<8x128xf32>
    %482 = arith.mulf %382, %481 : vector<8x128xf32>
    %483 = arith.addf %480, %482 : vector<8x128xf32>
    %484 = vector.broadcast %29 : f32 to vector<8x128xf32>
    %485 = arith.mulf %385, %484 : vector<8x128xf32>
    %486 = arith.addf %483, %485 : vector<8x128xf32>
    %487 = vector.broadcast %37 : f32 to vector<8x128xf32>
    %488 = arith.addf %486, %487 : vector<8x128xf32>
    %cst_152 = arith.constant 0.000000e+00 : f32
    %489 = vector.broadcast %cst_152 : f32 to vector<8x128xf32>
    %490 = arith.maximumf %488, %489 : vector<8x128xf32>
    %c0_153 = arith.constant 0 : index
    %c5_154 = arith.constant 5 : index
    %c0_155 = arith.constant 0 : index
    %c0_156 = arith.constant 0 : index
    %491 = vector.load %arg4[%c0_153, %c5_154, %c0_155, %c0_156] : memref<1x32x8x128xf32, #tpu.memory_space<vmem>>, vector<1x1x8x128xf32>
    %492 = vector.shape_cast %491 : vector<1x1x8x128xf32> to vector<8x128xf32>
    %493 = vector.shape_cast %490 : vector<8x128xf32> to vector<1x1x8x128xf32>
    tpu.vector_store %arg4[%c0_153, %c5_154, %c0_155, %c0_156], %493 {strides = array<i32>} : memref<1x32x8x128xf32, #tpu.memory_space<vmem>>, vector<1x1x8x128xf32>,
    %494 = vector.broadcast %6 : f32 to vector<8x128xf32>
    %495 = arith.mulf %376, %494 : vector<8x128xf32>
    %496 = vector.broadcast %14 : f32 to vector<8x128xf32>
    %497 = arith.mulf %379, %496 : vector<8x128xf32>
    %498 = arith.addf %495, %497 : vector<8x128xf32>
    %499 = vector.broadcast %22 : f32 to vector<8x128xf32>
    %500 = arith.mulf %382, %499 : vector<8x128xf32>
    %501 = arith.addf %498, %500 : vector<8x128xf32>
    %502 = vector.broadcast %30 : f32 to vector<8x128xf32>
    %503 = arith.mulf %385, %502 : vector<8x128xf32>
    %504 = arith.addf %501, %503 : vector<8x128xf32>
    %505 = vector.broadcast %38 : f32 to vector<8x128xf32>
    %506 = arith.addf %504, %505 : vector<8x128xf32>
    %cst_157 = arith.constant 0.000000e+00 : f32
    %507 = vector.broadcast %cst_157 : f32 to vector<8x128xf32>
    %508 = arith.maximumf %506, %507 : vector<8x128xf32>
    %c0_158 = arith.constant 0 : index
    %c6_159 = arith.constant 6 : index
    %c0_160 = arith.constant 0 : index
    %c0_161 = arith.constant 0 : index
    %509 = vector.load %arg4[%c0_158, %c6_159, %c0_160, %c0_161] : memref<1x32x8x128xf32, #tpu.memory_space<vmem>>, vector<1x1x8x128xf32>
    %510 = vector.shape_cast %509 : vector<1x1x8x128xf32> to vector<8x128xf32>
    %511 = vector.shape_cast %508 : vector<8x128xf32> to vector<1x1x8x128xf32>
    tpu.vector_store %arg4[%c0_158, %c6_159, %c0_160, %c0_161], %511 {strides = array<i32>} : memref<1x32x8x128xf32, #tpu.memory_space<vmem>>, vector<1x1x8x128xf32>,
    %512 = vector.broadcast %7 : f32 to vector<8x128xf32>
    %513 = arith.mulf %376, %512 : vector<8x128xf32>
    %514 = vector.broadcast %15 : f32 to vector<8x128xf32>
    %515 = arith.mulf %379, %514 : vector<8x128xf32>
    %516 = arith.addf %513, %515 : vector<8x128xf32>
    %517 = vector.broadcast %23 : f32 to vector<8x128xf32>
    %518 = arith.mulf %382, %517 : vector<8x128xf32>
    %519 = arith.addf %516, %518 : vector<8x128xf32>
    %520 = vector.broadcast %31 : f32 to vector<8x128xf32>
    %521 = arith.mulf %385, %520 : vector<8x128xf32>
    %522 = arith.addf %519, %521 : vector<8x128xf32>
    %523 = vector.broadcast %39 : f32 to vector<8x128xf32>
    %524 = arith.addf %522, %523 : vector<8x128xf32>
    %cst_162 = arith.constant 0.000000e+00 : f32
    %525 = vector.broadcast %cst_162 : f32 to vector<8x128xf32>
    %526 = arith.maximumf %524, %525 : vector<8x128xf32>
    %c0_163 = arith.constant 0 : index
    %c7_164 = arith.constant 7 : index
    %c0_165 = arith.constant 0 : index
    %c0_166 = arith.constant 0 : index
    %527 = vector.load %arg4[%c0_163, %c7_164, %c0_165, %c0_166] : memref<1x32x8x128xf32, #tpu.memory_space<vmem>>, vector<1x1x8x128xf32>
    %528 = vector.shape_cast %527 : vector<1x1x8x128xf32> to vector<8x128xf32>
    %529 = vector.shape_cast %526 : vector<8x128xf32> to vector<1x1x8x128xf32>
    tpu.vector_store %arg4[%c0_163, %c7_164, %c0_165, %c0_166], %529 {strides = array<i32>} : memref<1x32x8x128xf32, #tpu.memory_space<vmem>>, vector<1x1x8x128xf32>,
    %530 = arith.minimumf %229, %249 : vector<8x128xf32>
    %531 = arith.minimumf %530, %269 : vector<8x128xf32>
    %532 = arith.minimumf %531, %289 : vector<8x128xf32>
    %533 = arith.minimumf %532, %309 : vector<8x128xf32>
    %534 = arith.minimumf %533, %329 : vector<8x128xf32>
    %535 = arith.minimumf %534, %349 : vector<8x128xf32>
    %536 = arith.minimumf %535, %369 : vector<8x128xf32>
    %c7_i32_167 = arith.constant 7 : i32
    %537 = vector.broadcast %c7_i32_167 : i32 to vector<8x128xi32>
    %538 = arith.cmpf oeq, %349, %536 : vector<8x128xf32>
    %c6_i32_168 = arith.constant 6 : i32
    %539 = vector.broadcast %c6_i32_168 : i32 to vector<8x128xi32>
    %540 = arith.select %538, %539, %537 : vector<8x128xi1>, vector<8x128xi32>
    %541 = arith.cmpf oeq, %329, %536 : vector<8x128xf32>
    %c5_i32_169 = arith.constant 5 : i32
    %542 = vector.broadcast %c5_i32_169 : i32 to vector<8x128xi32>
    %543 = arith.select %541, %542, %540 : vector<8x128xi1>, vector<8x128xi32>
    %544 = arith.cmpf oeq, %309, %536 : vector<8x128xf32>
    %c4_i32_170 = arith.constant 4 : i32
    %545 = vector.broadcast %c4_i32_170 : i32 to vector<8x128xi32>
    %546 = arith.select %544, %545, %543 : vector<8x128xi1>, vector<8x128xi32>
    %547 = arith.cmpf oeq, %289, %536 : vector<8x128xf32>
    %c3_i32_171 = arith.constant 3 : i32
    %548 = vector.broadcast %c3_i32_171 : i32 to vector<8x128xi32>
    %549 = arith.select %547, %548, %546 : vector<8x128xi1>, vector<8x128xi32>
    %550 = arith.cmpf oeq, %269, %536 : vector<8x128xf32>
    %c2_i32_172 = arith.constant 2 : i32
    %551 = vector.broadcast %c2_i32_172 : i32 to vector<8x128xi32>
    %552 = arith.select %550, %551, %549 : vector<8x128xi1>, vector<8x128xi32>
    %553 = arith.cmpf oeq, %249, %536 : vector<8x128xf32>
    %c1_i32_173 = arith.constant 1 : i32
    %554 = vector.broadcast %c1_i32_173 : i32 to vector<8x128xi32>
    %555 = arith.select %553, %554, %552 : vector<8x128xi1>, vector<8x128xi32>
    %556 = arith.cmpf oeq, %229, %536 : vector<8x128xf32>
    %c0_i32_174 = arith.constant 0 : i32
    %557 = vector.broadcast %c0_i32_174 : i32 to vector<8x128xi32>
    %558 = arith.select %556, %557, %555 : vector<8x128xi1>, vector<8x128xi32>
    %cst_175 = arith.constant 0.000000e+00 : f32
    %559 = vector.broadcast %cst_175 : f32 to vector<8x128xf32>
    %cst_176 = arith.constant 0.000000e+00 : f32
    %560 = vector.broadcast %cst_176 : f32 to vector<8x128xf32>
    %cst_177 = arith.constant 0.000000e+00 : f32
    %561 = vector.broadcast %cst_177 : f32 to vector<8x128xf32>
    %cst_178 = arith.constant 0.000000e+00 : f32
    %562 = vector.broadcast %cst_178 : f32 to vector<8x128xf32>
    %c0_i32_179 = arith.constant 0 : i32
    %563 = vector.broadcast %c0_i32_179 : i32 to vector<8x128xi32>
    %564 = arith.cmpi eq, %558, %563 : vector<8x128xi32>
    %565 = vector.extract_strided_slice %42 {offsets = [0, 0], sizes = [1, 128], strides = [1, 1]} : vector<8x128xf32> to vector<1x128xf32>
    %566 = vector.shape_cast %565 : vector<1x128xf32> to vector<1x128xf32>
    %567 = vector.broadcast %566 : vector<1x128xf32> to vector<8x128xf32>
    %568 = arith.select %564, %567, %559 : vector<8x128xi1>, vector<8x128xf32>
    %569 = vector.extract_strided_slice %44 {offsets = [0, 0], sizes = [1, 128], strides = [1, 1]} : vector<8x128xf32> to vector<1x128xf32>
    %570 = vector.shape_cast %569 : vector<1x128xf32> to vector<1x128xf32>
    %571 = vector.broadcast %570 : vector<1x128xf32> to vector<8x128xf32>
    %572 = arith.select %564, %571, %560 : vector<8x128xi1>, vector<8x128xf32>
    %573 = vector.extract_strided_slice %46 {offsets = [0, 0], sizes = [1, 128], strides = [1, 1]} : vector<8x128xf32> to vector<1x128xf32>
    %574 = vector.shape_cast %573 : vector<1x128xf32> to vector<1x128xf32>
    %575 = vector.broadcast %574 : vector<1x128xf32> to vector<8x128xf32>
    %576 = arith.select %564, %575, %561 : vector<8x128xi1>, vector<8x128xf32>
    %577 = vector.extract_strided_slice %48 {offsets = [0, 0], sizes = [1, 128], strides = [1, 1]} : vector<8x128xf32> to vector<1x128xf32>
    %578 = vector.shape_cast %577 : vector<1x128xf32> to vector<1x128xf32>
    %579 = vector.broadcast %578 : vector<1x128xf32> to vector<8x128xf32>
    %580 = arith.select %564, %579, %562 : vector<8x128xi1>, vector<8x128xf32>
    %cst_180 = arith.constant 1.000000e+30 : f32
    %581 = vector.broadcast %cst_180 : f32 to vector<8x128xf32>
    %582 = arith.select %564, %581, %229 : vector<8x128xi1>, vector<8x128xf32>
    %c1_i32_181 = arith.constant 1 : i32
    %583 = vector.broadcast %c1_i32_181 : i32 to vector<8x128xi32>
    %584 = arith.cmpi eq, %558, %583 : vector<8x128xi32>
    %585 = vector.extract_strided_slice %42 {offsets = [1, 0], sizes = [1, 128], strides = [1, 1]} : vector<8x128xf32> to vector<1x128xf32>
    %586 = vector.shape_cast %585 : vector<1x128xf32> to vector<1x128xf32>
    %587 = vector.broadcast %586 : vector<1x128xf32> to vector<8x128xf32>
    %588 = arith.select %584, %587, %568 : vector<8x128xi1>, vector<8x128xf32>
    %589 = vector.extract_strided_slice %44 {offsets = [1, 0], sizes = [1, 128], strides = [1, 1]} : vector<8x128xf32> to vector<1x128xf32>
    %590 = vector.shape_cast %589 : vector<1x128xf32> to vector<1x128xf32>
    %591 = vector.broadcast %590 : vector<1x128xf32> to vector<8x128xf32>
    %592 = arith.select %584, %591, %572 : vector<8x128xi1>, vector<8x128xf32>
    %593 = vector.extract_strided_slice %46 {offsets = [1, 0], sizes = [1, 128], strides = [1, 1]} : vector<8x128xf32> to vector<1x128xf32>
    %594 = vector.shape_cast %593 : vector<1x128xf32> to vector<1x128xf32>
    %595 = vector.broadcast %594 : vector<1x128xf32> to vector<8x128xf32>
    %596 = arith.select %584, %595, %576 : vector<8x128xi1>, vector<8x128xf32>
    %597 = vector.extract_strided_slice %48 {offsets = [1, 0], sizes = [1, 128], strides = [1, 1]} : vector<8x128xf32> to vector<1x128xf32>
    %598 = vector.shape_cast %597 : vector<1x128xf32> to vector<1x128xf32>
    %599 = vector.broadcast %598 : vector<1x128xf32> to vector<8x128xf32>
    %600 = arith.select %584, %599, %580 : vector<8x128xi1>, vector<8x128xf32>
    %cst_182 = arith.constant 1.000000e+30 : f32
    %601 = vector.broadcast %cst_182 : f32 to vector<8x128xf32>
    %602 = arith.select %584, %601, %249 : vector<8x128xi1>, vector<8x128xf32>
    %c2_i32_183 = arith.constant 2 : i32
    %603 = vector.broadcast %c2_i32_183 : i32 to vector<8x128xi32>
    %604 = arith.cmpi eq, %558, %603 : vector<8x128xi32>
    %605 = vector.extract_strided_slice %42 {offsets = [2, 0], sizes = [1, 128], strides = [1, 1]} : vector<8x128xf32> to vector<1x128xf32>
    %606 = vector.shape_cast %605 : vector<1x128xf32> to vector<1x128xf32>
    %607 = vector.broadcast %606 : vector<1x128xf32> to vector<8x128xf32>
    %608 = arith.select %604, %607, %588 : vector<8x128xi1>, vector<8x128xf32>
    %609 = vector.extract_strided_slice %44 {offsets = [2, 0], sizes = [1, 128], strides = [1, 1]} : vector<8x128xf32> to vector<1x128xf32>
    %610 = vector.shape_cast %609 : vector<1x128xf32> to vector<1x128xf32>
    %611 = vector.broadcast %610 : vector<1x128xf32> to vector<8x128xf32>
    %612 = arith.select %604, %611, %592 : vector<8x128xi1>, vector<8x128xf32>
    %613 = vector.extract_strided_slice %46 {offsets = [2, 0], sizes = [1, 128], strides = [1, 1]} : vector<8x128xf32> to vector<1x128xf32>
    %614 = vector.shape_cast %613 : vector<1x128xf32> to vector<1x128xf32>
    %615 = vector.broadcast %614 : vector<1x128xf32> to vector<8x128xf32>
    %616 = arith.select %604, %615, %596 : vector<8x128xi1>, vector<8x128xf32>
    %617 = vector.extract_strided_slice %48 {offsets = [2, 0], sizes = [1, 128], strides = [1, 1]} : vector<8x128xf32> to vector<1x128xf32>
    %618 = vector.shape_cast %617 : vector<1x128xf32> to vector<1x128xf32>
    %619 = vector.broadcast %618 : vector<1x128xf32> to vector<8x128xf32>
    %620 = arith.select %604, %619, %600 : vector<8x128xi1>, vector<8x128xf32>
    %cst_184 = arith.constant 1.000000e+30 : f32
    %621 = vector.broadcast %cst_184 : f32 to vector<8x128xf32>
    %622 = arith.select %604, %621, %269 : vector<8x128xi1>, vector<8x128xf32>
    %c3_i32_185 = arith.constant 3 : i32
    %623 = vector.broadcast %c3_i32_185 : i32 to vector<8x128xi32>
    %624 = arith.cmpi eq, %558, %623 : vector<8x128xi32>
    %625 = vector.extract_strided_slice %42 {offsets = [3, 0], sizes = [1, 128], strides = [1, 1]} : vector<8x128xf32> to vector<1x128xf32>
    %626 = vector.shape_cast %625 : vector<1x128xf32> to vector<1x128xf32>
    %627 = vector.broadcast %626 : vector<1x128xf32> to vector<8x128xf32>
    %628 = arith.select %624, %627, %608 : vector<8x128xi1>, vector<8x128xf32>
    %629 = vector.extract_strided_slice %44 {offsets = [3, 0], sizes = [1, 128], strides = [1, 1]} : vector<8x128xf32> to vector<1x128xf32>
    %630 = vector.shape_cast %629 : vector<1x128xf32> to vector<1x128xf32>
    %631 = vector.broadcast %630 : vector<1x128xf32> to vector<8x128xf32>
    %632 = arith.select %624, %631, %612 : vector<8x128xi1>, vector<8x128xf32>
    %633 = vector.extract_strided_slice %46 {offsets = [3, 0], sizes = [1, 128], strides = [1, 1]} : vector<8x128xf32> to vector<1x128xf32>
    %634 = vector.shape_cast %633 : vector<1x128xf32> to vector<1x128xf32>
    %635 = vector.broadcast %634 : vector<1x128xf32> to vector<8x128xf32>
    %636 = arith.select %624, %635, %616 : vector<8x128xi1>, vector<8x128xf32>
    %637 = vector.extract_strided_slice %48 {offsets = [3, 0], sizes = [1, 128], strides = [1, 1]} : vector<8x128xf32> to vector<1x128xf32>
    %638 = vector.shape_cast %637 : vector<1x128xf32> to vector<1x128xf32>
    %639 = vector.broadcast %638 : vector<1x128xf32> to vector<8x128xf32>
    %640 = arith.select %624, %639, %620 : vector<8x128xi1>, vector<8x128xf32>
    %cst_186 = arith.constant 1.000000e+30 : f32
    %641 = vector.broadcast %cst_186 : f32 to vector<8x128xf32>
    %642 = arith.select %624, %641, %289 : vector<8x128xi1>, vector<8x128xf32>
    %c4_i32_187 = arith.constant 4 : i32
    %643 = vector.broadcast %c4_i32_187 : i32 to vector<8x128xi32>
    %644 = arith.cmpi eq, %558, %643 : vector<8x128xi32>
    %645 = vector.extract_strided_slice %42 {offsets = [4, 0], sizes = [1, 128], strides = [1, 1]} : vector<8x128xf32> to vector<1x128xf32>
    %646 = vector.shape_cast %645 : vector<1x128xf32> to vector<1x128xf32>
    %647 = vector.broadcast %646 : vector<1x128xf32> to vector<8x128xf32>
    %648 = arith.select %644, %647, %628 : vector<8x128xi1>, vector<8x128xf32>
    %649 = vector.extract_strided_slice %44 {offsets = [4, 0], sizes = [1, 128], strides = [1, 1]} : vector<8x128xf32> to vector<1x128xf32>
    %650 = vector.shape_cast %649 : vector<1x128xf32> to vector<1x128xf32>
    %651 = vector.broadcast %650 : vector<1x128xf32> to vector<8x128xf32>
    %652 = arith.select %644, %651, %632 : vector<8x128xi1>, vector<8x128xf32>
    %653 = vector.extract_strided_slice %46 {offsets = [4, 0], sizes = [1, 128], strides = [1, 1]} : vector<8x128xf32> to vector<1x128xf32>
    %654 = vector.shape_cast %653 : vector<1x128xf32> to vector<1x128xf32>
    %655 = vector.broadcast %654 : vector<1x128xf32> to vector<8x128xf32>
    %656 = arith.select %644, %655, %636 : vector<8x128xi1>, vector<8x128xf32>
    %657 = vector.extract_strided_slice %48 {offsets = [4, 0], sizes = [1, 128], strides = [1, 1]} : vector<8x128xf32> to vector<1x128xf32>
    %658 = vector.shape_cast %657 : vector<1x128xf32> to vector<1x128xf32>
    %659 = vector.broadcast %658 : vector<1x128xf32> to vector<8x128xf32>
    %660 = arith.select %644, %659, %640 : vector<8x128xi1>, vector<8x128xf32>
    %cst_188 = arith.constant 1.000000e+30 : f32
    %661 = vector.broadcast %cst_188 : f32 to vector<8x128xf32>
    %662 = arith.select %644, %661, %309 : vector<8x128xi1>, vector<8x128xf32>
    %c5_i32_189 = arith.constant 5 : i32
    %663 = vector.broadcast %c5_i32_189 : i32 to vector<8x128xi32>
    %664 = arith.cmpi eq, %558, %663 : vector<8x128xi32>
    %665 = vector.extract_strided_slice %42 {offsets = [5, 0], sizes = [1, 128], strides = [1, 1]} : vector<8x128xf32> to vector<1x128xf32>
    %666 = vector.shape_cast %665 : vector<1x128xf32> to vector<1x128xf32>
    %667 = vector.broadcast %666 : vector<1x128xf32> to vector<8x128xf32>
    %668 = arith.select %664, %667, %648 : vector<8x128xi1>, vector<8x128xf32>
    %669 = vector.extract_strided_slice %44 {offsets = [5, 0], sizes = [1, 128], strides = [1, 1]} : vector<8x128xf32> to vector<1x128xf32>
    %670 = vector.shape_cast %669 : vector<1x128xf32> to vector<1x128xf32>
    %671 = vector.broadcast %670 : vector<1x128xf32> to vector<8x128xf32>
    %672 = arith.select %664, %671, %652 : vector<8x128xi1>, vector<8x128xf32>
    %673 = vector.extract_strided_slice %46 {offsets = [5, 0], sizes = [1, 128], strides = [1, 1]} : vector<8x128xf32> to vector<1x128xf32>
    %674 = vector.shape_cast %673 : vector<1x128xf32> to vector<1x128xf32>
    %675 = vector.broadcast %674 : vector<1x128xf32> to vector<8x128xf32>
    %676 = arith.select %664, %675, %656 : vector<8x128xi1>, vector<8x128xf32>
    %677 = vector.extract_strided_slice %48 {offsets = [5, 0], sizes = [1, 128], strides = [1, 1]} : vector<8x128xf32> to vector<1x128xf32>
    %678 = vector.shape_cast %677 : vector<1x128xf32> to vector<1x128xf32>
    %679 = vector.broadcast %678 : vector<1x128xf32> to vector<8x128xf32>
    %680 = arith.select %664, %679, %660 : vector<8x128xi1>, vector<8x128xf32>
    %cst_190 = arith.constant 1.000000e+30 : f32
    %681 = vector.broadcast %cst_190 : f32 to vector<8x128xf32>
    %682 = arith.select %664, %681, %329 : vector<8x128xi1>, vector<8x128xf32>
    %c6_i32_191 = arith.constant 6 : i32
    %683 = vector.broadcast %c6_i32_191 : i32 to vector<8x128xi32>
    %684 = arith.cmpi eq, %558, %683 : vector<8x128xi32>
    %685 = vector.extract_strided_slice %42 {offsets = [6, 0], sizes = [1, 128], strides = [1, 1]} : vector<8x128xf32> to vector<1x128xf32>
    %686 = vector.shape_cast %685 : vector<1x128xf32> to vector<1x128xf32>
    %687 = vector.broadcast %686 : vector<1x128xf32> to vector<8x128xf32>
    %688 = arith.select %684, %687, %668 : vector<8x128xi1>, vector<8x128xf32>
    %689 = vector.extract_strided_slice %44 {offsets = [6, 0], sizes = [1, 128], strides = [1, 1]} : vector<8x128xf32> to vector<1x128xf32>
    %690 = vector.shape_cast %689 : vector<1x128xf32> to vector<1x128xf32>
    %691 = vector.broadcast %690 : vector<1x128xf32> to vector<8x128xf32>
    %692 = arith.select %684, %691, %672 : vector<8x128xi1>, vector<8x128xf32>
    %693 = vector.extract_strided_slice %46 {offsets = [6, 0], sizes = [1, 128], strides = [1, 1]} : vector<8x128xf32> to vector<1x128xf32>
    %694 = vector.shape_cast %693 : vector<1x128xf32> to vector<1x128xf32>
    %695 = vector.broadcast %694 : vector<1x128xf32> to vector<8x128xf32>
    %696 = arith.select %684, %695, %676 : vector<8x128xi1>, vector<8x128xf32>
    %697 = vector.extract_strided_slice %48 {offsets = [6, 0], sizes = [1, 128], strides = [1, 1]} : vector<8x128xf32> to vector<1x128xf32>
    %698 = vector.shape_cast %697 : vector<1x128xf32> to vector<1x128xf32>
    %699 = vector.broadcast %698 : vector<1x128xf32> to vector<8x128xf32>
    %700 = arith.select %684, %699, %680 : vector<8x128xi1>, vector<8x128xf32>
    %cst_192 = arith.constant 1.000000e+30 : f32
    %701 = vector.broadcast %cst_192 : f32 to vector<8x128xf32>
    %702 = arith.select %684, %701, %349 : vector<8x128xi1>, vector<8x128xf32>
    %c7_i32_193 = arith.constant 7 : i32
    %703 = vector.broadcast %c7_i32_193 : i32 to vector<8x128xi32>
    %704 = arith.cmpi eq, %558, %703 : vector<8x128xi32>
    %705 = vector.extract_strided_slice %42 {offsets = [7, 0], sizes = [1, 128], strides = [1, 1]} : vector<8x128xf32> to vector<1x128xf32>
    %706 = vector.shape_cast %705 : vector<1x128xf32> to vector<1x128xf32>
    %707 = vector.broadcast %706 : vector<1x128xf32> to vector<8x128xf32>
    %708 = arith.select %704, %707, %688 : vector<8x128xi1>, vector<8x128xf32>
    %709 = vector.extract_strided_slice %44 {offsets = [7, 0], sizes = [1, 128], strides = [1, 1]} : vector<8x128xf32> to vector<1x128xf32>
    %710 = vector.shape_cast %709 : vector<1x128xf32> to vector<1x128xf32>
    %711 = vector.broadcast %710 : vector<1x128xf32> to vector<8x128xf32>
    %712 = arith.select %704, %711, %692 : vector<8x128xi1>, vector<8x128xf32>
    %713 = vector.extract_strided_slice %46 {offsets = [7, 0], sizes = [1, 128], strides = [1, 1]} : vector<8x128xf32> to vector<1x128xf32>
    %714 = vector.shape_cast %713 : vector<1x128xf32> to vector<1x128xf32>
    %715 = vector.broadcast %714 : vector<1x128xf32> to vector<8x128xf32>
    %716 = arith.select %704, %715, %696 : vector<8x128xi1>, vector<8x128xf32>
    %717 = vector.extract_strided_slice %48 {offsets = [7, 0], sizes = [1, 128], strides = [1, 1]} : vector<8x128xf32> to vector<1x128xf32>
    %718 = vector.shape_cast %717 : vector<1x128xf32> to vector<1x128xf32>
    %719 = vector.broadcast %718 : vector<1x128xf32> to vector<8x128xf32>
    %720 = arith.select %704, %719, %700 : vector<8x128xi1>, vector<8x128xf32>
    %cst_194 = arith.constant 1.000000e+30 : f32
    %721 = vector.broadcast %cst_194 : f32 to vector<8x128xf32>
    %722 = arith.select %704, %721, %369 : vector<8x128xi1>, vector<8x128xf32>
    %723 = arith.subf %708, %42 : vector<8x128xf32>
    %724 = arith.subf %712, %44 : vector<8x128xf32>
    %725 = arith.subf %716, %46 : vector<8x128xf32>
    %726 = arith.subf %720, %48 : vector<8x128xf32>
    %727 = arith.cmpf one, %723, %723 : vector<8x128xf32>
    %cst_195 = arith.constant 0.000000e+00 : f32
    %728 = vector.broadcast %cst_195 : f32 to vector<8x128xf32>
    %729 = arith.select %727, %728, %723 : vector<8x128xi1>, vector<8x128xf32>
    %730 = arith.cmpf one, %724, %724 : vector<8x128xf32>
    %cst_196 = arith.constant 0.000000e+00 : f32
    %731 = vector.broadcast %cst_196 : f32 to vector<8x128xf32>
    %732 = arith.select %730, %731, %724 : vector<8x128xi1>, vector<8x128xf32>
    %733 = arith.cmpf one, %725, %725 : vector<8x128xf32>
    %cst_197 = arith.constant 0.000000e+00 : f32
    %734 = vector.broadcast %cst_197 : f32 to vector<8x128xf32>
    %735 = arith.select %733, %734, %725 : vector<8x128xi1>, vector<8x128xf32>
    %736 = arith.cmpf one, %726, %726 : vector<8x128xf32>
    %cst_198 = arith.constant 0.000000e+00 : f32
    %737 = vector.broadcast %cst_198 : f32 to vector<8x128xf32>
    %738 = arith.select %736, %737, %726 : vector<8x128xi1>, vector<8x128xf32>
    %739 = vector.broadcast %0 : f32 to vector<8x128xf32>
    %740 = arith.mulf %729, %739 : vector<8x128xf32>
    %741 = vector.broadcast %8 : f32 to vector<8x128xf32>
    %742 = arith.mulf %732, %741 : vector<8x128xf32>
    %743 = arith.addf %740, %742 : vector<8x128xf32>
    %744 = vector.broadcast %16 : f32 to vector<8x128xf32>
    %745 = arith.mulf %735, %744 : vector<8x128xf32>
    %746 = arith.addf %743, %745 : vector<8x128xf32>
    %747 = vector.broadcast %24 : f32 to vector<8x128xf32>
    %748 = arith.mulf %738, %747 : vector<8x128xf32>
    %749 = arith.addf %746, %748 : vector<8x128xf32>
    %750 = vector.broadcast %32 : f32 to vector<8x128xf32>
    %751 = arith.addf %749, %750 : vector<8x128xf32>
    %cst_199 = arith.constant 0.000000e+00 : f32
    %752 = vector.broadcast %cst_199 : f32 to vector<8x128xf32>
    %753 = arith.maximumf %751, %752 : vector<8x128xf32>
    %c0_200 = arith.constant 0 : index
    %c8 = arith.constant 8 : index
    %c0_201 = arith.constant 0 : index
    %c0_202 = arith.constant 0 : index
    %754 = vector.load %arg4[%c0_200, %c8, %c0_201, %c0_202] : memref<1x32x8x128xf32, #tpu.memory_space<vmem>>, vector<1x1x8x128xf32>
    %755 = vector.shape_cast %754 : vector<1x1x8x128xf32> to vector<8x128xf32>
    %756 = vector.shape_cast %753 : vector<8x128xf32> to vector<1x1x8x128xf32>
    tpu.vector_store %arg4[%c0_200, %c8, %c0_201, %c0_202], %756 {strides = array<i32>} : memref<1x32x8x128xf32, #tpu.memory_space<vmem>>, vector<1x1x8x128xf32>,
    %757 = vector.broadcast %1 : f32 to vector<8x128xf32>
    %758 = arith.mulf %729, %757 : vector<8x128xf32>
    %759 = vector.broadcast %9 : f32 to vector<8x128xf32>
    %760 = arith.mulf %732, %759 : vector<8x128xf32>
    %761 = arith.addf %758, %760 : vector<8x128xf32>
    %762 = vector.broadcast %17 : f32 to vector<8x128xf32>
    %763 = arith.mulf %735, %762 : vector<8x128xf32>
    %764 = arith.addf %761, %763 : vector<8x128xf32>
    %765 = vector.broadcast %25 : f32 to vector<8x128xf32>
    %766 = arith.mulf %738, %765 : vector<8x128xf32>
    %767 = arith.addf %764, %766 : vector<8x128xf32>
    %768 = vector.broadcast %33 : f32 to vector<8x128xf32>
    %769 = arith.addf %767, %768 : vector<8x128xf32>
    %cst_203 = arith.constant 0.000000e+00 : f32
    %770 = vector.broadcast %cst_203 : f32 to vector<8x128xf32>
    %771 = arith.maximumf %769, %770 : vector<8x128xf32>
    %c0_204 = arith.constant 0 : index
    %c9 = arith.constant 9 : index
    %c0_205 = arith.constant 0 : index
    %c0_206 = arith.constant 0 : index
    %772 = vector.load %arg4[%c0_204, %c9, %c0_205, %c0_206] : memref<1x32x8x128xf32, #tpu.memory_space<vmem>>, vector<1x1x8x128xf32>
    %773 = vector.shape_cast %772 : vector<1x1x8x128xf32> to vector<8x128xf32>
    %774 = vector.shape_cast %771 : vector<8x128xf32> to vector<1x1x8x128xf32>
    tpu.vector_store %arg4[%c0_204, %c9, %c0_205, %c0_206], %774 {strides = array<i32>} : memref<1x32x8x128xf32, #tpu.memory_space<vmem>>, vector<1x1x8x128xf32>,
    %775 = vector.broadcast %2 : f32 to vector<8x128xf32>
    %776 = arith.mulf %729, %775 : vector<8x128xf32>
    %777 = vector.broadcast %10 : f32 to vector<8x128xf32>
    %778 = arith.mulf %732, %777 : vector<8x128xf32>
    %779 = arith.addf %776, %778 : vector<8x128xf32>
    %780 = vector.broadcast %18 : f32 to vector<8x128xf32>
    %781 = arith.mulf %735, %780 : vector<8x128xf32>
    %782 = arith.addf %779, %781 : vector<8x128xf32>
    %783 = vector.broadcast %26 : f32 to vector<8x128xf32>
    %784 = arith.mulf %738, %783 : vector<8x128xf32>
    %785 = arith.addf %782, %784 : vector<8x128xf32>
    %786 = vector.broadcast %34 : f32 to vector<8x128xf32>
    %787 = arith.addf %785, %786 : vector<8x128xf32>
    %cst_207 = arith.constant 0.000000e+00 : f32
    %788 = vector.broadcast %cst_207 : f32 to vector<8x128xf32>
    %789 = arith.maximumf %787, %788 : vector<8x128xf32>
    %c0_208 = arith.constant 0 : index
    %c10 = arith.constant 10 : index
    %c0_209 = arith.constant 0 : index
    %c0_210 = arith.constant 0 : index
    %790 = vector.load %arg4[%c0_208, %c10, %c0_209, %c0_210] : memref<1x32x8x128xf32, #tpu.memory_space<vmem>>, vector<1x1x8x128xf32>
    %791 = vector.shape_cast %790 : vector<1x1x8x128xf32> to vector<8x128xf32>
    %792 = vector.shape_cast %789 : vector<8x128xf32> to vector<1x1x8x128xf32>
    tpu.vector_store %arg4[%c0_208, %c10, %c0_209, %c0_210], %792 {strides = array<i32>} : memref<1x32x8x128xf32, #tpu.memory_space<vmem>>, vector<1x1x8x128xf32>,
    %793 = vector.broadcast %3 : f32 to vector<8x128xf32>
    %794 = arith.mulf %729, %793 : vector<8x128xf32>
    %795 = vector.broadcast %11 : f32 to vector<8x128xf32>
    %796 = arith.mulf %732, %795 : vector<8x128xf32>
    %797 = arith.addf %794, %796 : vector<8x128xf32>
    %798 = vector.broadcast %19 : f32 to vector<8x128xf32>
    %799 = arith.mulf %735, %798 : vector<8x128xf32>
    %800 = arith.addf %797, %799 : vector<8x128xf32>
    %801 = vector.broadcast %27 : f32 to vector<8x128xf32>
    %802 = arith.mulf %738, %801 : vector<8x128xf32>
    %803 = arith.addf %800, %802 : vector<8x128xf32>
    %804 = vector.broadcast %35 : f32 to vector<8x128xf32>
    %805 = arith.addf %803, %804 : vector<8x128xf32>
    %cst_211 = arith.constant 0.000000e+00 : f32
    %806 = vector.broadcast %cst_211 : f32 to vector<8x128xf32>
    %807 = arith.maximumf %805, %806 : vector<8x128xf32>
    %c0_212 = arith.constant 0 : index
    %c11 = arith.constant 11 : index
    %c0_213 = arith.constant 0 : index
    %c0_214 = arith.constant 0 : index
    %808 = vector.load %arg4[%c0_212, %c11, %c0_213, %c0_214] : memref<1x32x8x128xf32, #tpu.memory_space<vmem>>, vector<1x1x8x128xf32>
    %809 = vector.shape_cast %808 : vector<1x1x8x128xf32> to vector<8x128xf32>
    %810 = vector.shape_cast %807 : vector<8x128xf32> to vector<1x1x8x128xf32>
    tpu.vector_store %arg4[%c0_212, %c11, %c0_213, %c0_214], %810 {strides = array<i32>} : memref<1x32x8x128xf32, #tpu.memory_space<vmem>>, vector<1x1x8x128xf32>,
    %811 = vector.broadcast %4 : f32 to vector<8x128xf32>
    %812 = arith.mulf %729, %811 : vector<8x128xf32>
    %813 = vector.broadcast %12 : f32 to vector<8x128xf32>
    %814 = arith.mulf %732, %813 : vector<8x128xf32>
    %815 = arith.addf %812, %814 : vector<8x128xf32>
    %816 = vector.broadcast %20 : f32 to vector<8x128xf32>
    %817 = arith.mulf %735, %816 : vector<8x128xf32>
    %818 = arith.addf %815, %817 : vector<8x128xf32>
    %819 = vector.broadcast %28 : f32 to vector<8x128xf32>
    %820 = arith.mulf %738, %819 : vector<8x128xf32>
    %821 = arith.addf %818, %820 : vector<8x128xf32>
    %822 = vector.broadcast %36 : f32 to vector<8x128xf32>
    %823 = arith.addf %821, %822 : vector<8x128xf32>
    %cst_215 = arith.constant 0.000000e+00 : f32
    %824 = vector.broadcast %cst_215 : f32 to vector<8x128xf32>
    %825 = arith.maximumf %823, %824 : vector<8x128xf32>
    %c0_216 = arith.constant 0 : index
    %c12 = arith.constant 12 : index
    %c0_217 = arith.constant 0 : index
    %c0_218 = arith.constant 0 : index
    %826 = vector.load %arg4[%c0_216, %c12, %c0_217, %c0_218] : memref<1x32x8x128xf32, #tpu.memory_space<vmem>>, vector<1x1x8x128xf32>
    %827 = vector.shape_cast %826 : vector<1x1x8x128xf32> to vector<8x128xf32>
    %828 = vector.shape_cast %825 : vector<8x128xf32> to vector<1x1x8x128xf32>
    tpu.vector_store %arg4[%c0_216, %c12, %c0_217, %c0_218], %828 {strides = array<i32>} : memref<1x32x8x128xf32, #tpu.memory_space<vmem>>, vector<1x1x8x128xf32>,
    %829 = vector.broadcast %5 : f32 to vector<8x128xf32>
    %830 = arith.mulf %729, %829 : vector<8x128xf32>
    %831 = vector.broadcast %13 : f32 to vector<8x128xf32>
    %832 = arith.mulf %732, %831 : vector<8x128xf32>
    %833 = arith.addf %830, %832 : vector<8x128xf32>
    %834 = vector.broadcast %21 : f32 to vector<8x128xf32>
    %835 = arith.mulf %735, %834 : vector<8x128xf32>
    %836 = arith.addf %833, %835 : vector<8x128xf32>
    %837 = vector.broadcast %29 : f32 to vector<8x128xf32>
    %838 = arith.mulf %738, %837 : vector<8x128xf32>
    %839 = arith.addf %836, %838 : vector<8x128xf32>
    %840 = vector.broadcast %37 : f32 to vector<8x128xf32>
    %841 = arith.addf %839, %840 : vector<8x128xf32>
    %cst_219 = arith.constant 0.000000e+00 : f32
    %842 = vector.broadcast %cst_219 : f32 to vector<8x128xf32>
    %843 = arith.maximumf %841, %842 : vector<8x128xf32>
    %c0_220 = arith.constant 0 : index
    %c13 = arith.constant 13 : index
    %c0_221 = arith.constant 0 : index
    %c0_222 = arith.constant 0 : index
    %844 = vector.load %arg4[%c0_220, %c13, %c0_221, %c0_222] : memref<1x32x8x128xf32, #tpu.memory_space<vmem>>, vector<1x1x8x128xf32>
    %845 = vector.shape_cast %844 : vector<1x1x8x128xf32> to vector<8x128xf32>
    %846 = vector.shape_cast %843 : vector<8x128xf32> to vector<1x1x8x128xf32>
    tpu.vector_store %arg4[%c0_220, %c13, %c0_221, %c0_222], %846 {strides = array<i32>} : memref<1x32x8x128xf32, #tpu.memory_space<vmem>>, vector<1x1x8x128xf32>,
    %847 = vector.broadcast %6 : f32 to vector<8x128xf32>
    %848 = arith.mulf %729, %847 : vector<8x128xf32>
    %849 = vector.broadcast %14 : f32 to vector<8x128xf32>
    %850 = arith.mulf %732, %849 : vector<8x128xf32>
    %851 = arith.addf %848, %850 : vector<8x128xf32>
    %852 = vector.broadcast %22 : f32 to vector<8x128xf32>
    %853 = arith.mulf %735, %852 : vector<8x128xf32>
    %854 = arith.addf %851, %853 : vector<8x128xf32>
    %855 = vector.broadcast %30 : f32 to vector<8x128xf32>
    %856 = arith.mulf %738, %855 : vector<8x128xf32>
    %857 = arith.addf %854, %856 : vector<8x128xf32>
    %858 = vector.broadcast %38 : f32 to vector<8x128xf32>
    %859 = arith.addf %857, %858 : vector<8x128xf32>
    %cst_223 = arith.constant 0.000000e+00 : f32
    %860 = vector.broadcast %cst_223 : f32 to vector<8x128xf32>
    %861 = arith.maximumf %859, %860 : vector<8x128xf32>
    %c0_224 = arith.constant 0 : index
    %c14 = arith.constant 14 : index
    %c0_225 = arith.constant 0 : index
    %c0_226 = arith.constant 0 : index
    %862 = vector.load %arg4[%c0_224, %c14, %c0_225, %c0_226] : memref<1x32x8x128xf32, #tpu.memory_space<vmem>>, vector<1x1x8x128xf32>
    %863 = vector.shape_cast %862 : vector<1x1x8x128xf32> to vector<8x128xf32>
    %864 = vector.shape_cast %861 : vector<8x128xf32> to vector<1x1x8x128xf32>
    tpu.vector_store %arg4[%c0_224, %c14, %c0_225, %c0_226], %864 {strides = array<i32>} : memref<1x32x8x128xf32, #tpu.memory_space<vmem>>, vector<1x1x8x128xf32>,
    %865 = vector.broadcast %7 : f32 to vector<8x128xf32>
    %866 = arith.mulf %729, %865 : vector<8x128xf32>
    %867 = vector.broadcast %15 : f32 to vector<8x128xf32>
    %868 = arith.mulf %732, %867 : vector<8x128xf32>
    %869 = arith.addf %866, %868 : vector<8x128xf32>
    %870 = vector.broadcast %23 : f32 to vector<8x128xf32>
    %871 = arith.mulf %735, %870 : vector<8x128xf32>
    %872 = arith.addf %869, %871 : vector<8x128xf32>
    %873 = vector.broadcast %31 : f32 to vector<8x128xf32>
    %874 = arith.mulf %738, %873 : vector<8x128xf32>
    %875 = arith.addf %872, %874 : vector<8x128xf32>
    %876 = vector.broadcast %39 : f32 to vector<8x128xf32>
    %877 = arith.addf %875, %876 : vector<8x128xf32>
    %cst_227 = arith.constant 0.000000e+00 : f32
    %878 = vector.broadcast %cst_227 : f32 to vector<8x128xf32>
    %879 = arith.maximumf %877, %878 : vector<8x128xf32>
    %c0_228 = arith.constant 0 : index
    %c15 = arith.constant 15 : index
    %c0_229 = arith.constant 0 : index
    %c0_230 = arith.constant 0 : index
    %880 = vector.load %arg4[%c0_228, %c15, %c0_229, %c0_230] : memref<1x32x8x128xf32, #tpu.memory_space<vmem>>, vector<1x1x8x128xf32>
    %881 = vector.shape_cast %880 : vector<1x1x8x128xf32> to vector<8x128xf32>
    %882 = vector.shape_cast %879 : vector<8x128xf32> to vector<1x1x8x128xf32>
    tpu.vector_store %arg4[%c0_228, %c15, %c0_229, %c0_230], %882 {strides = array<i32>} : memref<1x32x8x128xf32, #tpu.memory_space<vmem>>, vector<1x1x8x128xf32>,
    %883 = arith.minimumf %582, %602 : vector<8x128xf32>
    %884 = arith.minimumf %883, %622 : vector<8x128xf32>
    %885 = arith.minimumf %884, %642 : vector<8x128xf32>
    %886 = arith.minimumf %885, %662 : vector<8x128xf32>
    %887 = arith.minimumf %886, %682 : vector<8x128xf32>
    %888 = arith.minimumf %887, %702 : vector<8x128xf32>
    %889 = arith.minimumf %888, %722 : vector<8x128xf32>
    %c7_i32_231 = arith.constant 7 : i32
    %890 = vector.broadcast %c7_i32_231 : i32 to vector<8x128xi32>
    %891 = arith.cmpf oeq, %702, %889 : vector<8x128xf32>
    %c6_i32_232 = arith.constant 6 : i32
    %892 = vector.broadcast %c6_i32_232 : i32 to vector<8x128xi32>
    %893 = arith.select %891, %892, %890 : vector<8x128xi1>, vector<8x128xi32>
    %894 = arith.cmpf oeq, %682, %889 : vector<8x128xf32>
    %c5_i32_233 = arith.constant 5 : i32
    %895 = vector.broadcast %c5_i32_233 : i32 to vector<8x128xi32>
    %896 = arith.select %894, %895, %893 : vector<8x128xi1>, vector<8x128xi32>
    %897 = arith.cmpf oeq, %662, %889 : vector<8x128xf32>
    %c4_i32_234 = arith.constant 4 : i32
    %898 = vector.broadcast %c4_i32_234 : i32 to vector<8x128xi32>
    %899 = arith.select %897, %898, %896 : vector<8x128xi1>, vector<8x128xi32>
    %900 = arith.cmpf oeq, %642, %889 : vector<8x128xf32>
    %c3_i32_235 = arith.constant 3 : i32
    %901 = vector.broadcast %c3_i32_235 : i32 to vector<8x128xi32>
    %902 = arith.select %900, %901, %899 : vector<8x128xi1>, vector<8x128xi32>
    %903 = arith.cmpf oeq, %622, %889 : vector<8x128xf32>
    %c2_i32_236 = arith.constant 2 : i32
    %904 = vector.broadcast %c2_i32_236 : i32 to vector<8x128xi32>
    %905 = arith.select %903, %904, %902 : vector<8x128xi1>, vector<8x128xi32>
    %906 = arith.cmpf oeq, %602, %889 : vector<8x128xf32>
    %c1_i32_237 = arith.constant 1 : i32
    %907 = vector.broadcast %c1_i32_237 : i32 to vector<8x128xi32>
    %908 = arith.select %906, %907, %905 : vector<8x128xi1>, vector<8x128xi32>
    %909 = arith.cmpf oeq, %582, %889 : vector<8x128xf32>
    %c0_i32_238 = arith.constant 0 : i32
    %910 = vector.broadcast %c0_i32_238 : i32 to vector<8x128xi32>
    %911 = arith.select %909, %910, %908 : vector<8x128xi1>, vector<8x128xi32>
    %cst_239 = arith.constant 0.000000e+00 : f32
    %912 = vector.broadcast %cst_239 : f32 to vector<8x128xf32>
    %cst_240 = arith.constant 0.000000e+00 : f32
    %913 = vector.broadcast %cst_240 : f32 to vector<8x128xf32>
    %cst_241 = arith.constant 0.000000e+00 : f32
    %914 = vector.broadcast %cst_241 : f32 to vector<8x128xf32>
    %cst_242 = arith.constant 0.000000e+00 : f32
    %915 = vector.broadcast %cst_242 : f32 to vector<8x128xf32>
    %c0_i32_243 = arith.constant 0 : i32
    %916 = vector.broadcast %c0_i32_243 : i32 to vector<8x128xi32>
    %917 = arith.cmpi eq, %911, %916 : vector<8x128xi32>
    %918 = vector.extract_strided_slice %42 {offsets = [0, 0], sizes = [1, 128], strides = [1, 1]} : vector<8x128xf32> to vector<1x128xf32>
    %919 = vector.shape_cast %918 : vector<1x128xf32> to vector<1x128xf32>
    %920 = vector.broadcast %919 : vector<1x128xf32> to vector<8x128xf32>
    %921 = arith.select %917, %920, %912 : vector<8x128xi1>, vector<8x128xf32>
    %922 = vector.extract_strided_slice %44 {offsets = [0, 0], sizes = [1, 128], strides = [1, 1]} : vector<8x128xf32> to vector<1x128xf32>
    %923 = vector.shape_cast %922 : vector<1x128xf32> to vector<1x128xf32>
    %924 = vector.broadcast %923 : vector<1x128xf32> to vector<8x128xf32>
    %925 = arith.select %917, %924, %913 : vector<8x128xi1>, vector<8x128xf32>
    %926 = vector.extract_strided_slice %46 {offsets = [0, 0], sizes = [1, 128], strides = [1, 1]} : vector<8x128xf32> to vector<1x128xf32>
    %927 = vector.shape_cast %926 : vector<1x128xf32> to vector<1x128xf32>
    %928 = vector.broadcast %927 : vector<1x128xf32> to vector<8x128xf32>
    %929 = arith.select %917, %928, %914 : vector<8x128xi1>, vector<8x128xf32>
    %930 = vector.extract_strided_slice %48 {offsets = [0, 0], sizes = [1, 128], strides = [1, 1]} : vector<8x128xf32> to vector<1x128xf32>
    %931 = vector.shape_cast %930 : vector<1x128xf32> to vector<1x128xf32>
    %932 = vector.broadcast %931 : vector<1x128xf32> to vector<8x128xf32>
    %933 = arith.select %917, %932, %915 : vector<8x128xi1>, vector<8x128xf32>
    %cst_244 = arith.constant 1.000000e+30 : f32
    %934 = vector.broadcast %cst_244 : f32 to vector<8x128xf32>
    %935 = arith.select %917, %934, %582 : vector<8x128xi1>, vector<8x128xf32>
    %c1_i32_245 = arith.constant 1 : i32
    %936 = vector.broadcast %c1_i32_245 : i32 to vector<8x128xi32>
    %937 = arith.cmpi eq, %911, %936 : vector<8x128xi32>
    %938 = vector.extract_strided_slice %42 {offsets = [1, 0], sizes = [1, 128], strides = [1, 1]} : vector<8x128xf32> to vector<1x128xf32>
    %939 = vector.shape_cast %938 : vector<1x128xf32> to vector<1x128xf32>
    %940 = vector.broadcast %939 : vector<1x128xf32> to vector<8x128xf32>
    %941 = arith.select %937, %940, %921 : vector<8x128xi1>, vector<8x128xf32>
    %942 = vector.extract_strided_slice %44 {offsets = [1, 0], sizes = [1, 128], strides = [1, 1]} : vector<8x128xf32> to vector<1x128xf32>
    %943 = vector.shape_cast %942 : vector<1x128xf32> to vector<1x128xf32>
    %944 = vector.broadcast %943 : vector<1x128xf32> to vector<8x128xf32>
    %945 = arith.select %937, %944, %925 : vector<8x128xi1>, vector<8x128xf32>
    %946 = vector.extract_strided_slice %46 {offsets = [1, 0], sizes = [1, 128], strides = [1, 1]} : vector<8x128xf32> to vector<1x128xf32>
    %947 = vector.shape_cast %946 : vector<1x128xf32> to vector<1x128xf32>
    %948 = vector.broadcast %947 : vector<1x128xf32> to vector<8x128xf32>
    %949 = arith.select %937, %948, %929 : vector<8x128xi1>, vector<8x128xf32>
    %950 = vector.extract_strided_slice %48 {offsets = [1, 0], sizes = [1, 128], strides = [1, 1]} : vector<8x128xf32> to vector<1x128xf32>
    %951 = vector.shape_cast %950 : vector<1x128xf32> to vector<1x128xf32>
    %952 = vector.broadcast %951 : vector<1x128xf32> to vector<8x128xf32>
    %953 = arith.select %937, %952, %933 : vector<8x128xi1>, vector<8x128xf32>
    %cst_246 = arith.constant 1.000000e+30 : f32
    %954 = vector.broadcast %cst_246 : f32 to vector<8x128xf32>
    %955 = arith.select %937, %954, %602 : vector<8x128xi1>, vector<8x128xf32>
    %c2_i32_247 = arith.constant 2 : i32
    %956 = vector.broadcast %c2_i32_247 : i32 to vector<8x128xi32>
    %957 = arith.cmpi eq, %911, %956 : vector<8x128xi32>
    %958 = vector.extract_strided_slice %42 {offsets = [2, 0], sizes = [1, 128], strides = [1, 1]} : vector<8x128xf32> to vector<1x128xf32>
    %959 = vector.shape_cast %958 : vector<1x128xf32> to vector<1x128xf32>
    %960 = vector.broadcast %959 : vector<1x128xf32> to vector<8x128xf32>
    %961 = arith.select %957, %960, %941 : vector<8x128xi1>, vector<8x128xf32>
    %962 = vector.extract_strided_slice %44 {offsets = [2, 0], sizes = [1, 128], strides = [1, 1]} : vector<8x128xf32> to vector<1x128xf32>
    %963 = vector.shape_cast %962 : vector<1x128xf32> to vector<1x128xf32>
    %964 = vector.broadcast %963 : vector<1x128xf32> to vector<8x128xf32>
    %965 = arith.select %957, %964, %945 : vector<8x128xi1>, vector<8x128xf32>
    %966 = vector.extract_strided_slice %46 {offsets = [2, 0], sizes = [1, 128], strides = [1, 1]} : vector<8x128xf32> to vector<1x128xf32>
    %967 = vector.shape_cast %966 : vector<1x128xf32> to vector<1x128xf32>
    %968 = vector.broadcast %967 : vector<1x128xf32> to vector<8x128xf32>
    %969 = arith.select %957, %968, %949 : vector<8x128xi1>, vector<8x128xf32>
    %970 = vector.extract_strided_slice %48 {offsets = [2, 0], sizes = [1, 128], strides = [1, 1]} : vector<8x128xf32> to vector<1x128xf32>
    %971 = vector.shape_cast %970 : vector<1x128xf32> to vector<1x128xf32>
    %972 = vector.broadcast %971 : vector<1x128xf32> to vector<8x128xf32>
    %973 = arith.select %957, %972, %953 : vector<8x128xi1>, vector<8x128xf32>
    %cst_248 = arith.constant 1.000000e+30 : f32
    %974 = vector.broadcast %cst_248 : f32 to vector<8x128xf32>
    %975 = arith.select %957, %974, %622 : vector<8x128xi1>, vector<8x128xf32>
    %c3_i32_249 = arith.constant 3 : i32
    %976 = vector.broadcast %c3_i32_249 : i32 to vector<8x128xi32>
    %977 = arith.cmpi eq, %911, %976 : vector<8x128xi32>
    %978 = vector.extract_strided_slice %42 {offsets = [3, 0], sizes = [1, 128], strides = [1, 1]} : vector<8x128xf32> to vector<1x128xf32>
    %979 = vector.shape_cast %978 : vector<1x128xf32> to vector<1x128xf32>
    %980 = vector.broadcast %979 : vector<1x128xf32> to vector<8x128xf32>
    %981 = arith.select %977, %980, %961 : vector<8x128xi1>, vector<8x128xf32>
    %982 = vector.extract_strided_slice %44 {offsets = [3, 0], sizes = [1, 128], strides = [1, 1]} : vector<8x128xf32> to vector<1x128xf32>
    %983 = vector.shape_cast %982 : vector<1x128xf32> to vector<1x128xf32>
    %984 = vector.broadcast %983 : vector<1x128xf32> to vector<8x128xf32>
    %985 = arith.select %977, %984, %965 : vector<8x128xi1>, vector<8x128xf32>
    %986 = vector.extract_strided_slice %46 {offsets = [3, 0], sizes = [1, 128], strides = [1, 1]} : vector<8x128xf32> to vector<1x128xf32>
    %987 = vector.shape_cast %986 : vector<1x128xf32> to vector<1x128xf32>
    %988 = vector.broadcast %987 : vector<1x128xf32> to vector<8x128xf32>
    %989 = arith.select %977, %988, %969 : vector<8x128xi1>, vector<8x128xf32>
    %990 = vector.extract_strided_slice %48 {offsets = [3, 0], sizes = [1, 128], strides = [1, 1]} : vector<8x128xf32> to vector<1x128xf32>
    %991 = vector.shape_cast %990 : vector<1x128xf32> to vector<1x128xf32>
    %992 = vector.broadcast %991 : vector<1x128xf32> to vector<8x128xf32>
    %993 = arith.select %977, %992, %973 : vector<8x128xi1>, vector<8x128xf32>
    %cst_250 = arith.constant 1.000000e+30 : f32
    %994 = vector.broadcast %cst_250 : f32 to vector<8x128xf32>
    %995 = arith.select %977, %994, %642 : vector<8x128xi1>, vector<8x128xf32>
    %c4_i32_251 = arith.constant 4 : i32
    %996 = vector.broadcast %c4_i32_251 : i32 to vector<8x128xi32>
    %997 = arith.cmpi eq, %911, %996 : vector<8x128xi32>
    %998 = vector.extract_strided_slice %42 {offsets = [4, 0], sizes = [1, 128], strides = [1, 1]} : vector<8x128xf32> to vector<1x128xf32>
    %999 = vector.shape_cast %998 : vector<1x128xf32> to vector<1x128xf32>
    %1000 = vector.broadcast %999 : vector<1x128xf32> to vector<8x128xf32>
    %1001 = arith.select %997, %1000, %981 : vector<8x128xi1>, vector<8x128xf32>
    %1002 = vector.extract_strided_slice %44 {offsets = [4, 0], sizes = [1, 128], strides = [1, 1]} : vector<8x128xf32> to vector<1x128xf32>
    %1003 = vector.shape_cast %1002 : vector<1x128xf32> to vector<1x128xf32>
    %1004 = vector.broadcast %1003 : vector<1x128xf32> to vector<8x128xf32>
    %1005 = arith.select %997, %1004, %985 : vector<8x128xi1>, vector<8x128xf32>
    %1006 = vector.extract_strided_slice %46 {offsets = [4, 0], sizes = [1, 128], strides = [1, 1]} : vector<8x128xf32> to vector<1x128xf32>
    %1007 = vector.shape_cast %1006 : vector<1x128xf32> to vector<1x128xf32>
    %1008 = vector.broadcast %1007 : vector<1x128xf32> to vector<8x128xf32>
    %1009 = arith.select %997, %1008, %989 : vector<8x128xi1>, vector<8x128xf32>
    %1010 = vector.extract_strided_slice %48 {offsets = [4, 0], sizes = [1, 128], strides = [1, 1]} : vector<8x128xf32> to vector<1x128xf32>
    %1011 = vector.shape_cast %1010 : vector<1x128xf32> to vector<1x128xf32>
    %1012 = vector.broadcast %1011 : vector<1x128xf32> to vector<8x128xf32>
    %1013 = arith.select %997, %1012, %993 : vector<8x128xi1>, vector<8x128xf32>
    %cst_252 = arith.constant 1.000000e+30 : f32
    %1014 = vector.broadcast %cst_252 : f32 to vector<8x128xf32>
    %1015 = arith.select %997, %1014, %662 : vector<8x128xi1>, vector<8x128xf32>
    %c5_i32_253 = arith.constant 5 : i32
    %1016 = vector.broadcast %c5_i32_253 : i32 to vector<8x128xi32>
    %1017 = arith.cmpi eq, %911, %1016 : vector<8x128xi32>
    %1018 = vector.extract_strided_slice %42 {offsets = [5, 0], sizes = [1, 128], strides = [1, 1]} : vector<8x128xf32> to vector<1x128xf32>
    %1019 = vector.shape_cast %1018 : vector<1x128xf32> to vector<1x128xf32>
    %1020 = vector.broadcast %1019 : vector<1x128xf32> to vector<8x128xf32>
    %1021 = arith.select %1017, %1020, %1001 : vector<8x128xi1>, vector<8x128xf32>
    %1022 = vector.extract_strided_slice %44 {offsets = [5, 0], sizes = [1, 128], strides = [1, 1]} : vector<8x128xf32> to vector<1x128xf32>
    %1023 = vector.shape_cast %1022 : vector<1x128xf32> to vector<1x128xf32>
    %1024 = vector.broadcast %1023 : vector<1x128xf32> to vector<8x128xf32>
    %1025 = arith.select %1017, %1024, %1005 : vector<8x128xi1>, vector<8x128xf32>
    %1026 = vector.extract_strided_slice %46 {offsets = [5, 0], sizes = [1, 128], strides = [1, 1]} : vector<8x128xf32> to vector<1x128xf32>
    %1027 = vector.shape_cast %1026 : vector<1x128xf32> to vector<1x128xf32>
    %1028 = vector.broadcast %1027 : vector<1x128xf32> to vector<8x128xf32>
    %1029 = arith.select %1017, %1028, %1009 : vector<8x128xi1>, vector<8x128xf32>
    %1030 = vector.extract_strided_slice %48 {offsets = [5, 0], sizes = [1, 128], strides = [1, 1]} : vector<8x128xf32> to vector<1x128xf32>
    %1031 = vector.shape_cast %1030 : vector<1x128xf32> to vector<1x128xf32>
    %1032 = vector.broadcast %1031 : vector<1x128xf32> to vector<8x128xf32>
    %1033 = arith.select %1017, %1032, %1013 : vector<8x128xi1>, vector<8x128xf32>
    %cst_254 = arith.constant 1.000000e+30 : f32
    %1034 = vector.broadcast %cst_254 : f32 to vector<8x128xf32>
    %1035 = arith.select %1017, %1034, %682 : vector<8x128xi1>, vector<8x128xf32>
    %c6_i32_255 = arith.constant 6 : i32
    %1036 = vector.broadcast %c6_i32_255 : i32 to vector<8x128xi32>
    %1037 = arith.cmpi eq, %911, %1036 : vector<8x128xi32>
    %1038 = vector.extract_strided_slice %42 {offsets = [6, 0], sizes = [1, 128], strides = [1, 1]} : vector<8x128xf32> to vector<1x128xf32>
    %1039 = vector.shape_cast %1038 : vector<1x128xf32> to vector<1x128xf32>
    %1040 = vector.broadcast %1039 : vector<1x128xf32> to vector<8x128xf32>
    %1041 = arith.select %1037, %1040, %1021 : vector<8x128xi1>, vector<8x128xf32>
    %1042 = vector.extract_strided_slice %44 {offsets = [6, 0], sizes = [1, 128], strides = [1, 1]} : vector<8x128xf32> to vector<1x128xf32>
    %1043 = vector.shape_cast %1042 : vector<1x128xf32> to vector<1x128xf32>
    %1044 = vector.broadcast %1043 : vector<1x128xf32> to vector<8x128xf32>
    %1045 = arith.select %1037, %1044, %1025 : vector<8x128xi1>, vector<8x128xf32>
    %1046 = vector.extract_strided_slice %46 {offsets = [6, 0], sizes = [1, 128], strides = [1, 1]} : vector<8x128xf32> to vector<1x128xf32>
    %1047 = vector.shape_cast %1046 : vector<1x128xf32> to vector<1x128xf32>
    %1048 = vector.broadcast %1047 : vector<1x128xf32> to vector<8x128xf32>
    %1049 = arith.select %1037, %1048, %1029 : vector<8x128xi1>, vector<8x128xf32>
    %1050 = vector.extract_strided_slice %48 {offsets = [6, 0], sizes = [1, 128], strides = [1, 1]} : vector<8x128xf32> to vector<1x128xf32>
    %1051 = vector.shape_cast %1050 : vector<1x128xf32> to vector<1x128xf32>
    %1052 = vector.broadcast %1051 : vector<1x128xf32> to vector<8x128xf32>
    %1053 = arith.select %1037, %1052, %1033 : vector<8x128xi1>, vector<8x128xf32>
    %cst_256 = arith.constant 1.000000e+30 : f32
    %1054 = vector.broadcast %cst_256 : f32 to vector<8x128xf32>
    %1055 = arith.select %1037, %1054, %702 : vector<8x128xi1>, vector<8x128xf32>
    %c7_i32_257 = arith.constant 7 : i32
    %1056 = vector.broadcast %c7_i32_257 : i32 to vector<8x128xi32>
    %1057 = arith.cmpi eq, %911, %1056 : vector<8x128xi32>
    %1058 = vector.extract_strided_slice %42 {offsets = [7, 0], sizes = [1, 128], strides = [1, 1]} : vector<8x128xf32> to vector<1x128xf32>
    %1059 = vector.shape_cast %1058 : vector<1x128xf32> to vector<1x128xf32>
    %1060 = vector.broadcast %1059 : vector<1x128xf32> to vector<8x128xf32>
    %1061 = arith.select %1057, %1060, %1041 : vector<8x128xi1>, vector<8x128xf32>
    %1062 = vector.extract_strided_slice %44 {offsets = [7, 0], sizes = [1, 128], strides = [1, 1]} : vector<8x128xf32> to vector<1x128xf32>
    %1063 = vector.shape_cast %1062 : vector<1x128xf32> to vector<1x128xf32>
    %1064 = vector.broadcast %1063 : vector<1x128xf32> to vector<8x128xf32>
    %1065 = arith.select %1057, %1064, %1045 : vector<8x128xi1>, vector<8x128xf32>
    %1066 = vector.extract_strided_slice %46 {offsets = [7, 0], sizes = [1, 128], strides = [1, 1]} : vector<8x128xf32> to vector<1x128xf32>
    %1067 = vector.shape_cast %1066 : vector<1x128xf32> to vector<1x128xf32>
    %1068 = vector.broadcast %1067 : vector<1x128xf32> to vector<8x128xf32>
    %1069 = arith.select %1057, %1068, %1049 : vector<8x128xi1>, vector<8x128xf32>
    %1070 = vector.extract_strided_slice %48 {offsets = [7, 0], sizes = [1, 128], strides = [1, 1]} : vector<8x128xf32> to vector<1x128xf32>
    %1071 = vector.shape_cast %1070 : vector<1x128xf32> to vector<1x128xf32>
    %1072 = vector.broadcast %1071 : vector<1x128xf32> to vector<8x128xf32>
    %1073 = arith.select %1057, %1072, %1053 : vector<8x128xi1>, vector<8x128xf32>
    %cst_258 = arith.constant 1.000000e+30 : f32
    %1074 = vector.broadcast %cst_258 : f32 to vector<8x128xf32>
    %1075 = arith.select %1057, %1074, %722 : vector<8x128xi1>, vector<8x128xf32>
    %1076 = arith.subf %1061, %42 : vector<8x128xf32>
    %1077 = arith.subf %1065, %44 : vector<8x128xf32>
    %1078 = arith.subf %1069, %46 : vector<8x128xf32>
    %1079 = arith.subf %1073, %48 : vector<8x128xf32>
    %1080 = arith.cmpf one, %1076, %1076 : vector<8x128xf32>
    %cst_259 = arith.constant 0.000000e+00 : f32
    %1081 = vector.broadcast %cst_259 : f32 to vector<8x128xf32>
    %1082 = arith.select %1080, %1081, %1076 : vector<8x128xi1>, vector<8x128xf32>
    %1083 = arith.cmpf one, %1077, %1077 : vector<8x128xf32>
    %cst_260 = arith.constant 0.000000e+00 : f32
    %1084 = vector.broadcast %cst_260 : f32 to vector<8x128xf32>
    %1085 = arith.select %1083, %1084, %1077 : vector<8x128xi1>, vector<8x128xf32>
    %1086 = arith.cmpf one, %1078, %1078 : vector<8x128xf32>
    %cst_261 = arith.constant 0.000000e+00 : f32
    %1087 = vector.broadcast %cst_261 : f32 to vector<8x128xf32>
    %1088 = arith.select %1086, %1087, %1078 : vector<8x128xi1>, vector<8x128xf32>
    %1089 = arith.cmpf one, %1079, %1079 : vector<8x128xf32>
    %cst_262 = arith.constant 0.000000e+00 : f32
    %1090 = vector.broadcast %cst_262 : f32 to vector<8x128xf32>
    %1091 = arith.select %1089, %1090, %1079 : vector<8x128xi1>, vector<8x128xf32>
    %1092 = vector.broadcast %0 : f32 to vector<8x128xf32>
    %1093 = arith.mulf %1082, %1092 : vector<8x128xf32>
    %1094 = vector.broadcast %8 : f32 to vector<8x128xf32>
    %1095 = arith.mulf %1085, %1094 : vector<8x128xf32>
    %1096 = arith.addf %1093, %1095 : vector<8x128xf32>
    %1097 = vector.broadcast %16 : f32 to vector<8x128xf32>
    %1098 = arith.mulf %1088, %1097 : vector<8x128xf32>
    %1099 = arith.addf %1096, %1098 : vector<8x128xf32>
    %1100 = vector.broadcast %24 : f32 to vector<8x128xf32>
    %1101 = arith.mulf %1091, %1100 : vector<8x128xf32>
    %1102 = arith.addf %1099, %1101 : vector<8x128xf32>
    %1103 = vector.broadcast %32 : f32 to vector<8x128xf32>
    %1104 = arith.addf %1102, %1103 : vector<8x128xf32>
    %cst_263 = arith.constant 0.000000e+00 : f32
    %1105 = vector.broadcast %cst_263 : f32 to vector<8x128xf32>
    %1106 = arith.maximumf %1104, %1105 : vector<8x128xf32>
    %c0_264 = arith.constant 0 : index
    %c16 = arith.constant 16 : index
    %c0_265 = arith.constant 0 : index
    %c0_266 = arith.constant 0 : index
    %1107 = vector.load %arg4[%c0_264, %c16, %c0_265, %c0_266] : memref<1x32x8x128xf32, #tpu.memory_space<vmem>>, vector<1x1x8x128xf32>
    %1108 = vector.shape_cast %1107 : vector<1x1x8x128xf32> to vector<8x128xf32>
    %1109 = vector.shape_cast %1106 : vector<8x128xf32> to vector<1x1x8x128xf32>
    tpu.vector_store %arg4[%c0_264, %c16, %c0_265, %c0_266], %1109 {strides = array<i32>} : memref<1x32x8x128xf32, #tpu.memory_space<vmem>>, vector<1x1x8x128xf32>,
    %1110 = vector.broadcast %1 : f32 to vector<8x128xf32>
    %1111 = arith.mulf %1082, %1110 : vector<8x128xf32>
    %1112 = vector.broadcast %9 : f32 to vector<8x128xf32>
    %1113 = arith.mulf %1085, %1112 : vector<8x128xf32>
    %1114 = arith.addf %1111, %1113 : vector<8x128xf32>
    %1115 = vector.broadcast %17 : f32 to vector<8x128xf32>
    %1116 = arith.mulf %1088, %1115 : vector<8x128xf32>
    %1117 = arith.addf %1114, %1116 : vector<8x128xf32>
    %1118 = vector.broadcast %25 : f32 to vector<8x128xf32>
    %1119 = arith.mulf %1091, %1118 : vector<8x128xf32>
    %1120 = arith.addf %1117, %1119 : vector<8x128xf32>
    %1121 = vector.broadcast %33 : f32 to vector<8x128xf32>
    %1122 = arith.addf %1120, %1121 : vector<8x128xf32>
    %cst_267 = arith.constant 0.000000e+00 : f32
    %1123 = vector.broadcast %cst_267 : f32 to vector<8x128xf32>
    %1124 = arith.maximumf %1122, %1123 : vector<8x128xf32>
    %c0_268 = arith.constant 0 : index
    %c17 = arith.constant 17 : index
    %c0_269 = arith.constant 0 : index
    %c0_270 = arith.constant 0 : index
    %1125 = vector.load %arg4[%c0_268, %c17, %c0_269, %c0_270] : memref<1x32x8x128xf32, #tpu.memory_space<vmem>>, vector<1x1x8x128xf32>
    %1126 = vector.shape_cast %1125 : vector<1x1x8x128xf32> to vector<8x128xf32>
    %1127 = vector.shape_cast %1124 : vector<8x128xf32> to vector<1x1x8x128xf32>
    tpu.vector_store %arg4[%c0_268, %c17, %c0_269, %c0_270], %1127 {strides = array<i32>} : memref<1x32x8x128xf32, #tpu.memory_space<vmem>>, vector<1x1x8x128xf32>,
    %1128 = vector.broadcast %2 : f32 to vector<8x128xf32>
    %1129 = arith.mulf %1082, %1128 : vector<8x128xf32>
    %1130 = vector.broadcast %10 : f32 to vector<8x128xf32>
    %1131 = arith.mulf %1085, %1130 : vector<8x128xf32>
    %1132 = arith.addf %1129, %1131 : vector<8x128xf32>
    %1133 = vector.broadcast %18 : f32 to vector<8x128xf32>
    %1134 = arith.mulf %1088, %1133 : vector<8x128xf32>
    %1135 = arith.addf %1132, %1134 : vector<8x128xf32>
    %1136 = vector.broadcast %26 : f32 to vector<8x128xf32>
    %1137 = arith.mulf %1091, %1136 : vector<8x128xf32>
    %1138 = arith.addf %1135, %1137 : vector<8x128xf32>
    %1139 = vector.broadcast %34 : f32 to vector<8x128xf32>
    %1140 = arith.addf %1138, %1139 : vector<8x128xf32>
    %cst_271 = arith.constant 0.000000e+00 : f32
    %1141 = vector.broadcast %cst_271 : f32 to vector<8x128xf32>
    %1142 = arith.maximumf %1140, %1141 : vector<8x128xf32>
    %c0_272 = arith.constant 0 : index
    %c18 = arith.constant 18 : index
    %c0_273 = arith.constant 0 : index
    %c0_274 = arith.constant 0 : index
    %1143 = vector.load %arg4[%c0_272, %c18, %c0_273, %c0_274] : memref<1x32x8x128xf32, #tpu.memory_space<vmem>>, vector<1x1x8x128xf32>
    %1144 = vector.shape_cast %1143 : vector<1x1x8x128xf32> to vector<8x128xf32>
    %1145 = vector.shape_cast %1142 : vector<8x128xf32> to vector<1x1x8x128xf32>
    tpu.vector_store %arg4[%c0_272, %c18, %c0_273, %c0_274], %1145 {strides = array<i32>} : memref<1x32x8x128xf32, #tpu.memory_space<vmem>>, vector<1x1x8x128xf32>,
    %1146 = vector.broadcast %3 : f32 to vector<8x128xf32>
    %1147 = arith.mulf %1082, %1146 : vector<8x128xf32>
    %1148 = vector.broadcast %11 : f32 to vector<8x128xf32>
    %1149 = arith.mulf %1085, %1148 : vector<8x128xf32>
    %1150 = arith.addf %1147, %1149 : vector<8x128xf32>
    %1151 = vector.broadcast %19 : f32 to vector<8x128xf32>
    %1152 = arith.mulf %1088, %1151 : vector<8x128xf32>
    %1153 = arith.addf %1150, %1152 : vector<8x128xf32>
    %1154 = vector.broadcast %27 : f32 to vector<8x128xf32>
    %1155 = arith.mulf %1091, %1154 : vector<8x128xf32>
    %1156 = arith.addf %1153, %1155 : vector<8x128xf32>
    %1157 = vector.broadcast %35 : f32 to vector<8x128xf32>
    %1158 = arith.addf %1156, %1157 : vector<8x128xf32>
    %cst_275 = arith.constant 0.000000e+00 : f32
    %1159 = vector.broadcast %cst_275 : f32 to vector<8x128xf32>
    %1160 = arith.maximumf %1158, %1159 : vector<8x128xf32>
    %c0_276 = arith.constant 0 : index
    %c19 = arith.constant 19 : index
    %c0_277 = arith.constant 0 : index
    %c0_278 = arith.constant 0 : index
    %1161 = vector.load %arg4[%c0_276, %c19, %c0_277, %c0_278] : memref<1x32x8x128xf32, #tpu.memory_space<vmem>>, vector<1x1x8x128xf32>
    %1162 = vector.shape_cast %1161 : vector<1x1x8x128xf32> to vector<8x128xf32>
    %1163 = vector.shape_cast %1160 : vector<8x128xf32> to vector<1x1x8x128xf32>
    tpu.vector_store %arg4[%c0_276, %c19, %c0_277, %c0_278], %1163 {strides = array<i32>} : memref<1x32x8x128xf32, #tpu.memory_space<vmem>>, vector<1x1x8x128xf32>,
    %1164 = vector.broadcast %4 : f32 to vector<8x128xf32>
    %1165 = arith.mulf %1082, %1164 : vector<8x128xf32>
    %1166 = vector.broadcast %12 : f32 to vector<8x128xf32>
    %1167 = arith.mulf %1085, %1166 : vector<8x128xf32>
    %1168 = arith.addf %1165, %1167 : vector<8x128xf32>
    %1169 = vector.broadcast %20 : f32 to vector<8x128xf32>
    %1170 = arith.mulf %1088, %1169 : vector<8x128xf32>
    %1171 = arith.addf %1168, %1170 : vector<8x128xf32>
    %1172 = vector.broadcast %28 : f32 to vector<8x128xf32>
    %1173 = arith.mulf %1091, %1172 : vector<8x128xf32>
    %1174 = arith.addf %1171, %1173 : vector<8x128xf32>
    %1175 = vector.broadcast %36 : f32 to vector<8x128xf32>
    %1176 = arith.addf %1174, %1175 : vector<8x128xf32>
    %cst_279 = arith.constant 0.000000e+00 : f32
    %1177 = vector.broadcast %cst_279 : f32 to vector<8x128xf32>
    %1178 = arith.maximumf %1176, %1177 : vector<8x128xf32>
    %c0_280 = arith.constant 0 : index
    %c20 = arith.constant 20 : index
    %c0_281 = arith.constant 0 : index
    %c0_282 = arith.constant 0 : index
    %1179 = vector.load %arg4[%c0_280, %c20, %c0_281, %c0_282] : memref<1x32x8x128xf32, #tpu.memory_space<vmem>>, vector<1x1x8x128xf32>
    %1180 = vector.shape_cast %1179 : vector<1x1x8x128xf32> to vector<8x128xf32>
    %1181 = vector.shape_cast %1178 : vector<8x128xf32> to vector<1x1x8x128xf32>
    tpu.vector_store %arg4[%c0_280, %c20, %c0_281, %c0_282], %1181 {strides = array<i32>} : memref<1x32x8x128xf32, #tpu.memory_space<vmem>>, vector<1x1x8x128xf32>,
    %1182 = vector.broadcast %5 : f32 to vector<8x128xf32>
    %1183 = arith.mulf %1082, %1182 : vector<8x128xf32>
    %1184 = vector.broadcast %13 : f32 to vector<8x128xf32>
    %1185 = arith.mulf %1085, %1184 : vector<8x128xf32>
    %1186 = arith.addf %1183, %1185 : vector<8x128xf32>
    %1187 = vector.broadcast %21 : f32 to vector<8x128xf32>
    %1188 = arith.mulf %1088, %1187 : vector<8x128xf32>
    %1189 = arith.addf %1186, %1188 : vector<8x128xf32>
    %1190 = vector.broadcast %29 : f32 to vector<8x128xf32>
    %1191 = arith.mulf %1091, %1190 : vector<8x128xf32>
    %1192 = arith.addf %1189, %1191 : vector<8x128xf32>
    %1193 = vector.broadcast %37 : f32 to vector<8x128xf32>
    %1194 = arith.addf %1192, %1193 : vector<8x128xf32>
    %cst_283 = arith.constant 0.000000e+00 : f32
    %1195 = vector.broadcast %cst_283 : f32 to vector<8x128xf32>
    %1196 = arith.maximumf %1194, %1195 : vector<8x128xf32>
    %c0_284 = arith.constant 0 : index
    %c21 = arith.constant 21 : index
    %c0_285 = arith.constant 0 : index
    %c0_286 = arith.constant 0 : index
    %1197 = vector.load %arg4[%c0_284, %c21, %c0_285, %c0_286] : memref<1x32x8x128xf32, #tpu.memory_space<vmem>>, vector<1x1x8x128xf32>
    %1198 = vector.shape_cast %1197 : vector<1x1x8x128xf32> to vector<8x128xf32>
    %1199 = vector.shape_cast %1196 : vector<8x128xf32> to vector<1x1x8x128xf32>
    tpu.vector_store %arg4[%c0_284, %c21, %c0_285, %c0_286], %1199 {strides = array<i32>} : memref<1x32x8x128xf32, #tpu.memory_space<vmem>>, vector<1x1x8x128xf32>,
    %1200 = vector.broadcast %6 : f32 to vector<8x128xf32>
    %1201 = arith.mulf %1082, %1200 : vector<8x128xf32>
    %1202 = vector.broadcast %14 : f32 to vector<8x128xf32>
    %1203 = arith.mulf %1085, %1202 : vector<8x128xf32>
    %1204 = arith.addf %1201, %1203 : vector<8x128xf32>
    %1205 = vector.broadcast %22 : f32 to vector<8x128xf32>
    %1206 = arith.mulf %1088, %1205 : vector<8x128xf32>
    %1207 = arith.addf %1204, %1206 : vector<8x128xf32>
    %1208 = vector.broadcast %30 : f32 to vector<8x128xf32>
    %1209 = arith.mulf %1091, %1208 : vector<8x128xf32>
    %1210 = arith.addf %1207, %1209 : vector<8x128xf32>
    %1211 = vector.broadcast %38 : f32 to vector<8x128xf32>
    %1212 = arith.addf %1210, %1211 : vector<8x128xf32>
    %cst_287 = arith.constant 0.000000e+00 : f32
    %1213 = vector.broadcast %cst_287 : f32 to vector<8x128xf32>
    %1214 = arith.maximumf %1212, %1213 : vector<8x128xf32>
    %c0_288 = arith.constant 0 : index
    %c22 = arith.constant 22 : index
    %c0_289 = arith.constant 0 : index
    %c0_290 = arith.constant 0 : index
    %1215 = vector.load %arg4[%c0_288, %c22, %c0_289, %c0_290] : memref<1x32x8x128xf32, #tpu.memory_space<vmem>>, vector<1x1x8x128xf32>
    %1216 = vector.shape_cast %1215 : vector<1x1x8x128xf32> to vector<8x128xf32>
    %1217 = vector.shape_cast %1214 : vector<8x128xf32> to vector<1x1x8x128xf32>
    tpu.vector_store %arg4[%c0_288, %c22, %c0_289, %c0_290], %1217 {strides = array<i32>} : memref<1x32x8x128xf32, #tpu.memory_space<vmem>>, vector<1x1x8x128xf32>,
    %1218 = vector.broadcast %7 : f32 to vector<8x128xf32>
    %1219 = arith.mulf %1082, %1218 : vector<8x128xf32>
    %1220 = vector.broadcast %15 : f32 to vector<8x128xf32>
    %1221 = arith.mulf %1085, %1220 : vector<8x128xf32>
    %1222 = arith.addf %1219, %1221 : vector<8x128xf32>
    %1223 = vector.broadcast %23 : f32 to vector<8x128xf32>
    %1224 = arith.mulf %1088, %1223 : vector<8x128xf32>
    %1225 = arith.addf %1222, %1224 : vector<8x128xf32>
    %1226 = vector.broadcast %31 : f32 to vector<8x128xf32>
    %1227 = arith.mulf %1091, %1226 : vector<8x128xf32>
    %1228 = arith.addf %1225, %1227 : vector<8x128xf32>
    %1229 = vector.broadcast %39 : f32 to vector<8x128xf32>
    %1230 = arith.addf %1228, %1229 : vector<8x128xf32>
    %cst_291 = arith.constant 0.000000e+00 : f32
    %1231 = vector.broadcast %cst_291 : f32 to vector<8x128xf32>
    %1232 = arith.maximumf %1230, %1231 : vector<8x128xf32>
    %c0_292 = arith.constant 0 : index
    %c23 = arith.constant 23 : index
    %c0_293 = arith.constant 0 : index
    %c0_294 = arith.constant 0 : index
    %1233 = vector.load %arg4[%c0_292, %c23, %c0_293, %c0_294] : memref<1x32x8x128xf32, #tpu.memory_space<vmem>>, vector<1x1x8x128xf32>
    %1234 = vector.shape_cast %1233 : vector<1x1x8x128xf32> to vector<8x128xf32>
    %1235 = vector.shape_cast %1232 : vector<8x128xf32> to vector<1x1x8x128xf32>
    tpu.vector_store %arg4[%c0_292, %c23, %c0_293, %c0_294], %1235 {strides = array<i32>} : memref<1x32x8x128xf32, #tpu.memory_space<vmem>>, vector<1x1x8x128xf32>,
    %1236 = arith.minimumf %935, %955 : vector<8x128xf32>
    %1237 = arith.minimumf %1236, %975 : vector<8x128xf32>
    %1238 = arith.minimumf %1237, %995 : vector<8x128xf32>
    %1239 = arith.minimumf %1238, %1015 : vector<8x128xf32>
    %1240 = arith.minimumf %1239, %1035 : vector<8x128xf32>
    %1241 = arith.minimumf %1240, %1055 : vector<8x128xf32>
    %1242 = arith.minimumf %1241, %1075 : vector<8x128xf32>
    %c7_i32_295 = arith.constant 7 : i32
    %1243 = vector.broadcast %c7_i32_295 : i32 to vector<8x128xi32>
    %1244 = arith.cmpf oeq, %1055, %1242 : vector<8x128xf32>
    %c6_i32_296 = arith.constant 6 : i32
    %1245 = vector.broadcast %c6_i32_296 : i32 to vector<8x128xi32>
    %1246 = arith.select %1244, %1245, %1243 : vector<8x128xi1>, vector<8x128xi32>
    %1247 = arith.cmpf oeq, %1035, %1242 : vector<8x128xf32>
    %c5_i32_297 = arith.constant 5 : i32
    %1248 = vector.broadcast %c5_i32_297 : i32 to vector<8x128xi32>
    %1249 = arith.select %1247, %1248, %1246 : vector<8x128xi1>, vector<8x128xi32>
    %1250 = arith.cmpf oeq, %1015, %1242 : vector<8x128xf32>
    %c4_i32_298 = arith.constant 4 : i32
    %1251 = vector.broadcast %c4_i32_298 : i32 to vector<8x128xi32>
    %1252 = arith.select %1250, %1251, %1249 : vector<8x128xi1>, vector<8x128xi32>
    %1253 = arith.cmpf oeq, %995, %1242 : vector<8x128xf32>
    %c3_i32_299 = arith.constant 3 : i32
    %1254 = vector.broadcast %c3_i32_299 : i32 to vector<8x128xi32>
    %1255 = arith.select %1253, %1254, %1252 : vector<8x128xi1>, vector<8x128xi32>
    %1256 = arith.cmpf oeq, %975, %1242 : vector<8x128xf32>
    %c2_i32_300 = arith.constant 2 : i32
    %1257 = vector.broadcast %c2_i32_300 : i32 to vector<8x128xi32>
    %1258 = arith.select %1256, %1257, %1255 : vector<8x128xi1>, vector<8x128xi32>
    %1259 = arith.cmpf oeq, %955, %1242 : vector<8x128xf32>
    %c1_i32_301 = arith.constant 1 : i32
    %1260 = vector.broadcast %c1_i32_301 : i32 to vector<8x128xi32>
    %1261 = arith.select %1259, %1260, %1258 : vector<8x128xi1>, vector<8x128xi32>
    %1262 = arith.cmpf oeq, %935, %1242 : vector<8x128xf32>
    %c0_i32_302 = arith.constant 0 : i32
    %1263 = vector.broadcast %c0_i32_302 : i32 to vector<8x128xi32>
    %1264 = arith.select %1262, %1263, %1261 : vector<8x128xi1>, vector<8x128xi32>
    %cst_303 = arith.constant 0.000000e+00 : f32
    %1265 = vector.broadcast %cst_303 : f32 to vector<8x128xf32>
    %cst_304 = arith.constant 0.000000e+00 : f32
    %1266 = vector.broadcast %cst_304 : f32 to vector<8x128xf32>
    %cst_305 = arith.constant 0.000000e+00 : f32
    %1267 = vector.broadcast %cst_305 : f32 to vector<8x128xf32>
    %cst_306 = arith.constant 0.000000e+00 : f32
    %1268 = vector.broadcast %cst_306 : f32 to vector<8x128xf32>
    %c0_i32_307 = arith.constant 0 : i32
    %1269 = vector.broadcast %c0_i32_307 : i32 to vector<8x128xi32>
    %1270 = arith.cmpi eq, %1264, %1269 : vector<8x128xi32>
    %1271 = vector.extract_strided_slice %42 {offsets = [0, 0], sizes = [1, 128], strides = [1, 1]} : vector<8x128xf32> to vector<1x128xf32>
    %1272 = vector.shape_cast %1271 : vector<1x128xf32> to vector<1x128xf32>
    %1273 = vector.broadcast %1272 : vector<1x128xf32> to vector<8x128xf32>
    %1274 = arith.select %1270, %1273, %1265 : vector<8x128xi1>, vector<8x128xf32>
    %1275 = vector.extract_strided_slice %44 {offsets = [0, 0], sizes = [1, 128], strides = [1, 1]} : vector<8x128xf32> to vector<1x128xf32>
    %1276 = vector.shape_cast %1275 : vector<1x128xf32> to vector<1x128xf32>
    %1277 = vector.broadcast %1276 : vector<1x128xf32> to vector<8x128xf32>
    %1278 = arith.select %1270, %1277, %1266 : vector<8x128xi1>, vector<8x128xf32>
    %1279 = vector.extract_strided_slice %46 {offsets = [0, 0], sizes = [1, 128], strides = [1, 1]} : vector<8x128xf32> to vector<1x128xf32>
    %1280 = vector.shape_cast %1279 : vector<1x128xf32> to vector<1x128xf32>
    %1281 = vector.broadcast %1280 : vector<1x128xf32> to vector<8x128xf32>
    %1282 = arith.select %1270, %1281, %1267 : vector<8x128xi1>, vector<8x128xf32>
    %1283 = vector.extract_strided_slice %48 {offsets = [0, 0], sizes = [1, 128], strides = [1, 1]} : vector<8x128xf32> to vector<1x128xf32>
    %1284 = vector.shape_cast %1283 : vector<1x128xf32> to vector<1x128xf32>
    %1285 = vector.broadcast %1284 : vector<1x128xf32> to vector<8x128xf32>
    %1286 = arith.select %1270, %1285, %1268 : vector<8x128xi1>, vector<8x128xf32>
    %c1_i32_308 = arith.constant 1 : i32
    %1287 = vector.broadcast %c1_i32_308 : i32 to vector<8x128xi32>
    %1288 = arith.cmpi eq, %1264, %1287 : vector<8x128xi32>
    %1289 = vector.extract_strided_slice %42 {offsets = [1, 0], sizes = [1, 128], strides = [1, 1]} : vector<8x128xf32> to vector<1x128xf32>
    %1290 = vector.shape_cast %1289 : vector<1x128xf32> to vector<1x128xf32>
    %1291 = vector.broadcast %1290 : vector<1x128xf32> to vector<8x128xf32>
    %1292 = arith.select %1288, %1291, %1274 : vector<8x128xi1>, vector<8x128xf32>
    %1293 = vector.extract_strided_slice %44 {offsets = [1, 0], sizes = [1, 128], strides = [1, 1]} : vector<8x128xf32> to vector<1x128xf32>
    %1294 = vector.shape_cast %1293 : vector<1x128xf32> to vector<1x128xf32>
    %1295 = vector.broadcast %1294 : vector<1x128xf32> to vector<8x128xf32>
    %1296 = arith.select %1288, %1295, %1278 : vector<8x128xi1>, vector<8x128xf32>
    %1297 = vector.extract_strided_slice %46 {offsets = [1, 0], sizes = [1, 128], strides = [1, 1]} : vector<8x128xf32> to vector<1x128xf32>
    %1298 = vector.shape_cast %1297 : vector<1x128xf32> to vector<1x128xf32>
    %1299 = vector.broadcast %1298 : vector<1x128xf32> to vector<8x128xf32>
    %1300 = arith.select %1288, %1299, %1282 : vector<8x128xi1>, vector<8x128xf32>
    %1301 = vector.extract_strided_slice %48 {offsets = [1, 0], sizes = [1, 128], strides = [1, 1]} : vector<8x128xf32> to vector<1x128xf32>
    %1302 = vector.shape_cast %1301 : vector<1x128xf32> to vector<1x128xf32>
    %1303 = vector.broadcast %1302 : vector<1x128xf32> to vector<8x128xf32>
    %1304 = arith.select %1288, %1303, %1286 : vector<8x128xi1>, vector<8x128xf32>
    %c2_i32_309 = arith.constant 2 : i32
    %1305 = vector.broadcast %c2_i32_309 : i32 to vector<8x128xi32>
    %1306 = arith.cmpi eq, %1264, %1305 : vector<8x128xi32>
    %1307 = vector.extract_strided_slice %42 {offsets = [2, 0], sizes = [1, 128], strides = [1, 1]} : vector<8x128xf32> to vector<1x128xf32>
    %1308 = vector.shape_cast %1307 : vector<1x128xf32> to vector<1x128xf32>
    %1309 = vector.broadcast %1308 : vector<1x128xf32> to vector<8x128xf32>
    %1310 = arith.select %1306, %1309, %1292 : vector<8x128xi1>, vector<8x128xf32>
    %1311 = vector.extract_strided_slice %44 {offsets = [2, 0], sizes = [1, 128], strides = [1, 1]} : vector<8x128xf32> to vector<1x128xf32>
    %1312 = vector.shape_cast %1311 : vector<1x128xf32> to vector<1x128xf32>
    %1313 = vector.broadcast %1312 : vector<1x128xf32> to vector<8x128xf32>
    %1314 = arith.select %1306, %1313, %1296 : vector<8x128xi1>, vector<8x128xf32>
    %1315 = vector.extract_strided_slice %46 {offsets = [2, 0], sizes = [1, 128], strides = [1, 1]} : vector<8x128xf32> to vector<1x128xf32>
    %1316 = vector.shape_cast %1315 : vector<1x128xf32> to vector<1x128xf32>
    %1317 = vector.broadcast %1316 : vector<1x128xf32> to vector<8x128xf32>
    %1318 = arith.select %1306, %1317, %1300 : vector<8x128xi1>, vector<8x128xf32>
    %1319 = vector.extract_strided_slice %48 {offsets = [2, 0], sizes = [1, 128], strides = [1, 1]} : vector<8x128xf32> to vector<1x128xf32>
    %1320 = vector.shape_cast %1319 : vector<1x128xf32> to vector<1x128xf32>
    %1321 = vector.broadcast %1320 : vector<1x128xf32> to vector<8x128xf32>
    %1322 = arith.select %1306, %1321, %1304 : vector<8x128xi1>, vector<8x128xf32>
    %c3_i32_310 = arith.constant 3 : i32
    %1323 = vector.broadcast %c3_i32_310 : i32 to vector<8x128xi32>
    %1324 = arith.cmpi eq, %1264, %1323 : vector<8x128xi32>
    %1325 = vector.extract_strided_slice %42 {offsets = [3, 0], sizes = [1, 128], strides = [1, 1]} : vector<8x128xf32> to vector<1x128xf32>
    %1326 = vector.shape_cast %1325 : vector<1x128xf32> to vector<1x128xf32>
    %1327 = vector.broadcast %1326 : vector<1x128xf32> to vector<8x128xf32>
    %1328 = arith.select %1324, %1327, %1310 : vector<8x128xi1>, vector<8x128xf32>
    %1329 = vector.extract_strided_slice %44 {offsets = [3, 0], sizes = [1, 128], strides = [1, 1]} : vector<8x128xf32> to vector<1x128xf32>
    %1330 = vector.shape_cast %1329 : vector<1x128xf32> to vector<1x128xf32>
    %1331 = vector.broadcast %1330 : vector<1x128xf32> to vector<8x128xf32>
    %1332 = arith.select %1324, %1331, %1314 : vector<8x128xi1>, vector<8x128xf32>
    %1333 = vector.extract_strided_slice %46 {offsets = [3, 0], sizes = [1, 128], strides = [1, 1]} : vector<8x128xf32> to vector<1x128xf32>
    %1334 = vector.shape_cast %1333 : vector<1x128xf32> to vector<1x128xf32>
    %1335 = vector.broadcast %1334 : vector<1x128xf32> to vector<8x128xf32>
    %1336 = arith.select %1324, %1335, %1318 : vector<8x128xi1>, vector<8x128xf32>
    %1337 = vector.extract_strided_slice %48 {offsets = [3, 0], sizes = [1, 128], strides = [1, 1]} : vector<8x128xf32> to vector<1x128xf32>
    %1338 = vector.shape_cast %1337 : vector<1x128xf32> to vector<1x128xf32>
    %1339 = vector.broadcast %1338 : vector<1x128xf32> to vector<8x128xf32>
    %1340 = arith.select %1324, %1339, %1322 : vector<8x128xi1>, vector<8x128xf32>
    %c4_i32_311 = arith.constant 4 : i32
    %1341 = vector.broadcast %c4_i32_311 : i32 to vector<8x128xi32>
    %1342 = arith.cmpi eq, %1264, %1341 : vector<8x128xi32>
    %1343 = vector.extract_strided_slice %42 {offsets = [4, 0], sizes = [1, 128], strides = [1, 1]} : vector<8x128xf32> to vector<1x128xf32>
    %1344 = vector.shape_cast %1343 : vector<1x128xf32> to vector<1x128xf32>
    %1345 = vector.broadcast %1344 : vector<1x128xf32> to vector<8x128xf32>
    %1346 = arith.select %1342, %1345, %1328 : vector<8x128xi1>, vector<8x128xf32>
    %1347 = vector.extract_strided_slice %44 {offsets = [4, 0], sizes = [1, 128], strides = [1, 1]} : vector<8x128xf32> to vector<1x128xf32>
    %1348 = vector.shape_cast %1347 : vector<1x128xf32> to vector<1x128xf32>
    %1349 = vector.broadcast %1348 : vector<1x128xf32> to vector<8x128xf32>
    %1350 = arith.select %1342, %1349, %1332 : vector<8x128xi1>, vector<8x128xf32>
    %1351 = vector.extract_strided_slice %46 {offsets = [4, 0], sizes = [1, 128], strides = [1, 1]} : vector<8x128xf32> to vector<1x128xf32>
    %1352 = vector.shape_cast %1351 : vector<1x128xf32> to vector<1x128xf32>
    %1353 = vector.broadcast %1352 : vector<1x128xf32> to vector<8x128xf32>
    %1354 = arith.select %1342, %1353, %1336 : vector<8x128xi1>, vector<8x128xf32>
    %1355 = vector.extract_strided_slice %48 {offsets = [4, 0], sizes = [1, 128], strides = [1, 1]} : vector<8x128xf32> to vector<1x128xf32>
    %1356 = vector.shape_cast %1355 : vector<1x128xf32> to vector<1x128xf32>
    %1357 = vector.broadcast %1356 : vector<1x128xf32> to vector<8x128xf32>
    %1358 = arith.select %1342, %1357, %1340 : vector<8x128xi1>, vector<8x128xf32>
    %c5_i32_312 = arith.constant 5 : i32
    %1359 = vector.broadcast %c5_i32_312 : i32 to vector<8x128xi32>
    %1360 = arith.cmpi eq, %1264, %1359 : vector<8x128xi32>
    %1361 = vector.extract_strided_slice %42 {offsets = [5, 0], sizes = [1, 128], strides = [1, 1]} : vector<8x128xf32> to vector<1x128xf32>
    %1362 = vector.shape_cast %1361 : vector<1x128xf32> to vector<1x128xf32>
    %1363 = vector.broadcast %1362 : vector<1x128xf32> to vector<8x128xf32>
    %1364 = arith.select %1360, %1363, %1346 : vector<8x128xi1>, vector<8x128xf32>
    %1365 = vector.extract_strided_slice %44 {offsets = [5, 0], sizes = [1, 128], strides = [1, 1]} : vector<8x128xf32> to vector<1x128xf32>
    %1366 = vector.shape_cast %1365 : vector<1x128xf32> to vector<1x128xf32>
    %1367 = vector.broadcast %1366 : vector<1x128xf32> to vector<8x128xf32>
    %1368 = arith.select %1360, %1367, %1350 : vector<8x128xi1>, vector<8x128xf32>
    %1369 = vector.extract_strided_slice %46 {offsets = [5, 0], sizes = [1, 128], strides = [1, 1]} : vector<8x128xf32> to vector<1x128xf32>
    %1370 = vector.shape_cast %1369 : vector<1x128xf32> to vector<1x128xf32>
    %1371 = vector.broadcast %1370 : vector<1x128xf32> to vector<8x128xf32>
    %1372 = arith.select %1360, %1371, %1354 : vector<8x128xi1>, vector<8x128xf32>
    %1373 = vector.extract_strided_slice %48 {offsets = [5, 0], sizes = [1, 128], strides = [1, 1]} : vector<8x128xf32> to vector<1x128xf32>
    %1374 = vector.shape_cast %1373 : vector<1x128xf32> to vector<1x128xf32>
    %1375 = vector.broadcast %1374 : vector<1x128xf32> to vector<8x128xf32>
    %1376 = arith.select %1360, %1375, %1358 : vector<8x128xi1>, vector<8x128xf32>
    %c6_i32_313 = arith.constant 6 : i32
    %1377 = vector.broadcast %c6_i32_313 : i32 to vector<8x128xi32>
    %1378 = arith.cmpi eq, %1264, %1377 : vector<8x128xi32>
    %1379 = vector.extract_strided_slice %42 {offsets = [6, 0], sizes = [1, 128], strides = [1, 1]} : vector<8x128xf32> to vector<1x128xf32>
    %1380 = vector.shape_cast %1379 : vector<1x128xf32> to vector<1x128xf32>
    %1381 = vector.broadcast %1380 : vector<1x128xf32> to vector<8x128xf32>
    %1382 = arith.select %1378, %1381, %1364 : vector<8x128xi1>, vector<8x128xf32>
    %1383 = vector.extract_strided_slice %44 {offsets = [6, 0], sizes = [1, 128], strides = [1, 1]} : vector<8x128xf32> to vector<1x128xf32>
    %1384 = vector.shape_cast %1383 : vector<1x128xf32> to vector<1x128xf32>
    %1385 = vector.broadcast %1384 : vector<1x128xf32> to vector<8x128xf32>
    %1386 = arith.select %1378, %1385, %1368 : vector<8x128xi1>, vector<8x128xf32>
    %1387 = vector.extract_strided_slice %46 {offsets = [6, 0], sizes = [1, 128], strides = [1, 1]} : vector<8x128xf32> to vector<1x128xf32>
    %1388 = vector.shape_cast %1387 : vector<1x128xf32> to vector<1x128xf32>
    %1389 = vector.broadcast %1388 : vector<1x128xf32> to vector<8x128xf32>
    %1390 = arith.select %1378, %1389, %1372 : vector<8x128xi1>, vector<8x128xf32>
    %1391 = vector.extract_strided_slice %48 {offsets = [6, 0], sizes = [1, 128], strides = [1, 1]} : vector<8x128xf32> to vector<1x128xf32>
    %1392 = vector.shape_cast %1391 : vector<1x128xf32> to vector<1x128xf32>
    %1393 = vector.broadcast %1392 : vector<1x128xf32> to vector<8x128xf32>
    %1394 = arith.select %1378, %1393, %1376 : vector<8x128xi1>, vector<8x128xf32>
    %c7_i32_314 = arith.constant 7 : i32
    %1395 = vector.broadcast %c7_i32_314 : i32 to vector<8x128xi32>
    %1396 = arith.cmpi eq, %1264, %1395 : vector<8x128xi32>
    %1397 = vector.extract_strided_slice %42 {offsets = [7, 0], sizes = [1, 128], strides = [1, 1]} : vector<8x128xf32> to vector<1x128xf32>
    %1398 = vector.shape_cast %1397 : vector<1x128xf32> to vector<1x128xf32>
    %1399 = vector.broadcast %1398 : vector<1x128xf32> to vector<8x128xf32>
    %1400 = arith.select %1396, %1399, %1382 : vector<8x128xi1>, vector<8x128xf32>
    %1401 = vector.extract_strided_slice %44 {offsets = [7, 0], sizes = [1, 128], strides = [1, 1]} : vector<8x128xf32> to vector<1x128xf32>
    %1402 = vector.shape_cast %1401 : vector<1x128xf32> to vector<1x128xf32>
    %1403 = vector.broadcast %1402 : vector<1x128xf32> to vector<8x128xf32>
    %1404 = arith.select %1396, %1403, %1386 : vector<8x128xi1>, vector<8x128xf32>
    %1405 = vector.extract_strided_slice %46 {offsets = [7, 0], sizes = [1, 128], strides = [1, 1]} : vector<8x128xf32> to vector<1x128xf32>
    %1406 = vector.shape_cast %1405 : vector<1x128xf32> to vector<1x128xf32>
    %1407 = vector.broadcast %1406 : vector<1x128xf32> to vector<8x128xf32>
    %1408 = arith.select %1396, %1407, %1390 : vector<8x128xi1>, vector<8x128xf32>
    %1409 = vector.extract_strided_slice %48 {offsets = [7, 0], sizes = [1, 128], strides = [1, 1]} : vector<8x128xf32> to vector<1x128xf32>
    %1410 = vector.shape_cast %1409 : vector<1x128xf32> to vector<1x128xf32>
    %1411 = vector.broadcast %1410 : vector<1x128xf32> to vector<8x128xf32>
    %1412 = arith.select %1396, %1411, %1394 : vector<8x128xi1>, vector<8x128xf32>
    %1413 = arith.subf %1400, %42 : vector<8x128xf32>
    %1414 = arith.subf %1404, %44 : vector<8x128xf32>
    %1415 = arith.subf %1408, %46 : vector<8x128xf32>
    %1416 = arith.subf %1412, %48 : vector<8x128xf32>
    %1417 = arith.cmpf one, %1413, %1413 : vector<8x128xf32>
    %cst_315 = arith.constant 0.000000e+00 : f32
    %1418 = vector.broadcast %cst_315 : f32 to vector<8x128xf32>
    %1419 = arith.select %1417, %1418, %1413 : vector<8x128xi1>, vector<8x128xf32>
    %1420 = arith.cmpf one, %1414, %1414 : vector<8x128xf32>
    %cst_316 = arith.constant 0.000000e+00 : f32
    %1421 = vector.broadcast %cst_316 : f32 to vector<8x128xf32>
    %1422 = arith.select %1420, %1421, %1414 : vector<8x128xi1>, vector<8x128xf32>
    %1423 = arith.cmpf one, %1415, %1415 : vector<8x128xf32>
    %cst_317 = arith.constant 0.000000e+00 : f32
    %1424 = vector.broadcast %cst_317 : f32 to vector<8x128xf32>
    %1425 = arith.select %1423, %1424, %1415 : vector<8x128xi1>, vector<8x128xf32>
    %1426 = arith.cmpf one, %1416, %1416 : vector<8x128xf32>
    %cst_318 = arith.constant 0.000000e+00 : f32
    %1427 = vector.broadcast %cst_318 : f32 to vector<8x128xf32>
    %1428 = arith.select %1426, %1427, %1416 : vector<8x128xi1>, vector<8x128xf32>
    %1429 = vector.broadcast %0 : f32 to vector<8x128xf32>
    %1430 = arith.mulf %1419, %1429 : vector<8x128xf32>
    %1431 = vector.broadcast %8 : f32 to vector<8x128xf32>
    %1432 = arith.mulf %1422, %1431 : vector<8x128xf32>
    %1433 = arith.addf %1430, %1432 : vector<8x128xf32>
    %1434 = vector.broadcast %16 : f32 to vector<8x128xf32>
    %1435 = arith.mulf %1425, %1434 : vector<8x128xf32>
    %1436 = arith.addf %1433, %1435 : vector<8x128xf32>
    %1437 = vector.broadcast %24 : f32 to vector<8x128xf32>
    %1438 = arith.mulf %1428, %1437 : vector<8x128xf32>
    %1439 = arith.addf %1436, %1438 : vector<8x128xf32>
    %1440 = vector.broadcast %32 : f32 to vector<8x128xf32>
    %1441 = arith.addf %1439, %1440 : vector<8x128xf32>
    %cst_319 = arith.constant 0.000000e+00 : f32
    %1442 = vector.broadcast %cst_319 : f32 to vector<8x128xf32>
    %1443 = arith.maximumf %1441, %1442 : vector<8x128xf32>
    %c0_320 = arith.constant 0 : index
    %c24 = arith.constant 24 : index
    %c0_321 = arith.constant 0 : index
    %c0_322 = arith.constant 0 : index
    %1444 = vector.load %arg4[%c0_320, %c24, %c0_321, %c0_322] : memref<1x32x8x128xf32, #tpu.memory_space<vmem>>, vector<1x1x8x128xf32>
    %1445 = vector.shape_cast %1444 : vector<1x1x8x128xf32> to vector<8x128xf32>
    %1446 = vector.shape_cast %1443 : vector<8x128xf32> to vector<1x1x8x128xf32>
    tpu.vector_store %arg4[%c0_320, %c24, %c0_321, %c0_322], %1446 {strides = array<i32>} : memref<1x32x8x128xf32, #tpu.memory_space<vmem>>, vector<1x1x8x128xf32>,
    %1447 = vector.broadcast %1 : f32 to vector<8x128xf32>
    %1448 = arith.mulf %1419, %1447 : vector<8x128xf32>
    %1449 = vector.broadcast %9 : f32 to vector<8x128xf32>
    %1450 = arith.mulf %1422, %1449 : vector<8x128xf32>
    %1451 = arith.addf %1448, %1450 : vector<8x128xf32>
    %1452 = vector.broadcast %17 : f32 to vector<8x128xf32>
    %1453 = arith.mulf %1425, %1452 : vector<8x128xf32>
    %1454 = arith.addf %1451, %1453 : vector<8x128xf32>
    %1455 = vector.broadcast %25 : f32 to vector<8x128xf32>
    %1456 = arith.mulf %1428, %1455 : vector<8x128xf32>
    %1457 = arith.addf %1454, %1456 : vector<8x128xf32>
    %1458 = vector.broadcast %33 : f32 to vector<8x128xf32>
    %1459 = arith.addf %1457, %1458 : vector<8x128xf32>
    %cst_323 = arith.constant 0.000000e+00 : f32
    %1460 = vector.broadcast %cst_323 : f32 to vector<8x128xf32>
    %1461 = arith.maximumf %1459, %1460 : vector<8x128xf32>
    %c0_324 = arith.constant 0 : index
    %c25 = arith.constant 25 : index
    %c0_325 = arith.constant 0 : index
    %c0_326 = arith.constant 0 : index
    %1462 = vector.load %arg4[%c0_324, %c25, %c0_325, %c0_326] : memref<1x32x8x128xf32, #tpu.memory_space<vmem>>, vector<1x1x8x128xf32>
    %1463 = vector.shape_cast %1462 : vector<1x1x8x128xf32> to vector<8x128xf32>
    %1464 = vector.shape_cast %1461 : vector<8x128xf32> to vector<1x1x8x128xf32>
    tpu.vector_store %arg4[%c0_324, %c25, %c0_325, %c0_326], %1464 {strides = array<i32>} : memref<1x32x8x128xf32, #tpu.memory_space<vmem>>, vector<1x1x8x128xf32>,
    %1465 = vector.broadcast %2 : f32 to vector<8x128xf32>
    %1466 = arith.mulf %1419, %1465 : vector<8x128xf32>
    %1467 = vector.broadcast %10 : f32 to vector<8x128xf32>
    %1468 = arith.mulf %1422, %1467 : vector<8x128xf32>
    %1469 = arith.addf %1466, %1468 : vector<8x128xf32>
    %1470 = vector.broadcast %18 : f32 to vector<8x128xf32>
    %1471 = arith.mulf %1425, %1470 : vector<8x128xf32>
    %1472 = arith.addf %1469, %1471 : vector<8x128xf32>
    %1473 = vector.broadcast %26 : f32 to vector<8x128xf32>
    %1474 = arith.mulf %1428, %1473 : vector<8x128xf32>
    %1475 = arith.addf %1472, %1474 : vector<8x128xf32>
    %1476 = vector.broadcast %34 : f32 to vector<8x128xf32>
    %1477 = arith.addf %1475, %1476 : vector<8x128xf32>
    %cst_327 = arith.constant 0.000000e+00 : f32
    %1478 = vector.broadcast %cst_327 : f32 to vector<8x128xf32>
    %1479 = arith.maximumf %1477, %1478 : vector<8x128xf32>
    %c0_328 = arith.constant 0 : index
    %c26 = arith.constant 26 : index
    %c0_329 = arith.constant 0 : index
    %c0_330 = arith.constant 0 : index
    %1480 = vector.load %arg4[%c0_328, %c26, %c0_329, %c0_330] : memref<1x32x8x128xf32, #tpu.memory_space<vmem>>, vector<1x1x8x128xf32>
    %1481 = vector.shape_cast %1480 : vector<1x1x8x128xf32> to vector<8x128xf32>
    %1482 = vector.shape_cast %1479 : vector<8x128xf32> to vector<1x1x8x128xf32>
    tpu.vector_store %arg4[%c0_328, %c26, %c0_329, %c0_330], %1482 {strides = array<i32>} : memref<1x32x8x128xf32, #tpu.memory_space<vmem>>, vector<1x1x8x128xf32>,
    %1483 = vector.broadcast %3 : f32 to vector<8x128xf32>
    %1484 = arith.mulf %1419, %1483 : vector<8x128xf32>
    %1485 = vector.broadcast %11 : f32 to vector<8x128xf32>
    %1486 = arith.mulf %1422, %1485 : vector<8x128xf32>
    %1487 = arith.addf %1484, %1486 : vector<8x128xf32>
    %1488 = vector.broadcast %19 : f32 to vector<8x128xf32>
    %1489 = arith.mulf %1425, %1488 : vector<8x128xf32>
    %1490 = arith.addf %1487, %1489 : vector<8x128xf32>
    %1491 = vector.broadcast %27 : f32 to vector<8x128xf32>
    %1492 = arith.mulf %1428, %1491 : vector<8x128xf32>
    %1493 = arith.addf %1490, %1492 : vector<8x128xf32>
    %1494 = vector.broadcast %35 : f32 to vector<8x128xf32>
    %1495 = arith.addf %1493, %1494 : vector<8x128xf32>
    %cst_331 = arith.constant 0.000000e+00 : f32
    %1496 = vector.broadcast %cst_331 : f32 to vector<8x128xf32>
    %1497 = arith.maximumf %1495, %1496 : vector<8x128xf32>
    %c0_332 = arith.constant 0 : index
    %c27 = arith.constant 27 : index
    %c0_333 = arith.constant 0 : index
    %c0_334 = arith.constant 0 : index
    %1498 = vector.load %arg4[%c0_332, %c27, %c0_333, %c0_334] : memref<1x32x8x128xf32, #tpu.memory_space<vmem>>, vector<1x1x8x128xf32>
    %1499 = vector.shape_cast %1498 : vector<1x1x8x128xf32> to vector<8x128xf32>
    %1500 = vector.shape_cast %1497 : vector<8x128xf32> to vector<1x1x8x128xf32>
    tpu.vector_store %arg4[%c0_332, %c27, %c0_333, %c0_334], %1500 {strides = array<i32>} : memref<1x32x8x128xf32, #tpu.memory_space<vmem>>, vector<1x1x8x128xf32>,
    %1501 = vector.broadcast %4 : f32 to vector<8x128xf32>
    %1502 = arith.mulf %1419, %1501 : vector<8x128xf32>
    %1503 = vector.broadcast %12 : f32 to vector<8x128xf32>
    %1504 = arith.mulf %1422, %1503 : vector<8x128xf32>
    %1505 = arith.addf %1502, %1504 : vector<8x128xf32>
    %1506 = vector.broadcast %20 : f32 to vector<8x128xf32>
    %1507 = arith.mulf %1425, %1506 : vector<8x128xf32>
    %1508 = arith.addf %1505, %1507 : vector<8x128xf32>
    %1509 = vector.broadcast %28 : f32 to vector<8x128xf32>
    %1510 = arith.mulf %1428, %1509 : vector<8x128xf32>
    %1511 = arith.addf %1508, %1510 : vector<8x128xf32>
    %1512 = vector.broadcast %36 : f32 to vector<8x128xf32>
    %1513 = arith.addf %1511, %1512 : vector<8x128xf32>
    %cst_335 = arith.constant 0.000000e+00 : f32
    %1514 = vector.broadcast %cst_335 : f32 to vector<8x128xf32>
    %1515 = arith.maximumf %1513, %1514 : vector<8x128xf32>
    %c0_336 = arith.constant 0 : index
    %c28 = arith.constant 28 : index
    %c0_337 = arith.constant 0 : index
    %c0_338 = arith.constant 0 : index
    %1516 = vector.load %arg4[%c0_336, %c28, %c0_337, %c0_338] : memref<1x32x8x128xf32, #tpu.memory_space<vmem>>, vector<1x1x8x128xf32>
    %1517 = vector.shape_cast %1516 : vector<1x1x8x128xf32> to vector<8x128xf32>
    %1518 = vector.shape_cast %1515 : vector<8x128xf32> to vector<1x1x8x128xf32>
    tpu.vector_store %arg4[%c0_336, %c28, %c0_337, %c0_338], %1518 {strides = array<i32>} : memref<1x32x8x128xf32, #tpu.memory_space<vmem>>, vector<1x1x8x128xf32>,
    %1519 = vector.broadcast %5 : f32 to vector<8x128xf32>
    %1520 = arith.mulf %1419, %1519 : vector<8x128xf32>
    %1521 = vector.broadcast %13 : f32 to vector<8x128xf32>
    %1522 = arith.mulf %1422, %1521 : vector<8x128xf32>
    %1523 = arith.addf %1520, %1522 : vector<8x128xf32>
    %1524 = vector.broadcast %21 : f32 to vector<8x128xf32>
    %1525 = arith.mulf %1425, %1524 : vector<8x128xf32>
    %1526 = arith.addf %1523, %1525 : vector<8x128xf32>
    %1527 = vector.broadcast %29 : f32 to vector<8x128xf32>
    %1528 = arith.mulf %1428, %1527 : vector<8x128xf32>
    %1529 = arith.addf %1526, %1528 : vector<8x128xf32>
    %1530 = vector.broadcast %37 : f32 to vector<8x128xf32>
    %1531 = arith.addf %1529, %1530 : vector<8x128xf32>
    %cst_339 = arith.constant 0.000000e+00 : f32
    %1532 = vector.broadcast %cst_339 : f32 to vector<8x128xf32>
    %1533 = arith.maximumf %1531, %1532 : vector<8x128xf32>
    %c0_340 = arith.constant 0 : index
    %c29 = arith.constant 29 : index
    %c0_341 = arith.constant 0 : index
    %c0_342 = arith.constant 0 : index
    %1534 = vector.load %arg4[%c0_340, %c29, %c0_341, %c0_342] : memref<1x32x8x128xf32, #tpu.memory_space<vmem>>, vector<1x1x8x128xf32>
    %1535 = vector.shape_cast %1534 : vector<1x1x8x128xf32> to vector<8x128xf32>
    %1536 = vector.shape_cast %1533 : vector<8x128xf32> to vector<1x1x8x128xf32>
    tpu.vector_store %arg4[%c0_340, %c29, %c0_341, %c0_342], %1536 {strides = array<i32>} : memref<1x32x8x128xf32, #tpu.memory_space<vmem>>, vector<1x1x8x128xf32>,
    %1537 = vector.broadcast %6 : f32 to vector<8x128xf32>
    %1538 = arith.mulf %1419, %1537 : vector<8x128xf32>
    %1539 = vector.broadcast %14 : f32 to vector<8x128xf32>
    %1540 = arith.mulf %1422, %1539 : vector<8x128xf32>
    %1541 = arith.addf %1538, %1540 : vector<8x128xf32>
    %1542 = vector.broadcast %22 : f32 to vector<8x128xf32>
    %1543 = arith.mulf %1425, %1542 : vector<8x128xf32>
    %1544 = arith.addf %1541, %1543 : vector<8x128xf32>
    %1545 = vector.broadcast %30 : f32 to vector<8x128xf32>
    %1546 = arith.mulf %1428, %1545 : vector<8x128xf32>
    %1547 = arith.addf %1544, %1546 : vector<8x128xf32>
    %1548 = vector.broadcast %38 : f32 to vector<8x128xf32>
    %1549 = arith.addf %1547, %1548 : vector<8x128xf32>
    %cst_343 = arith.constant 0.000000e+00 : f32
    %1550 = vector.broadcast %cst_343 : f32 to vector<8x128xf32>
    %1551 = arith.maximumf %1549, %1550 : vector<8x128xf32>
    %c0_344 = arith.constant 0 : index
    %c30 = arith.constant 30 : index
    %c0_345 = arith.constant 0 : index
    %c0_346 = arith.constant 0 : index
    %1552 = vector.load %arg4[%c0_344, %c30, %c0_345, %c0_346] : memref<1x32x8x128xf32, #tpu.memory_space<vmem>>, vector<1x1x8x128xf32>
    %1553 = vector.shape_cast %1552 : vector<1x1x8x128xf32> to vector<8x128xf32>
    %1554 = vector.shape_cast %1551 : vector<8x128xf32> to vector<1x1x8x128xf32>
    tpu.vector_store %arg4[%c0_344, %c30, %c0_345, %c0_346], %1554 {strides = array<i32>} : memref<1x32x8x128xf32, #tpu.memory_space<vmem>>, vector<1x1x8x128xf32>,
    %1555 = vector.broadcast %7 : f32 to vector<8x128xf32>
    %1556 = arith.mulf %1419, %1555 : vector<8x128xf32>
    %1557 = vector.broadcast %15 : f32 to vector<8x128xf32>
    %1558 = arith.mulf %1422, %1557 : vector<8x128xf32>
    %1559 = arith.addf %1556, %1558 : vector<8x128xf32>
    %1560 = vector.broadcast %23 : f32 to vector<8x128xf32>
    %1561 = arith.mulf %1425, %1560 : vector<8x128xf32>
    %1562 = arith.addf %1559, %1561 : vector<8x128xf32>
    %1563 = vector.broadcast %31 : f32 to vector<8x128xf32>
    %1564 = arith.mulf %1428, %1563 : vector<8x128xf32>
    %1565 = arith.addf %1562, %1564 : vector<8x128xf32>
    %1566 = vector.broadcast %39 : f32 to vector<8x128xf32>
    %1567 = arith.addf %1565, %1566 : vector<8x128xf32>
    %cst_347 = arith.constant 0.000000e+00 : f32
    %1568 = vector.broadcast %cst_347 : f32 to vector<8x128xf32>
    %1569 = arith.maximumf %1567, %1568 : vector<8x128xf32>
    %c0_348 = arith.constant 0 : index
    %c31 = arith.constant 31 : index
    %c0_349 = arith.constant 0 : index
    %c0_350 = arith.constant 0 : index
    %1570 = vector.load %arg4[%c0_348, %c31, %c0_349, %c0_350] : memref<1x32x8x128xf32, #tpu.memory_space<vmem>>, vector<1x1x8x128xf32>
    %1571 = vector.shape_cast %1570 : vector<1x1x8x128xf32> to vector<8x128xf32>
    %1572 = vector.shape_cast %1569 : vector<8x128xf32> to vector<1x1x8x128xf32>
    tpu.vector_store %arg4[%c0_348, %c31, %c0_349, %c0_350], %1572 {strides = array<i32>} : memref<1x32x8x128xf32, #tpu.memory_space<vmem>>, vector<1x1x8x128xf32>,
    return
  }
  func.func @transform_0(%arg0: i32) -> (i32, i32, i32, i32) {
    %c0_i32 = arith.constant 0 : i32
    %c0_i32_0 = arith.constant 0 : i32
    %c0_i32_1 = arith.constant 0 : i32
    %c0_i32_2 = arith.constant 0 : i32
    return %arg0, %c0_i32, %c0_i32_0, %c0_i32_1 : i32, i32, i32, i32
  }
  func.func @transform_1(%arg0: i32) -> (i32, i32) {
    %c0_i32 = arith.constant 0 : i32
    %c0_i32_0 = arith.constant 0 : i32
    %c0_i32_1 = arith.constant 0 : i32
    return %c0_i32, %c0_i32_0 : i32, i32
  }
  func.func @transform_2(%arg0: i32) -> i32 {
    %c0_i32 = arith.constant 0 : i32
    %c0_i32_0 = arith.constant 0 : i32
    return %c0_i32 : i32
  }
  func.func @transform_3(%arg0: i32) -> (i32, i32, i32, i32) {
    %c0_i32 = arith.constant 0 : i32
    %c0_i32_0 = arith.constant 0 : i32
    %c0_i32_1 = arith.constant 0 : i32
    %c0_i32_2 = arith.constant 0 : i32
    return %arg0, %c0_i32, %c0_i32_0, %c0_i32_1 : i32, i32, i32, i32
  }
}

</mosaic_0001>

<llo_original>
// kernel: tpu_custom_call.1
$region0: #{tpu_custom_call.1}
  #allocation0 [shape = 'u32[]', space=smem, size = 0x4, offset = 0x4, fixed_abs, tag = 'smem constant byte address 0x4 - core index']
  #allocation1 [shape = 'u32[144,128]{1,0:T(1,128)}', space=vmem, size = 0x12000, scoped, tag = 'internal scratch']
  %s0 = inlined_call_operand.hbm [shape: f32[2,4,8,128], index: 0, kind: input, shape index: {}]
  %s1 = inlined_call_operand.hbm [shape: f32[4,8], index: 1, kind: input, shape index: {}]
  %s2 = inlined_call_operand.vmem [shape: f32[8], index: 2, kind: input, shape index: {}]
  %s3 = inlined_call_operand.hbm [shape: f32[2,32,8,128], index: 3, kind: output, shape index: {}]
  %s4 = sld [smem:[#allocation0]]
  $region57: #{tpu_custom_call.1} parent=0
    _
  %s6 = ssub.s32 1, %s4
  %s7 = scalar_select 0, %s6, %s4
  $region1: #{tpu_custom_call.1} parent=0
    #allocation2 [shape = 'u8[32768]{0}', space=vmem, size = 0x8000, scoped, tag = 'input window, operand 0']
    #allocation3 [shape = 's32[2]{0}', space=sflag, size = 0x8, scoped, tag = 'scoped memory for tpu_custom_call.1']
    #allocation4 [shape = 's32[2]{0}', space=sflag, size = 0x8, scoped, tag = 'scoped memory for tpu_custom_call.1']
    #allocation5 [shape = 's32[2]{0}', space=sflag, size = 0x8, scoped, tag = 'scoped memory for tpu_custom_call.1']
    #allocation6 [shape = 's32[2]{0}', space=sflag, size = 0x8, scoped, tag = 'scoped memory for tpu_custom_call.1']
    #allocation7 [shape = 'u8[2048]{0}', space=smem, size = 0x800, scoped, tag = 'input window, operand 1, single buffered']
    #allocation8 [shape = 'u8[512]{0}', space=smem, size = 0x200, scoped, tag = 'input window, operand 2, single buffered']
    #allocation9 [shape = 'u8[262144]{0}', space=vmem, size = 0x40000, scoped, tag = 'output window, operand 0']
    %8 = vsyncpa [#allocation3], 0
    %s9 = scalar_lea.sflag [#allocation3], 1
    %10 = vsyncpa %s9, 0
    %11 = vsyncpa [#allocation5], 0
    %12 = vsyncpa [#allocation6], 0
    %13 = vsyncpa [#allocation4], 0
    %s14 = scalar_lea.sflag [#allocation4], 1
    %15 = vsyncpa %s14, 0
    loop: start=0, step=1, limit=4
    $region2: #{tpu_custom_call.1} parent=1 // loop_pre_header
      _
    $region3: #{tpu_custom_call.1} parent=1 // loop_header
      %s17 = sphi 0, %s21
      %p18 = scmp.ge.s32.totalorder %s17, 4
      %s27 = sphi 0, %s29
      %s30 = sphi 0, %s27
      %s31 = sphi 0, %s30
      %s47 = sphi 0, %s31
      %s51 = sphi 0, %s51
      %s53 = sphi 0, %s51
      %s54 = sphi 0, %s53
      %s68 = sphi 0, %s54
      %s72 = sphi 0, %s72
      %s74 = sphi 0, %s72
      %s75 = sphi 0, %s74
      %s89 = sphi 0, %s75
      %s95 = sphi 0, %s97
      %s98 = sphi 0, %s95
      %s99 = sphi 0, %s98
      %s115 = sphi 0, %s99
    $region4: #{tpu_custom_call.1} parent=1 // loop_header_branch
      %20 = sbr.rel (%p18) target = $region8
    $region5: #{tpu_custom_call.1} parent=1 // loop_body
      %s22 = ssub.s32 %s17, 1
      %s23 = ssub.s32 %s17, 2
      %s24 = sadd.s32 %s17, 1
      %s25 = ssub.s32 %s17, %s24
      %p26 = scmp.eq.s32.totalorder %s25, 0
      %s28 = sadd.s32 %s27, 1
      %s29 = scalar_select %p26, %s27, %s28
      %p32 = pneg %p26
      %p33 = scmp.eq.s32.totalorder %s17, 1
      %p34 = por %p32, %p33
      %p35 = scmp.ne.s32.totalorder %s27, %s30
      %p36 = scmp.eq.s32.totalorder %s17, 0
      %p37 = por %p35, %p36
      %p38 = scmp.ne.s32.totalorder %s27, %s30
      %p39 = scmp.eq.s32.totalorder %s22, 1
      %p40 = por %p38, %p39
      %p41 = scmp.ne.s32.totalorder %s30, %s31
      %p42 = scmp.eq.s32.totalorder %s22, 0
      %p43 = por %p41, %p42
      %p44 = scmp.ne.s32.totalorder %s30, %s31
      %p45 = scmp.eq.s32.totalorder %s23, 1
      %p46 = por %p44, %p45
      %p48 = scmp.ne.s32.totalorder %s31, %s47
      %p49 = scmp.eq.s32.totalorder %s23, 0
      %p50 = por %p48, %p49
      %s52 = sadd.s32 %s51, 1
      %p55 = scmp.eq.s32.totalorder %s17, 1
      %p56 = scmp.ne.s32.totalorder %s51, %s53
      %p57 = scmp.eq.s32.totalorder %s17, 0
      %p58 = por %p56, %p57
      %p59 = scmp.ne.s32.totalorder %s51, %s53
      %p60 = scmp.eq.s32.totalorder %s22, 1
      %p61 = por %p59, %p60
      %p62 = scmp.ne.s32.totalorder %s53, %s54
      %p63 = scmp.eq.s32.totalorder %s22, 0
      %p64 = por %p62, %p63
      %p65 = scmp.ne.s32.totalorder %s53, %s54
      %p66 = scmp.eq.s32.totalorder %s23, 1
      %p67 = por %p65, %p66
      %p69 = scmp.ne.s32.totalorder %s54, %s68
      %p70 = scmp.eq.s32.totalorder %s23, 0
      %p71 = por %p69, %p70
      %s73 = sadd.s32 %s72, 1
      %p76 = scmp.eq.s32.totalorder %s17, 1
      %p77 = scmp.ne.s32.totalorder %s72, %s74
      %p78 = scmp.eq.s32.totalorder %s17, 0
      %p79 = por %p77, %p78
      %p80 = scmp.ne.s32.totalorder %s72, %s74
      %p81 = scmp.eq.s32.totalorder %s22, 1
      %p82 = por %p80, %p81
      %p83 = scmp.ne.s32.totalorder %s74, %s75
      %p84 = scmp.eq.s32.totalorder %s22, 0
      %p85 = por %p83, %p84
      %p86 = scmp.ne.s32.totalorder %s74, %s75
      %p87 = scmp.eq.s32.totalorder %s23, 1
      %p88 = por %p86, %p87
      %p90 = scmp.ne.s32.totalorder %s75, %s89
      %p91 = scmp.eq.s32.totalorder %s23, 0
      %p92 = por %p90, %p91
      %s93 = ssub.s32 %s17, %s24
      %p94 = scmp.eq.s32.totalorder %s93, 0
      %s96 = sadd.s32 %s95, 1
      %s97 = scalar_select %p94, %s95, %s96
      %p100 = pneg %p94
      %p101 = scmp.eq.s32.totalorder %s17, 1
      %p102 = por %p100, %p101
      %p103 = scmp.ne.s32.totalorder %s95, %s98
      %p104 = scmp.eq.s32.totalorder %s17, 0
      %p105 = por %p103, %p104
      %p106 = scmp.ne.s32.totalorder %s95, %s98
      %p107 = scmp.eq.s32.totalorder %s22, 1
      %p108 = por %p106, %p107
      %p109 = scmp.ne.s32.totalorder %s98, %s99
      %p110 = scmp.eq.s32.totalorder %s22, 0
      %p111 = por %p109, %p110
      %p112 = scmp.ne.s32.totalorder %s98, %s99
      %p113 = scmp.eq.s32.totalorder %s23, 1
      %p114 = por %p112, %p113
      %p116 = scmp.ne.s32.totalorder %s99, %s115
      %p117 = scmp.eq.s32.totalorder %s23, 0
      %p118 = por %p116, %p117
      %p119 = scmp.le.s32.totalorder 1, %s17
      %p120 = scmp.lt.s32.totalorder %s17, 3
      %p121 = pnand %p119, %p120
      %p122 = pneg %p121
      // Predicated region
      $region9: #{tpu_custom_call.1} parent=5 // pred_check
        _
      $region10: #{tpu_custom_call.1} parent=5 // pred_check_branch
        %124 = sbr.rel (%p121) target = $region12
      $region11: #{tpu_custom_call.1} parent=5 // pred_region
        %s125 = ssub.s32 %s17, 1
        // Predicated region
        $region13: #{tpu_custom_call.1} parent=11 // pred_check
          %p126 = pneg %p64
        $region14: #{tpu_custom_call.1} parent=11 // pred_check_branch
          %128 = sbr.rel (%p126) target = $region16
        $region15: #{tpu_custom_call.1} parent=11 // pred_region
          %s130 = ssub.s32 64, 64
          %131 = vsyncadd [#allocation5], %s130
          %134 = dma.hbm_to_smem %s1, 64, [#allocation7], [#allocation5]
        $region16: #{tpu_custom_call.1} parent=11 // pred_fallthru
          _
        // Predicated region
        $region17: #{tpu_custom_call.1} parent=11 // pred_check
          %p135 = pneg %p85
        $region18: #{tpu_custom_call.1} parent=11 // pred_check_branch
          %137 = sbr.rel (%p135) target = $region20
        $region19: #{tpu_custom_call.1} parent=11 // pred_region
          %s139 = ssub.s32 16, 16
          %140 = vsyncadd [#allocation6], %s139
          %s142 = sshll.u32 %s2, 4
          %s143 = int_to_ptr.vmem [resolvable:$true] %s142
          %145 = dma.vmem_to_smem %s143, 16, [#allocation8], [#allocation6]
        $region20: #{tpu_custom_call.1} parent=11 // pred_fallthru
          _
      $region12: #{tpu_custom_call.1} parent=5 // pred_fallthru
        _
      %p146 = scmp.lt.s32.totalorder %s17, 2
      // Predicated region
      $region21: #{tpu_custom_call.1} parent=5 // pred_check
        %p147 = pneg %p146
      $region22: #{tpu_custom_call.1} parent=5 // pred_check_branch
        %149 = sbr.rel (%p147) target = $region24
      $region23: #{tpu_custom_call.1} parent=5 // pred_region
        // Predicated region
        $region25: #{tpu_custom_call.1} parent=23 // pred_check
          %p150 = pneg %p37
        $region26: #{tpu_custom_call.1} parent=23 // pred_check_branch
          %152 = sbr.rel (%p150) target = $region28
        $region27: #{tpu_custom_call.1} parent=23 // pred_region
          %s153 = sand.u32 %s27, 1
          %s154 = scalar_lea.sflag [#allocation3], %s153
          %s155 = sand.u32 %s27, 1
          %s156 = smul.addr %s155, 32
          %s157 = scalar_lea.vmem [#allocation2], %s156
          %s159 = ssub.s32 512, 512
          %160 = vsyncadd %s154, %s159
          %s161 = smul.addr %s17, 4
          %s162 = smul.addr %s161, 128
          %s163 = scalar_lea.hbm %s0, %s162
          %s164 = sshll.u32 %s157, 4
          %s165 = int_to_ptr.vmem [resolvable:$true] %s164
          %170 = dma.hbm_to_vmem [thread:$0]  %s163, 512, %s165, %s154, 128, 128, 8
        $region28: #{tpu_custom_call.1} parent=23 // pred_fallthru
          _
      $region24: #{tpu_custom_call.1} parent=5 // pred_fallthru
        _
      %p171 = scmp.le.s32.totalorder 1, %s17
      %p172 = scmp.lt.s32.totalorder %s17, 3
      %p173 = pnand %p171, %p172
      %p174 = pneg %p173
      // Predicated region
      $region29: #{tpu_custom_call.1} parent=5 // pred_check
        _
      $region30: #{tpu_custom_call.1} parent=5 // pred_check_branch
        %176 = sbr.rel (%p173) target = $region32
      $region31: #{tpu_custom_call.1} parent=5 // pred_region
        %s177 = ssub.s32 %s17, 1
        %s178 = sand.u32 %s30, 1
        %s179 = scalar_lea.sflag [#allocation3], %s178
        %s180 = sand.u32 %s30, 1
        %s181 = smul.addr %s180, 32
        %s182 = scalar_lea.vmem [#allocation2], %s181
        // Predicated region
        $region33: #{tpu_custom_call.1} parent=31 // pred_check
          %p183 = pneg %p43
        $region34: #{tpu_custom_call.1} parent=31 // pred_check_branch
          %185 = sbr.rel (%p183) target = $region36
        $region35: #{tpu_custom_call.1} parent=31 // pred_region
          %186 = dma.done %s179, 512
        $region36: #{tpu_custom_call.1} parent=31 // pred_fallthru
          _
        // Predicated region
        $region37: #{tpu_custom_call.1} parent=31 // pred_check
          %p187 = pneg %p64
        $region38: #{tpu_custom_call.1} parent=31 // pred_check_branch
          %189 = sbr.rel (%p187) target = $region40
        $region39: #{tpu_custom_call.1} parent=31 // pred_region
          %190 = dma.done [#allocation5], 64
        $region40: #{tpu_custom_call.1} parent=31 // pred_fallthru
          _
        // Predicated region
        $region41: #{tpu_custom_call.1} parent=31 // pred_check
          %p191 = pneg %p85
        $region42: #{tpu_custom_call.1} parent=31 // pred_check_branch
          %193 = sbr.rel (%p191) target = $region44
        $region43: #{tpu_custom_call.1} parent=31 // pred_region
          %194 = dma.done [#allocation6], 16
        $region44: #{tpu_custom_call.1} parent=31 // pred_fallthru
          _
        %195 = sfence
        %s196 = sand.u32 %s30, 1
        %s197 = scalar_lea.sflag [#allocation3], %s196
        %s198 = sand.u32 %s30, 1
        %s199 = smul.addr %s198, 32
        %s200 = scalar_lea.vmem [#allocation2], %s199
        %p201 = pneg %p43
        %p202 = pneg %p40
        %p203 = pneg %p64
        %p204 = pneg %p61
        %p205 = pneg %p85
        %p206 = pneg %p82
        %p207 = pneg %p111
        %p208 = pneg %p108
        %s209 = sand.u32 %s98, 1
        %s210 = scalar_lea.sflag [#allocation4], %s209
        %s211 = sand.u32 %s98, 1
        %s212 = smul.addr %s211, 256
        %s213 = scalar_lea.vmem [#allocation9], %s212
        %s214 = sld [smem:[#allocation7]]
        %s215 = sld [smem:[#allocation7 + $0x1]]
        %s216 = sld [smem:[#allocation7 + $0x2]]
        %s217 = sld [smem:[#allocation7 + $0x3]]
        %s218 = sld [smem:[#allocation7 + $0x4]]
        %s219 = sld [smem:[#allocation7 + $0x5]]
        %s220 = sld [smem:[#allocation7 + $0x6]]
        %s221 = sld [smem:[#allocation7 + $0x7]]
        %s222 = sld [smem:[#allocation7 + $0x80]]
        %s223 = sld [smem:[#allocation7 + $0x81]]
        %s224 = sld [smem:[#allocation7 + $0x82]]
        %s225 = sld [smem:[#allocation7 + $0x83]]
        %s226 = sld [smem:[#allocation7 + $0x84]]
        %s227 = sld [smem:[#allocation7 + $0x85]]
        %s228 = sld [smem:[#allocation7 + $0x86]]
        %s229 = sld [smem:[#allocation7 + $0x87]]
        %s230 = sld [smem:[#allocation7 + $0x100]]
        %s231 = sld [smem:[#allocation7 + $0x101]]
        %s232 = sld [smem:[#allocation7 + $0x102]]
        %s233 = sld [smem:[#allocation7 + $0x103]]
        %s234 = sld [smem:[#allocation7 + $0x104]]
        %s235 = sld [smem:[#allocation7 + $0x105]]
        %s236 = sld [smem:[#allocation7 + $0x106]]
        %s237 = sld [smem:[#allocation7 + $0x107]]
        %s238 = sld [smem:[#allocation7 + $0x180]]
        %s239 = sld [smem:[#allocation7 + $0x181]]
        %s240 = sld [smem:[#allocation7 + $0x182]]
        %s241 = sld [smem:[#allocation7 + $0x183]]
        %s242 = sld [smem:[#allocation7 + $0x184]]
        %s243 = sld [smem:[#allocation7 + $0x185]]
        %s244 = sld [smem:[#allocation7 + $0x186]]
        %s245 = sld [smem:[#allocation7 + $0x187]]
        %s246 = sld [smem:[#allocation8]]
        %s247 = sld [smem:[#allocation8 + $0x1]]
        %s248 = sld [smem:[#allocation8 + $0x2]]
        %s249 = sld [smem:[#allocation8 + $0x3]]
        %s250 = sld [smem:[#allocation8 + $0x4]]
        %s251 = sld [smem:[#allocation8 + $0x5]]
        %s252 = sld [smem:[#allocation8 + $0x6]]
        %s253 = sld [smem:[#allocation8 + $0x7]]
        %v254 = vlaneseq
        %v255 = vshrl.u32 %v254, 7
        %v256 = vld [vmem:[%s182] sm:$0xff]
        %s257 = scalar_lea.vmem %s182, 8 [#allocation2]
        %v258 = vld [vmem:[%s257] sm:$0xff]
        %s259 = scalar_lea.vmem %s182, 16 [#allocation2]
        %v260 = vld [vmem:[%s259] sm:$0xff]
        %s261 = scalar_lea.vmem %s182, 24 [#allocation2]
        %v262 = vld [vmem:[%s261] sm:$0xff]
        %v263 = vlaneseq
        %v264 = vshrl.u32 %v263, 7
        %v265 = vsub.s32 0, %v264
        %v266 = vrot.slane %v256, %v265
        %v267 = vsub.f32 %v266, %v256
        %v268 = vlaneseq
        %v269 = vshrl.u32 %v268, 7
        %v270 = vsub.s32 0, %v269
        %v271 = vrot.slane %v258, %v270
        %v272 = vsub.f32 %v271, %v258
        %v273 = vmul.f32 %v267, %v267
        %v274 = vmul.f32 %v272, %v272
        %v275 = vadd.f32 %v273, %v274
        %vm276 = vcmp.ne.f32.partialorder %v275, %v275
        %v277 = vsel %vm276, 1000000.0, %v275
        %vm278 = vcmp.eq.s32.totalorder %v255, 0
        %v279 = vsel %vm278, 1e+30, %v277
        %v280 = vlaneseq
        %v281 = vshrl.u32 %v280, 7
        %v282 = vsub.s32 1, %v281
        %v283 = vrot.slane %v256, %v282
        %v284 = vsub.f32 %v283, %v256
        %v285 = vlaneseq
        %v286 = vshrl.u32 %v285, 7
        %v287 = vsub.s32 1, %v286
        %v288 = vrot.slane %v258, %v287
        %v289 = vsub.f32 %v288, %v258
        %v290 = vmul.f32 %v284, %v284
        %v291 = vmul.f32 %v289, %v289
        %v292 = vadd.f32 %v290, %v291
        %vm293 = vcmp.ne.f32.partialorder %v292, %v292
        %v294 = vsel %vm293, 1000000.0, %v292
        %vm295 = vcmp.eq.s32.totalorder %v255, 1
        %v296 = vsel %vm295, 1e+30, %v294
        %v297 = vlaneseq
        %v298 = vshrl.u32 %v297, 7
        %v299 = vsub.s32 2, %v298
        %v300 = vrot.slane %v256, %v299
        %v301 = vsub.f32 %v300, %v256
        %v302 = vlaneseq
        %v303 = vshrl.u32 %v302, 7
        %v304 = vsub.s32 2, %v303
        %v305 = vrot.slane %v258, %v304
        %v306 = vsub.f32 %v305, %v258
        %v307 = vmul.f32 %v301, %v301
        %v308 = vmul.f32 %v306, %v306
        %v309 = vadd.f32 %v307, %v308
        %vm310 = vcmp.ne.f32.partialorder %v309, %v309
        %v311 = vsel %vm310, 1000000.0, %v309
        %vm312 = vcmp.eq.s32.totalorder %v255, 2
        %v313 = vsel %vm312, 1e+30, %v311
        %v314 = vlaneseq
        %v315 = vshrl.u32 %v314, 7
        %v316 = vsub.s32 3, %v315
        %v317 = vrot.slane %v256, %v316
        %v318 = vsub.f32 %v317, %v256
        %v319 = vlaneseq
        %v320 = vshrl.u32 %v319, 7
        %v321 = vsub.s32 3, %v320
        %v322 = vrot.slane %v258, %v321
        %v323 = vsub.f32 %v322, %v258
        %v324 = vmul.f32 %v318, %v318
        %v325 = vmul.f32 %v323, %v323
        %v326 = vadd.f32 %v324, %v325
        %vm327 = vcmp.ne.f32.partialorder %v326, %v326
        %v328 = vsel %vm327, 1000000.0, %v326
        %vm329 = vcmp.eq.s32.totalorder %v255, 3
        %v330 = vsel %vm329, 1e+30, %v328
        %v331 = vlaneseq
        %v332 = vshrl.u32 %v331, 7
        %v333 = vsub.s32 4, %v332
        %v334 = vrot.slane %v256, %v333
        %v335 = vsub.f32 %v334, %v256
        %v336 = vlaneseq
        %v337 = vshrl.u32 %v336, 7
        %v338 = vsub.s32 4, %v337
        %v339 = vrot.slane %v258, %v338
        %v340 = vsub.f32 %v339, %v258
        %v341 = vmul.f32 %v335, %v335
        %v342 = vmul.f32 %v340, %v340
        %v343 = vadd.f32 %v341, %v342
        %vm344 = vcmp.ne.f32.partialorder %v343, %v343
        %v345 = vsel %vm344, 1000000.0, %v343
        %vm346 = vcmp.eq.s32.totalorder %v255, 4
        %v347 = vsel %vm346, 1e+30, %v345
        %v348 = vlaneseq
        %v349 = vshrl.u32 %v348, 7
        %v350 = vsub.s32 5, %v349
        %v351 = vrot.slane %v256, %v350
        %v352 = vsub.f32 %v351, %v256
        %v353 = vlaneseq
        %v354 = vshrl.u32 %v353, 7
        %v355 = vsub.s32 5, %v354
        %v356 = vrot.slane %v258, %v355
        %v357 = vsub.f32 %v356, %v258
        %v358 = vmul.f32 %v352, %v352
        %v359 = vmul.f32 %v357, %v357
        %v360 = vadd.f32 %v358, %v359
        %vm361 = vcmp.ne.f32.partialorder %v360, %v360
        %v362 = vsel %vm361, 1000000.0, %v360
        %vm363 = vcmp.eq.s32.totalorder %v255, 5
        %v364 = vsel %vm363, 1e+30, %v362
        %v365 = vlaneseq
        %v366 = vshrl.u32 %v365, 7
        %v367 = vsub.s32 6, %v366
        %v368 = vrot.slane %v256, %v367
        %v369 = vsub.f32 %v368, %v256
        %v370 = vlaneseq
        %v371 = vshrl.u32 %v370, 7
        %v372 = vsub.s32 6, %v371
        %v373 = vrot.slane %v258, %v372
        %v374 = vsub.f32 %v373, %v258
        %v375 = vmul.f32 %v369, %v369
        %v376 = vmul.f32 %v374, %v374
        %v377 = vadd.f32 %v375, %v376
        %vm378 = vcmp.ne.f32.partialorder %v377, %v377
        %v379 = vsel %vm378, 1000000.0, %v377
        %vm380 = vcmp.eq.s32.totalorder %v255, 6
        %v381 = vsel %vm380, 1e+30, %v379
        %v382 = vlaneseq
        %v383 = vshrl.u32 %v382, 7
        %v384 = vsub.s32 7, %v383
        %v385 = vrot.slane %v256, %v384
        %v386 = vsub.f32 %v385, %v256
        %v387 = vlaneseq
        %v388 = vshrl.u32 %v387, 7
        %v389 = vsub.s32 7, %v388
        %v390 = vrot.slane %v258, %v389
        %v391 = vsub.f32 %v390, %v258
        %v392 = vmul.f32 %v386, %v386
        %v393 = vmul.f32 %v391, %v391
        %v394 = vadd.f32 %v392, %v393
        %vm395 = vcmp.ne.f32.partialorder %v394, %v394
        %v396 = vsel %vm395, 1000000.0, %v394
        %vm397 = vcmp.eq.s32.totalorder %v255, 7
        %v398 = vsel %vm397, 1e+30, %v396
        %v399 = vmin.f32 %v279, %v296
        %v400 = vmin.f32 %v399, %v313
        %v401 = vmin.f32 %v400, %v330
        %v402 = vmin.f32 %v401, %v347
        %v403 = vmin.f32 %v402, %v364
        %v404 = vmin.f32 %v403, %v381
        %v405 = vmin.f32 %v404, %v398
        %vm406 = vcmp.eq.f32.partialorder %v381, %v405
        %v407 = vsel %vm406, 6, 7
        %vm408 = vcmp.eq.f32.partialorder %v364, %v405
        %v409 = vsel %vm408, 5, %v407
        %vm410 = vcmp.eq.f32.partialorder %v347, %v405
        %v411 = vsel %vm410, 4, %v409
        %vm412 = vcmp.eq.f32.partialorder %v330, %v405
        %v413 = vsel %vm412, 3, %v411
        %vm414 = vcmp.eq.f32.partialorder %v313, %v405
        %v415 = vsel %vm414, 2, %v413
        %vm416 = vcmp.eq.f32.partialorder %v296, %v405
        %v417 = vsel %vm416, 1, %v415
        %vm418 = vcmp.eq.f32.partialorder %v279, %v405
        %v419 = vsel %vm418, 0, %v417
        %vm420 = vcmp.eq.s32.totalorder %v419, 0
        %v421 = vsel %vm420, %v266, 0.0
        %v422 = vsel %vm420, %v271, 0.0
        %v423 = vlaneseq
        %v424 = vshrl.u32 %v423, 7
        %v425 = vsub.s32 0, %v424
        %v426 = vrot.slane %v260, %v425
        %v427 = vsel %vm420, %v426, 0.0
        %v428 = vlaneseq
        %v429 = vshrl.u32 %v428, 7
        %v430 = vsub.s32 0, %v429
        %v431 = vrot.slane %v262, %v430
        %v432 = vsel %vm420, %v431, 0.0
        %v433 = vsel %vm420, 1e+30, %v279
        %vm434 = vcmp.eq.s32.totalorder %v419, 1
        %v435 = vsel %vm434, %v283, %v421
        %v436 = vsel %vm434, %v288, %v422
        %v437 = vlaneseq
        %v438 = vshrl.u32 %v437, 7
        %v439 = vsub.s32 1, %v438
        %v440 = vrot.slane %v260, %v439
        %v441 = vsel %vm434, %v440, %v427
        %v442 = vlaneseq
        %v443 = vshrl.u32 %v442, 7
        %v444 = vsub.s32 1, %v443
        %v445 = vrot.slane %v262, %v444
        %v446 = vsel %vm434, %v445, %v432
        %v447 = vsel %vm434, 1e+30, %v296
        %vm448 = vcmp.eq.s32.totalorder %v419, 2
        %v449 = vsel %vm448, %v300, %v435
        %v450 = vsel %vm448, %v305, %v436
        %v451 = vlaneseq
        %v452 = vshrl.u32 %v451, 7
        %v453 = vsub.s32 2, %v452
        %v454 = vrot.slane %v260, %v453
        %v455 = vsel %vm448, %v454, %v441
        %v456 = vlaneseq
        %v457 = vshrl.u32 %v456, 7
        %v458 = vsub.s32 2, %v457
        %v459 = vrot.slane %v262, %v458
        %v460 = vsel %vm448, %v459, %v446
        %v461 = vsel %vm448, 1e+30, %v313
        %vm462 = vcmp.eq.s32.totalorder %v419, 3
        %v463 = vsel %vm462, %v317, %v449
        %v464 = vsel %vm462, %v322, %v450
        %v465 = vlaneseq
        %v466 = vshrl.u32 %v465, 7
        %v467 = vsub.s32 3, %v466
        %v468 = vrot.slane %v260, %v467
        %v469 = vsel %vm462, %v468, %v455
        %v470 = vlaneseq
        %v471 = vshrl.u32 %v470, 7
        %v472 = vsub.s32 3, %v471
        %v473 = vrot.slane %v262, %v472
        %v474 = vsel %vm462, %v473, %v460
        %v475 = vsel %vm462, 1e+30, %v330
        %vm476 = vcmp.eq.s32.totalorder %v419, 4
        %v477 = vsel %vm476, %v334, %v463
        %v478 = vsel %vm476, %v339, %v464
        %v479 = vlaneseq
        %v480 = vshrl.u32 %v479, 7
        %v481 = vsub.s32 4, %v480
        %v482 = vrot.slane %v260, %v481
        %v483 = vsel %vm476, %v482, %v469
        %v484 = vlaneseq
        %v485 = vshrl.u32 %v484, 7
        %v486 = vsub.s32 4, %v485
        %v487 = vrot.slane %v262, %v486
        %v488 = vsel %vm476, %v487, %v474
        %v489 = vsel %vm476, 1e+30, %v347
        %vm490 = vcmp.eq.s32.totalorder %v419, 5
        %v491 = vsel %vm490, %v351, %v477
        %v492 = vsel %vm490, %v356, %v478
        %v493 = vlaneseq
        %v494 = vshrl.u32 %v493, 7
        %v495 = vsub.s32 5, %v494
        %v496 = vrot.slane %v260, %v495
        %v497 = vsel %vm490, %v496, %v483
        %v498 = vlaneseq
        %v499 = vshrl.u32 %v498, 7
        %v500 = vsub.s32 5, %v499
        %v501 = vrot.slane %v262, %v500
        %v502 = vsel %vm490, %v501, %v488
        %v503 = vsel %vm490, 1e+30, %v364
        %vm504 = vcmp.eq.s32.totalorder %v419, 6
        %v505 = vsel %vm504, %v368, %v491
        %v506 = vsel %vm504, %v373, %v492
        %v507 = vlaneseq
        %v508 = vshrl.u32 %v507, 7
        %v509 = vsub.s32 6, %v508
        %v510 = vrot.slane %v260, %v509
        %v511 = vsel %vm504, %v510, %v497
        %v512 = vlaneseq
        %v513 = vshrl.u32 %v512, 7
        %v514 = vsub.s32 6, %v513
        %v515 = vrot.slane %v262, %v514
        %v516 = vsel %vm504, %v515, %v502
        %v517 = vsel %vm504, 1e+30, %v381
        %vm518 = vcmp.eq.s32.totalorder %v419, 7
        %v519 = vsel %vm518, %v385, %v505
        %v520 = vsel %vm518, %v390, %v506
        %v521 = vlaneseq
        %v522 = vshrl.u32 %v521, 7
        %v523 = vsub.s32 7, %v522
        %v524 = vrot.slane %v260, %v523
        %v525 = vsel %vm518, %v524, %v511
        %v526 = vlaneseq
        %v527 = vshrl.u32 %v526, 7
        %v528 = vsub.s32 7, %v527
        %v529 = vrot.slane %v262, %v528
        %v530 = vsel %vm518, %v529, %v516
        %v531 = vsel %vm518, 1e+30, %v398
        %v532 = vsub.f32 %v519, %v256
        %v533 = vsub.f32 %v520, %v258
        %v534 = vsub.f32 %v525, %v260
        %v535 = vsub.f32 %v530, %v262
        %vm536 = vcmp.ne.f32.partialorder %v532, %v532
        %v537 = vsel %vm536, 0.0, %v532
        %vm538 = vcmp.ne.f32.partialorder %v533, %v533
        %v539 = vsel %vm538, 0.0, %v533
        %vm540 = vcmp.ne.f32.partialorder %v534, %v534
        %v541 = vsel %vm540, 0.0, %v534
        %vm542 = vcmp.ne.f32.partialorder %v535, %v535
        %v543 = vsel %vm542, 0.0, %v535
        %v544 = vstv %s214
        %v545 = vmul.f32 %v537, %v544
        %v546 = vstv %s222
        %v547 = vmul.f32 %v539, %v546
        %v548 = vadd.f32 %v545, %v547
        %v549 = vstv %s230
        %v550 = vmul.f32 %v541, %v549
        %v551 = vadd.f32 %v548, %v550
        %v552 = vstv %s238
        %v553 = vmul.f32 %v543, %v552
        %v554 = vadd.f32 %v551, %v553
        %v555 = vstv %s246
        %v556 = vadd.f32 %v554, %v555
        %v557 = vmax.f32 %v556, 0.0
        %558 = vst [vmem:[%s213] sm:$0xff] %v557
        %v559 = vstv %s215
        %v560 = vmul.f32 %v537, %v559
        %v561 = vstv %s223
        %v562 = vmul.f32 %v539, %v561
        %v563 = vadd.f32 %v560, %v562
        %v564 = vstv %s231
        %v565 = vmul.f32 %v541, %v564
        %v566 = vadd.f32 %v563, %v565
        %v567 = vstv %s239
        %v568 = vmul.f32 %v543, %v567
        %v569 = vadd.f32 %v566, %v568
        %v570 = vstv %s247
        %v571 = vadd.f32 %v569, %v570
        %v572 = vmax.f32 %v571, 0.0
        %s573 = scalar_lea.vmem %s213, 8 [#allocation9]
        %574 = vst [vmem:[%s573] sm:$0xff] %v572
        %v575 = vstv %s216
        %v576 = vmul.f32 %v537, %v575
        %v577 = vstv %s224
        %v578 = vmul.f32 %v539, %v577
        %v579 = vadd.f32 %v576, %v578
        %v580 = vstv %s232
        %v581 = vmul.f32 %v541, %v580
        %v582 = vadd.f32 %v579, %v581
        %v583 = vstv %s240
        %v584 = vmul.f32 %v543, %v583
        %v585 = vadd.f32 %v582, %v584
        %v586 = vstv %s248
        %v587 = vadd.f32 %v585, %v586
        %v588 = vmax.f32 %v587, 0.0
        %s589 = scalar_lea.vmem %s213, 16 [#allocation9]
        %590 = vst [vmem:[%s589] sm:$0xff] %v588
        %v591 = vstv %s217
        %v592 = vmul.f32 %v537, %v591
        %v593 = vstv %s225
        %v594 = vmul.f32 %v539, %v593
        %v595 = vadd.f32 %v592, %v594
        %v596 = vstv %s233
        %v597 = vmul.f32 %v541, %v596
        %v598 = vadd.f32 %v595, %v597
        %v599 = vstv %s241
        %v600 = vmul.f32 %v543, %v599
        %v601 = vadd.f32 %v598, %v600
        %v602 = vstv %s249
        %v603 = vadd.f32 %v601, %v602
        %v604 = vmax.f32 %v603, 0.0
        %s605 = scalar_lea.vmem %s213, 24 [#allocation9]
        %606 = vst [vmem:[%s605] sm:$0xff] %v604
        %v607 = vstv %s218
        %v608 = vmul.f32 %v537, %v607
        %v609 = vstv %s226
        %v610 = vmul.f32 %v539, %v609
        %v611 = vadd.f32 %v608, %v610
        %v612 = vstv %s234
        %v613 = vmul.f32 %v541, %v612
        %v614 = vadd.f32 %v611, %v613
        %v615 = vstv %s242
        %v616 = vmul.f32 %v543, %v615
        %v617 = vadd.f32 %v614, %v616
        %v618 = vstv %s250
        %v619 = vadd.f32 %v617, %v618
        %v620 = vmax.f32 %v619, 0.0
        %s621 = scalar_lea.vmem %s213, 32 [#allocation9]
        %622 = vst [vmem:[%s621] sm:$0xff] %v620
        %v623 = vstv %s219
        %v624 = vmul.f32 %v537, %v623
        %v625 = vstv %s227
        %v626 = vmul.f32 %v539, %v625
        %v627 = vadd.f32 %v624, %v626
        %v628 = vstv %s235
        %v629 = vmul.f32 %v541, %v628
        %v630 = vadd.f32 %v627, %v629
        %v631 = vstv %s243
        %v632 = vmul.f32 %v543, %v631
        %v633 = vadd.f32 %v630, %v632
        %v634 = vstv %s251
        %v635 = vadd.f32 %v633, %v634
        %v636 = vmax.f32 %v635, 0.0
        %s637 = scalar_lea.vmem %s213, 40 [#allocation9]
        %638 = vst [vmem:[%s637] sm:$0xff] %v636
        %v639 = vstv %s220
        %v640 = vmul.f32 %v537, %v639
        %v641 = vstv %s228
        %v642 = vmul.f32 %v539, %v641
        %v643 = vadd.f32 %v640, %v642
        %v644 = vstv %s236
        %v645 = vmul.f32 %v541, %v644
        %v646 = vadd.f32 %v643, %v645
        %v647 = vstv %s244
        %v648 = vmul.f32 %v543, %v647
        %v649 = vadd.f32 %v646, %v648
        %v650 = vstv %s252
        %v651 = vadd.f32 %v649, %v650
        %v652 = vmax.f32 %v651, 0.0
        %s653 = scalar_lea.vmem %s213, 48 [#allocation9]
        %654 = vst [vmem:[%s653] sm:$0xff] %v652
        %v655 = vstv %s221
        %v656 = vmul.f32 %v537, %v655
        %v657 = vstv %s229
        %v658 = vmul.f32 %v539, %v657
        %v659 = vadd.f32 %v656, %v658
        %v660 = vstv %s237
        %v661 = vmul.f32 %v541, %v660
        %v662 = vadd.f32 %v659, %v661
        %v663 = vstv %s245
        %v664 = vmul.f32 %v543, %v663
        %v665 = vadd.f32 %v662, %v664
        %v666 = vstv %s253
        %v667 = vadd.f32 %v665, %v666
        %v668 = vmax.f32 %v667, 0.0
        %s669 = scalar_lea.vmem %s213, 56 [#allocation9]
        %670 = vst [vmem:[%s669] sm:$0xff] %v668
        %v671 = vmin.f32 %v433, %v447
        %v672 = vmin.f32 %v671, %v461
        %v673 = vmin.f32 %v672, %v475
        %v674 = vmin.f32 %v673, %v489
        %v675 = vmin.f32 %v674, %v503
        %v676 = vmin.f32 %v675, %v517
        %v677 = vmin.f32 %v676, %v531
        %vm678 = vcmp.eq.f32.partialorder %v517, %v677
        %v679 = vsel %vm678, 6, 7
        %vm680 = vcmp.eq.f32.partialorder %v503, %v677
        %v681 = vsel %vm680, 5, %v679
        %vm682 = vcmp.eq.f32.partialorder %v489, %v677
        %v683 = vsel %vm682, 4, %v681
        %vm684 = vcmp.eq.f32.partialorder %v475, %v677
        %v685 = vsel %vm684, 3, %v683
        %vm686 = vcmp.eq.f32.partialorder %v461, %v677
        %v687 = vsel %vm686, 2, %v685
        %vm688 = vcmp.eq.f32.partialorder %v447, %v677
        %v689 = vsel %vm688, 1, %v687
        %vm690 = vcmp.eq.f32.partialorder %v433, %v677
        %v691 = vsel %vm690, 0, %v689
        %vm692 = vcmp.eq.s32.totalorder %v691, 0
        %v693 = vsel %vm692, %v266, 0.0
        %v694 = vsel %vm692, %v271, 0.0
        %v695 = vsel %vm692, %v426, 0.0
        %v696 = vsel %vm692, %v431, 0.0
        %v697 = vsel %vm692, 1e+30, %v433
        %vm698 = vcmp.eq.s32.totalorder %v691, 1
        %v699 = vsel %vm698, %v283, %v693
        %v700 = vsel %vm698, %v288, %v694
        %v701 = vsel %vm698, %v440, %v695
        %v702 = vsel %vm698, %v445, %v696
        %v703 = vsel %vm698, 1e+30, %v447
        %vm704 = vcmp.eq.s32.totalorder %v691, 2
        %v705 = vsel %vm704, %v300, %v699
        %v706 = vsel %vm704, %v305, %v700
        %v707 = vsel %vm704, %v454, %v701
        %v708 = vsel %vm704, %v459, %v702
        %v709 = vsel %vm704, 1e+30, %v461
        %vm710 = vcmp.eq.s32.totalorder %v691, 3
        %v711 = vsel %vm710, %v317, %v705
        %v712 = vsel %vm710, %v322, %v706
        %v713 = vsel %vm710, %v468, %v707
        %v714 = vsel %vm710, %v473, %v708
        %v715 = vsel %vm710, 1e+30, %v475
        %vm716 = vcmp.eq.s32.totalorder %v691, 4
        %v717 = vsel %vm716, %v334, %v711
        %v718 = vsel %vm716, %v339, %v712
        %v719 = vsel %vm716, %v482, %v713
        %v720 = vsel %vm716, %v487, %v714
        %v721 = vsel %vm716, 1e+30, %v489
        %vm722 = vcmp.eq.s32.totalorder %v691, 5
        %v723 = vsel %vm722, %v351, %v717
        %v724 = vsel %vm722, %v356, %v718
        %v725 = vsel %vm722, %v496, %v719
        %v726 = vsel %vm722, %v501, %v720
        %v727 = vsel %vm722, 1e+30, %v503
        %vm728 = vcmp.eq.s32.totalorder %v691, 6
        %v729 = vsel %vm728, %v368, %v723
        %v730 = vsel %vm728, %v373, %v724
        %v731 = vsel %vm728, %v510, %v725
        %v732 = vsel %vm728, %v515, %v726
        %v733 = vsel %vm728, 1e+30, %v517
        %vm734 = vcmp.eq.s32.totalorder %v691, 7
        %v735 = vsel %vm734, %v385, %v729
        %v736 = vsel %vm734, %v390, %v730
        %v737 = vsel %vm734, %v524, %v731
        %v738 = vsel %vm734, %v529, %v732
        %v739 = vsel %vm734, 1e+30, %v531
        %v740 = vsub.f32 %v735, %v256
        %v741 = vsub.f32 %v736, %v258
        %v742 = vsub.f32 %v737, %v260
        %v743 = vsub.f32 %v738, %v262
        %vm744 = vcmp.ne.f32.partialorder %v740, %v740
        %v745 = vsel %vm744, 0.0, %v740
        %vm746 = vcmp.ne.f32.partialorder %v741, %v741
        %v747 = vsel %vm746, 0.0, %v741
        %vm748 = vcmp.ne.f32.partialorder %v742, %v742
        %v749 = vsel %vm748, 0.0, %v742
        %vm750 = vcmp.ne.f32.partialorder %v743, %v743
        %v751 = vsel %vm750, 0.0, %v743
        %v752 = vmul.f32 %v745, %v544
        %v753 = vmul.f32 %v747, %v546
        %v754 = vadd.f32 %v752, %v753
        %v755 = vmul.f32 %v749, %v549
        %v756 = vadd.f32 %v754, %v755
        %v757 = vmul.f32 %v751, %v552
        %v758 = vadd.f32 %v756, %v757
        %v759 = vadd.f32 %v758, %v555
        %v760 = vmax.f32 %v759, 0.0
        %s761 = scalar_lea.vmem %s213, 64 [#allocation9]
        %762 = vst [vmem:[%s761] sm:$0xff] %v760
        %v763 = vmul.f32 %v745, %v559
        %v764 = vmul.f32 %v747, %v561
        %v765 = vadd.f32 %v763, %v764
        %v766 = vmul.f32 %v749, %v564
        %v767 = vadd.f32 %v765, %v766
        %v768 = vmul.f32 %v751, %v567
        %v769 = vadd.f32 %v767, %v768
        %v770 = vadd.f32 %v769, %v570
        %v771 = vmax.f32 %v770, 0.0
        %s772 = scalar_lea.vmem %s213, 72 [#allocation9]
        %773 = vst [vmem:[%s772] sm:$0xff] %v771
        %v774 = vmul.f32 %v745, %v575
        %v775 = vmul.f32 %v747, %v577
        %v776 = vadd.f32 %v774, %v775
        %v777 = vmul.f32 %v749, %v580
        %v778 = vadd.f32 %v776, %v777
        %v779 = vmul.f32 %v751, %v583
        %v780 = vadd.f32 %v778, %v779
        %v781 = vadd.f32 %v780, %v586
        %v782 = vmax.f32 %v781, 0.0
        %s783 = scalar_lea.vmem %s213, 80 [#allocation9]
        %784 = vst [vmem:[%s783] sm:$0xff] %v782
        %v785 = vmul.f32 %v745, %v591
        %v786 = vmul.f32 %v747, %v593
        %v787 = vadd.f32 %v785, %v786
        %v788 = vmul.f32 %v749, %v596
        %v789 = vadd.f32 %v787, %v788
        %v790 = vmul.f32 %v751, %v599
        %v791 = vadd.f32 %v789, %v790
        %v792 = vadd.f32 %v791, %v602
        %v793 = vmax.f32 %v792, 0.0
        %s794 = scalar_lea.vmem %s213, 88 [#allocation9]
        %795 = vst [vmem:[%s794] sm:$0xff] %v793
        %v796 = vmul.f32 %v745, %v607
        %v797 = vmul.f32 %v747, %v609
        %v798 = vadd.f32 %v796, %v797
        %v799 = vmul.f32 %v749, %v612
        %v800 = vadd.f32 %v798, %v799
        %v801 = vmul.f32 %v751, %v615
        %v802 = vadd.f32 %v800, %v801
        %v803 = vadd.f32 %v802, %v618
        %v804 = vmax.f32 %v803, 0.0
        %s805 = scalar_lea.vmem %s213, 96 [#allocation9]
        %806 = vst [vmem:[%s805] sm:$0xff] %v804
        %v807 = vmul.f32 %v745, %v623
        %v808 = vmul.f32 %v747, %v625
        %v809 = vadd.f32 %v807, %v808
        %v810 = vmul.f32 %v749, %v628
        %v811 = vadd.f32 %v809, %v810
        %v812 = vmul.f32 %v751, %v631
        %v813 = vadd.f32 %v811, %v812
        %v814 = vadd.f32 %v813, %v634
        %v815 = vmax.f32 %v814, 0.0
        %s816 = scalar_lea.vmem %s213, 104 [#allocation9]
        %817 = vst [vmem:[%s816] sm:$0xff] %v815
        %v818 = vmul.f32 %v745, %v639
        %v819 = vmul.f32 %v747, %v641
        %v820 = vadd.f32 %v818, %v819
        %v821 = vmul.f32 %v749, %v644
        %v822 = vadd.f32 %v820, %v821
        %v823 = vmul.f32 %v751, %v647
        %v824 = vadd.f32 %v822, %v823
        %v825 = vadd.f32 %v824, %v650
        %v826 = vmax.f32 %v825, 0.0
        %s827 = scalar_lea.vmem %s213, 112 [#allocation9]
        %828 = vst [vmem:[%s827] sm:$0xff] %v826
        %v829 = vmul.f32 %v745, %v655
        %v830 = vmul.f32 %v747, %v657
        %v831 = vadd.f32 %v829, %v830
        %v832 = vmul.f32 %v749, %v660
        %v833 = vadd.f32 %v831, %v832
        %v834 = vmul.f32 %v751, %v663
        %v835 = vadd.f32 %v833, %v834
        %v836 = vadd.f32 %v835, %v666
        %v837 = vmax.f32 %v836, 0.0
        %s838 = scalar_lea.vmem %s213, 120 [#allocation9]
        %839 = vst [vmem:[%s838] sm:$0xff] %v837
        %v840 = vmin.f32 %v697, %v703
        %v841 = vmin.f32 %v840, %v709
        %v842 = vmin.f32 %v841, %v715
        %v843 = vmin.f32 %v842, %v721
        %v844 = vmin.f32 %v843, %v727
        %v845 = vmin.f32 %v844, %v733
        %v846 = vmin.f32 %v845, %v739
        %vm847 = vcmp.eq.f32.partialorder %v733, %v846
        %v848 = vsel %vm847, 6, 7
        %vm849 = vcmp.eq.f32.partialorder %v727, %v846
        %v850 = vsel %vm849, 5, %v848
        %vm851 = vcmp.eq.f32.partialorder %v721, %v846
        %v852 = vsel %vm851, 4, %v850
        %vm853 = vcmp.eq.f32.partialorder %v715, %v846
        %v854 = vsel %vm853, 3, %v852
        %vm855 = vcmp.eq.f32.partialorder %v709, %v846
        %v856 = vsel %vm855, 2, %v854
        %vm857 = vcmp.eq.f32.partialorder %v703, %v846
        %v858 = vsel %vm857, 1, %v856
        %vm859 = vcmp.eq.f32.partialorder %v697, %v846
        %v860 = vsel %vm859, 0, %v858
        %vm861 = vcmp.eq.s32.totalorder %v860, 0
        %v862 = vsel %vm861, %v266, 0.0
        %v863 = vsel %vm861, %v271, 0.0
        %v864 = vsel %vm861, %v426, 0.0
        %v865 = vsel %vm861, %v431, 0.0
        %v866 = vsel %vm861, 1e+30, %v697
        %vm867 = vcmp.eq.s32.totalorder %v860, 1
        %v868 = vsel %vm867, %v283, %v862
        %v869 = vsel %vm867, %v288, %v863
        %v870 = vsel %vm867, %v440, %v864
        %v871 = vsel %vm867, %v445, %v865
        %v872 = vsel %vm867, 1e+30, %v703
        %vm873 = vcmp.eq.s32.totalorder %v860, 2
        %v874 = vsel %vm873, %v300, %v868
        %v875 = vsel %vm873, %v305, %v869
        %v876 = vsel %vm873, %v454, %v870
        %v877 = vsel %vm873, %v459, %v871
        %v878 = vsel %vm873, 1e+30, %v709
        %vm879 = vcmp.eq.s32.totalorder %v860, 3
        %v880 = vsel %vm879, %v317, %v874
        %v881 = vsel %vm879, %v322, %v875
        %v882 = vsel %vm879, %v468, %v876
        %v883 = vsel %vm879, %v473, %v877
        %v884 = vsel %vm879, 1e+30, %v715
        %vm885 = vcmp.eq.s32.totalorder %v860, 4
        %v886 = vsel %vm885, %v334, %v880
        %v887 = vsel %vm885, %v339, %v881
        %v888 = vsel %vm885, %v482, %v882
        %v889 = vsel %vm885, %v487, %v883
        %v890 = vsel %vm885, 1e+30, %v721
        %vm891 = vcmp.eq.s32.totalorder %v860, 5
        %v892 = vsel %vm891, %v351, %v886
        %v893 = vsel %vm891, %v356, %v887
        %v894 = vsel %vm891, %v496, %v888
        %v895 = vsel %vm891, %v501, %v889
        %v896 = vsel %vm891, 1e+30, %v727
        %vm897 = vcmp.eq.s32.totalorder %v860, 6
        %v898 = vsel %vm897, %v368, %v892
        %v899 = vsel %vm897, %v373, %v893
        %v900 = vsel %vm897, %v510, %v894
        %v901 = vsel %vm897, %v515, %v895
        %v902 = vsel %vm897, 1e+30, %v733
        %vm903 = vcmp.eq.s32.totalorder %v860, 7
        %v904 = vsel %vm903, %v385, %v898
        %v905 = vsel %vm903, %v390, %v899
        %v906 = vsel %vm903, %v524, %v900
        %v907 = vsel %vm903, %v529, %v901
        %v908 = vsel %vm903, 1e+30, %v739
        %v909 = vsub.f32 %v904, %v256
        %v910 = vsub.f32 %v905, %v258
        %v911 = vsub.f32 %v906, %v260
        %v912 = vsub.f32 %v907, %v262
        %vm913 = vcmp.ne.f32.partialorder %v909, %v909
        %v914 = vsel %vm913, 0.0, %v909
        %vm915 = vcmp.ne.f32.partialorder %v910, %v910
        %v916 = vsel %vm915, 0.0, %v910
        %vm917 = vcmp.ne.f32.partialorder %v911, %v911
        %v918 = vsel %vm917, 0.0, %v911
        %vm919 = vcmp.ne.f32.partialorder %v912, %v912
        %v920 = vsel %vm919, 0.0, %v912
        %v921 = vmul.f32 %v914, %v544
        %v922 = vmul.f32 %v916, %v546
        %v923 = vadd.f32 %v921, %v922
        %v924 = vmul.f32 %v918, %v549
        %v925 = vadd.f32 %v923, %v924
        %v926 = vmul.f32 %v920, %v552
        %v927 = vadd.f32 %v925, %v926
        %v928 = vadd.f32 %v927, %v555
        %v929 = vmax.f32 %v928, 0.0
        %s930 = scalar_lea.vmem %s213, 128 [#allocation9]
        %931 = vst [vmem:[%s930] sm:$0xff] %v929
        %v932 = vmul.f32 %v914, %v559
        %v933 = vmul.f32 %v916, %v561
        %v934 = vadd.f32 %v932, %v933
        %v935 = vmul.f32 %v918, %v564
        %v936 = vadd.f32 %v934, %v935
        %v937 = vmul.f32 %v920, %v567
        %v938 = vadd.f32 %v936, %v937
        %v939 = vadd.f32 %v938, %v570
        %v940 = vmax.f32 %v939, 0.0
        %s941 = scalar_lea.vmem %s213, 136 [#allocation9]
        %942 = vst [vmem:[%s941] sm:$0xff] %v940
        %v943 = vmul.f32 %v914, %v575
        %v944 = vmul.f32 %v916, %v577
        %v945 = vadd.f32 %v943, %v944
        %v946 = vmul.f32 %v918, %v580
        %v947 = vadd.f32 %v945, %v946
        %v948 = vmul.f32 %v920, %v583
        %v949 = vadd.f32 %v947, %v948
        %v950 = vadd.f32 %v949, %v586
        %v951 = vmax.f32 %v950, 0.0
        %s952 = scalar_lea.vmem %s213, 144 [#allocation9]
        %953 = vst [vmem:[%s952] sm:$0xff] %v951
        %v954 = vmul.f32 %v914, %v591
        %v955 = vmul.f32 %v916, %v593
        %v956 = vadd.f32 %v954, %v955
        %v957 = vmul.f32 %v918, %v596
        %v958 = vadd.f32 %v956, %v957
        %v959 = vmul.f32 %v920, %v599
        %v960 = vadd.f32 %v958, %v959
        %v961 = vadd.f32 %v960, %v602
        %v962 = vmax.f32 %v961, 0.0
        %s963 = scalar_lea.vmem %s213, 152 [#allocation9]
        %964 = vst [vmem:[%s963] sm:$0xff] %v962
        %v965 = vmul.f32 %v914, %v607
        %v966 = vmul.f32 %v916, %v609
        %v967 = vadd.f32 %v965, %v966
        %v968 = vmul.f32 %v918, %v612
        %v969 = vadd.f32 %v967, %v968
        %v970 = vmul.f32 %v920, %v615
        %v971 = vadd.f32 %v969, %v970
        %v972 = vadd.f32 %v971, %v618
        %v973 = vmax.f32 %v972, 0.0
        %s974 = scalar_lea.vmem %s213, 160 [#allocation9]
        %975 = vst [vmem:[%s974] sm:$0xff] %v973
        %v976 = vmul.f32 %v914, %v623
        %v977 = vmul.f32 %v916, %v625
        %v978 = vadd.f32 %v976, %v977
        %v979 = vmul.f32 %v918, %v628
        %v980 = vadd.f32 %v978, %v979
        %v981 = vmul.f32 %v920, %v631
        %v982 = vadd.f32 %v980, %v981
        %v983 = vadd.f32 %v982, %v634
        %v984 = vmax.f32 %v983, 0.0
        %s985 = scalar_lea.vmem %s213, 168 [#allocation9]
        %986 = vst [vmem:[%s985] sm:$0xff] %v984
        %v987 = vmul.f32 %v914, %v639
        %v988 = vmul.f32 %v916, %v641
        %v989 = vadd.f32 %v987, %v988
        %v990 = vmul.f32 %v918, %v644
        %v991 = vadd.f32 %v989, %v990
        %v992 = vmul.f32 %v920, %v647
        %v993 = vadd.f32 %v991, %v992
        %v994 = vadd.f32 %v993, %v650
        %v995 = vmax.f32 %v994, 0.0
        %s996 = scalar_lea.vmem %s213, 176 [#allocation9]
        %997 = vst [vmem:[%s996] sm:$0xff] %v995
        %v998 = vmul.f32 %v914, %v655
        %v999 = vmul.f32 %v916, %v657
        %v1000 = vadd.f32 %v998, %v999
        %v1001 = vmul.f32 %v918, %v660
        %v1002 = vadd.f32 %v1000, %v1001
        %v1003 = vmul.f32 %v920, %v663
        %v1004 = vadd.f32 %v1002, %v1003
        %v1005 = vadd.f32 %v1004, %v666
        %v1006 = vmax.f32 %v1005, 0.0
        %s1007 = scalar_lea.vmem %s213, 184 [#allocation9]
        %1008 = vst [vmem:[%s1007] sm:$0xff] %v1006
        %v1009 = vmin.f32 %v866, %v872
        %v1010 = vmin.f32 %v1009, %v878
        %v1011 = vmin.f32 %v1010, %v884
        %v1012 = vmin.f32 %v1011, %v890
        %v1013 = vmin.f32 %v1012, %v896
        %v1014 = vmin.f32 %v1013, %v902
        %v1015 = vmin.f32 %v1014, %v908
        %vm1016 = vcmp.eq.f32.partialorder %v902, %v1015
        %v1017 = vsel %vm1016, 6, 7
        %vm1018 = vcmp.eq.f32.partialorder %v896, %v1015
        %v1019 = vsel %vm1018, 5, %v1017
        %vm1020 = vcmp.eq.f32.partialorder %v890, %v1015
        %v1021 = vsel %vm1020, 4, %v1019
        %vm1022 = vcmp.eq.f32.partialorder %v884, %v1015
        %v1023 = vsel %vm1022, 3, %v1021
        %vm1024 = vcmp.eq.f32.partialorder %v878, %v1015
        %v1025 = vsel %vm1024, 2, %v1023
        %vm1026 = vcmp.eq.f32.partialorder %v872, %v1015
        %v1027 = vsel %vm1026, 1, %v1025
        %vm1028 = vcmp.eq.f32.partialorder %v866, %v1015
        %v1029 = vsel %vm1028, 0, %v1027
        %vm1030 = vcmp.eq.s32.totalorder %v1029, 0
        %v1031 = vsel %vm1030, %v266, 0.0
        %v1032 = vsel %vm1030, %v271, 0.0
        %v1033 = vsel %vm1030, %v426, 0.0
        %v1034 = vsel %vm1030, %v431, 0.0
        %vm1035 = vcmp.eq.s32.totalorder %v1029, 1
        %v1036 = vsel %vm1035, %v283, %v1031
        %v1037 = vsel %vm1035, %v288, %v1032
        %v1038 = vsel %vm1035, %v440, %v1033
        %v1039 = vsel %vm1035, %v445, %v1034
        %vm1040 = vcmp.eq.s32.totalorder %v1029, 2
        %v1041 = vsel %vm1040, %v300, %v1036
        %v1042 = vsel %vm1040, %v305, %v1037
        %v1043 = vsel %vm1040, %v454, %v1038
        %v1044 = vsel %vm1040, %v459, %v1039
        %vm1045 = vcmp.eq.s32.totalorder %v1029, 3
        %v1046 = vsel %vm1045, %v317, %v1041
        %v1047 = vsel %vm1045, %v322, %v1042
        %v1048 = vsel %vm1045, %v468, %v1043
        %v1049 = vsel %vm1045, %v473, %v1044
        %vm1050 = vcmp.eq.s32.totalorder %v1029, 4
        %v1051 = vsel %vm1050, %v334, %v1046
        %v1052 = vsel %vm1050, %v339, %v1047
        %v1053 = vsel %vm1050, %v482, %v1048
        %v1054 = vsel %vm1050, %v487, %v1049
        %vm1055 = vcmp.eq.s32.totalorder %v1029, 5
        %v1056 = vsel %vm1055, %v351, %v1051
        %v1057 = vsel %vm1055, %v356, %v1052
        %v1058 = vsel %vm1055, %v496, %v1053
        %v1059 = vsel %vm1055, %v501, %v1054
        %vm1060 = vcmp.eq.s32.totalorder %v1029, 6
        %v1061 = vsel %vm1060, %v368, %v1056
        %v1062 = vsel %vm1060, %v373, %v1057
        %v1063 = vsel %vm1060, %v510, %v1058
        %v1064 = vsel %vm1060, %v515, %v1059
        %vm1065 = vcmp.eq.s32.totalorder %v1029, 7
        %v1066 = vsel %vm1065, %v385, %v1061
        %v1067 = vsel %vm1065, %v390, %v1062
        %v1068 = vsel %vm1065, %v524, %v1063
        %v1069 = vsel %vm1065, %v529, %v1064
        %v1070 = vsub.f32 %v1066, %v256
        %v1071 = vsub.f32 %v1067, %v258
        %v1072 = vsub.f32 %v1068, %v260
        %v1073 = vsub.f32 %v1069, %v262
        %vm1074 = vcmp.ne.f32.partialorder %v1070, %v1070
        %v1075 = vsel %vm1074, 0.0, %v1070
        %vm1076 = vcmp.ne.f32.partialorder %v1071, %v1071
        %v1077 = vsel %vm1076, 0.0, %v1071
        %vm1078 = vcmp.ne.f32.partialorder %v1072, %v1072
        %v1079 = vsel %vm1078, 0.0, %v1072
        %vm1080 = vcmp.ne.f32.partialorder %v1073, %v1073
        %v1081 = vsel %vm1080, 0.0, %v1073
        %v1082 = vmul.f32 %v1075, %v544
        %v1083 = vmul.f32 %v1077, %v546
        %v1084 = vadd.f32 %v1082, %v1083
        %v1085 = vmul.f32 %v1079, %v549
        %v1086 = vadd.f32 %v1084, %v1085
        %v1087 = vmul.f32 %v1081, %v552
        %v1088 = vadd.f32 %v1086, %v1087
        %v1089 = vadd.f32 %v1088, %v555
        %v1090 = vmax.f32 %v1089, 0.0
        %s1091 = scalar_lea.vmem %s213, 192 [#allocation9]
        %1092 = vst [vmem:[%s1091] sm:$0xff] %v1090
        %v1093 = vmul.f32 %v1075, %v559
        %v1094 = vmul.f32 %v1077, %v561
        %v1095 = vadd.f32 %v1093, %v1094
        %v1096 = vmul.f32 %v1079, %v564
        %v1097 = vadd.f32 %v1095, %v1096
        %v1098 = vmul.f32 %v1081, %v567
        %v1099 = vadd.f32 %v1097, %v1098
        %v1100 = vadd.f32 %v1099, %v570
        %v1101 = vmax.f32 %v1100, 0.0
        %s1102 = scalar_lea.vmem %s213, 200 [#allocation9]
        %1103 = vst [vmem:[%s1102] sm:$0xff] %v1101
        %v1104 = vmul.f32 %v1075, %v575
        %v1105 = vmul.f32 %v1077, %v577
        %v1106 = vadd.f32 %v1104, %v1105
        %v1107 = vmul.f32 %v1079, %v580
        %v1108 = vadd.f32 %v1106, %v1107
        %v1109 = vmul.f32 %v1081, %v583
        %v1110 = vadd.f32 %v1108, %v1109
        %v1111 = vadd.f32 %v1110, %v586
        %v1112 = vmax.f32 %v1111, 0.0
        %s1113 = scalar_lea.vmem %s213, 208 [#allocation9]
        %1114 = vst [vmem:[%s1113] sm:$0xff] %v1112
        %v1115 = vmul.f32 %v1075, %v591
        %v1116 = vmul.f32 %v1077, %v593
        %v1117 = vadd.f32 %v1115, %v1116
        %v1118 = vmul.f32 %v1079, %v596
        %v1119 = vadd.f32 %v1117, %v1118
        %v1120 = vmul.f32 %v1081, %v599
        %v1121 = vadd.f32 %v1119, %v1120
        %v1122 = vadd.f32 %v1121, %v602
        %v1123 = vmax.f32 %v1122, 0.0
        %s1124 = scalar_lea.vmem %s213, 216 [#allocation9]
        %1125 = vst [vmem:[%s1124] sm:$0xff] %v1123
        %v1126 = vmul.f32 %v1075, %v607
        %v1127 = vmul.f32 %v1077, %v609
        %v1128 = vadd.f32 %v1126, %v1127
        %v1129 = vmul.f32 %v1079, %v612
        %v1130 = vadd.f32 %v1128, %v1129
        %v1131 = vmul.f32 %v1081, %v615
        %v1132 = vadd.f32 %v1130, %v1131
        %v1133 = vadd.f32 %v1132, %v618
        %v1134 = vmax.f32 %v1133, 0.0
        %s1135 = scalar_lea.vmem %s213, 224 [#allocation9]
        %1136 = vst [vmem:[%s1135] sm:$0xff] %v1134
        %v1137 = vmul.f32 %v1075, %v623
        %v1138 = vmul.f32 %v1077, %v625
        %v1139 = vadd.f32 %v1137, %v1138
        %v1140 = vmul.f32 %v1079, %v628
        %v1141 = vadd.f32 %v1139, %v1140
        %v1142 = vmul.f32 %v1081, %v631
        %v1143 = vadd.f32 %v1141, %v1142
        %v1144 = vadd.f32 %v1143, %v634
        %v1145 = vmax.f32 %v1144, 0.0
        %s1146 = scalar_lea.vmem %s213, 232 [#allocation9]
        %1147 = vst [vmem:[%s1146] sm:$0xff] %v1145
        %v1148 = vmul.f32 %v1075, %v639
        %v1149 = vmul.f32 %v1077, %v641
        %v1150 = vadd.f32 %v1148, %v1149
        %v1151 = vmul.f32 %v1079, %v644
        %v1152 = vadd.f32 %v1150, %v1151
        %v1153 = vmul.f32 %v1081, %v647
        %v1154 = vadd.f32 %v1152, %v1153
        %v1155 = vadd.f32 %v1154, %v650
        %v1156 = vmax.f32 %v1155, 0.0
        %s1157 = scalar_lea.vmem %s213, 240 [#allocation9]
        %1158 = vst [vmem:[%s1157] sm:$0xff] %v1156
        %v1159 = vmul.f32 %v1075, %v655
        %v1160 = vmul.f32 %v1077, %v657
        %v1161 = vadd.f32 %v1159, %v1160
        %v1162 = vmul.f32 %v1079, %v660
        %v1163 = vadd.f32 %v1161, %v1162
        %v1164 = vmul.f32 %v1081, %v663
        %v1165 = vadd.f32 %v1163, %v1164
        %v1166 = vadd.f32 %v1165, %v666
        %v1167 = vmax.f32 %v1166, 0.0
        %s1168 = scalar_lea.vmem %s213, 248 [#allocation9]
        %1169 = vst [vmem:[%s1168] sm:$0xff] %v1167
        %s1170 = sand.u32 %s98, 1
        %s1171 = scalar_lea.sflag [#allocation4], %s1170
        %s1172 = sand.u32 %s98, 1
        %s1173 = smul.addr %s1172, 256
        %s1174 = scalar_lea.vmem [#allocation9], %s1173
        // Predicated region
        $region45: #{tpu_custom_call.1} parent=31 // pred_check
          %p1175 = pneg %p108
        $region46: #{tpu_custom_call.1} parent=31 // pred_check_branch
          %1177 = sbr.rel (%p1175) target = $region48
        $region47: #{tpu_custom_call.1} parent=31 // pred_region
          %s1179 = ssub.s32 4096, 4096
          %1180 = vsyncadd %s1171, %s1179
          %s1181 = smul.addr %s22, 32
          %s1182 = smul.addr %s1181, 128
          %s1183 = scalar_lea.hbm %s3, %s1182
          %s1184 = sshll.u32 %s1174, 4
          %s1185 = int_to_ptr.vmem [resolvable:$true] %s1184
          %1190 = dma.vmem_to_hbm [thread:$0]  %s1185, 4096, %s1183, %s1171, 128, 128, 8
        $region48: #{tpu_custom_call.1} parent=31 // pred_fallthru
          _
      $region32: #{tpu_custom_call.1} parent=5 // pred_fallthru
        _
      %p1191 = scmp.le.s32.totalorder 2, %s17
      // Predicated region
      $region49: #{tpu_custom_call.1} parent=5 // pred_check
        %p1192 = pneg %p1191
      $region50: #{tpu_custom_call.1} parent=5 // pred_check_branch
        %1194 = sbr.rel (%p1192) target = $region52
      $region51: #{tpu_custom_call.1} parent=5 // pred_region
        %s1195 = ssub.s32 %s17, 2
        // Predicated region
        $region53: #{tpu_custom_call.1} parent=51 // pred_check
          %p1196 = pneg %p114
        $region54: #{tpu_custom_call.1} parent=51 // pred_check_branch
          %1198 = sbr.rel (%p1196) target = $region56
        $region55: #{tpu_custom_call.1} parent=51 // pred_region
          %s1199 = sand.u32 %s99, 1
          %s1200 = scalar_lea.sflag [#allocation4], %s1199
          %s1201 = sand.u32 %s99, 1
          %s1202 = smul.addr %s1201, 256
          %s1203 = scalar_lea.vmem [#allocation9], %s1202
          %1204 = dma.done %s1200, 4096
        $region56: #{tpu_custom_call.1} parent=51 // pred_fallthru
          _
      $region52: #{tpu_custom_call.1} parent=5 // pred_fallthru
        _
    $region6: #{tpu_custom_call.1} parent=1 // loop_footer
      %s21 = sadd.s32 1, %s17
    $region7: #{tpu_custom_call.1} parent=1 // loop_footer_branch
      %16 = sbr.rel target = $region3
    $region8: #{tpu_custom_call.1} parent=1 // loop_exit
      _
    %1205 = vsyncpa [#allocation3], 1
    %s1206 = scalar_lea.sflag [#allocation3], 1
    %1207 = vsyncpa %s1206, 1
    %1208 = vsyncpa [#allocation4], 1
    %s1209 = scalar_lea.sflag [#allocation4], 1
    %1210 = vsyncpa %s1209, 1
    %1211 = vsyncpa [#allocation5], 1
    %s1212 = scalar_lea.sflag [#allocation5], 1
    %1213 = vsyncpa %s1212, 1
    %1214 = vsyncpa [#allocation6], 1
    %s1215 = scalar_lea.sflag [#allocation6], 1
    %1216 = vsyncpa %s1215, 1

</llo_original>
